<compile_context>
chip_gen: v7x
topology: tpu7x:2x2x1
jax: 0.10.0
libtpu: 0.0.40
codegen_flags: <defaults>
</compile_context>

<pallas_src>
import functools

import jax
import jax.numpy as jnp
import numpy as np
from jax.experimental import pallas as pl
from jax.experimental.pallas import tpu as pltpu


def _round_up(x, m):
    return (x + m - 1) // m * m


# ------------------------------ Pallas kernel ------------------------------ #

def _wx_bias_kernel(w_ref, p_ref, b_ref, o_ref, *, apply_relu):
    # (N, K) @ (K, tm) -> (N, tm); the big M axis lives on lanes (lane-dense).
    acc = jnp.dot(w_ref[...], p_ref[...], preferred_element_type=jnp.float32)
    acc = acc + b_ref[...]                      # (N, 1) broadcasts across lanes
    if apply_relu:
        acc = jnp.maximum(acc, 0.0)
    o_ref[...] = acc.astype(o_ref.dtype)


# 48 MiB scoped VMEM: below v7x's 64 MiB physical per-TC VMEM, comfortably
# inside v5e/v6e's 128 MiB.
_VMEM_LIMIT = 48 * 1024 * 1024
_P_TILE_BUDGET = 12 * 1024 * 1024    # per patch-tile budget (double buffered)


def matmul_bias(w, p, bias, apply_relu):
    """out(N, M) = w(N, K) @ p(K, M) + bias(N,)  [+ optional ReLU]."""
    n_out, k = w.shape
    k2, m = p.shape
    assert k == k2
    bias2d = bias.reshape(n_out, 1)

    if k * m * 4 <= _P_TILE_BUDGET:
        # Whole problem in one block: full-extent dims (always legal block
        # shapes), no padding copy, no masked boundary stores.
        tm, m_pad, grid = m, m, 1
        p_in = p
    else:
        # Fallback tiling of the lane (M) axis (not hit at these model sizes).
        tm = max(128, (_P_TILE_BUDGET // (4 * k)) // 128 * 128)
        m_pad = _round_up(m, tm)
        p_in = jnp.pad(p, ((0, 0), (0, m_pad - m))) if m_pad != m else p
        grid = m_pad // tm

    out = pl.pallas_call(
        functools.partial(_wx_bias_kernel, apply_relu=apply_relu),
        out_shape=jax.ShapeDtypeStruct((n_out, m_pad), jnp.float32),
        grid_spec=pltpu.PrefetchScalarGridSpec(
            num_scalar_prefetch=0,
            grid=(grid,),
            in_specs=[
                pl.BlockSpec((n_out, k), lambda i: (0, 0)),   # weights, resident
                pl.BlockSpec((k, tm), lambda i: (0, i)),      # patch columns
                pl.BlockSpec((n_out, 1), lambda i: (0, 0)),   # bias, resident
            ],
            out_specs=pl.BlockSpec((n_out, tm), lambda i: (0, i)),
        ),
        compiler_params=pltpu.CompilerParams(
            dimension_semantics=("parallel",),   # lets v7x split multi-step grids
            vmem_limit_bytes=_VMEM_LIMIT,
        ),
    )(w, p_in, bias2d)
    return out[:, :m] if m_pad != m else out


# -------------------------------- JAX glue --------------------------------- #

def _im2col_cm(x_cm, kh, kw, sh, sw):
    """x_cm: (C, N, H, W) -> patches (C*kh*kw, N*oh*ow) matching OIHW weights."""
    c, n, h, w = x_cm.shape
    oh = (h - kh) // sh + 1
    ow = (w - kw) // sw + 1
    ih = jnp.arange(oh)[:, None] * sh + jnp.arange(kh)[None, :]     # (oh, kh)
    iw = jnp.arange(ow)[:, None] * sw + jnp.arange(kw)[None, :]     # (ow, kw)
    p = x_cm[:, :, ih[:, :, None, None], iw[None, None, :, :]]      # (c,n,oh,kh,ow,kw)
    p = p.transpose(0, 3, 5, 1, 2, 4)                               # (c,kh,kw,n,oh,ow)
    return p.reshape(c * kh * kw, n * oh * ow), oh, ow


def conv2d_cm(x_cm, w, b, stride, padding, apply_relu):
    """PyTorch-semantics Conv2d on channel-major activations.
    x_cm: (Cin, N, H, W), w: (Cout, Cin, kH, kW) -> (Cout, N, OH, OW)."""
    sh, sw = stride
    ph, pw = padding
    co, ci, kh, kw = w.shape
    if ph or pw:
        x_cm = jnp.pad(x_cm, ((0, 0), (0, 0), (ph, ph), (pw, pw)))
    n = x_cm.shape[1]
    patches, oh, ow = _im2col_cm(x_cm, kh, kw, sh, sw)
    wmat = w.reshape(co, ci * kh * kw)                  # (Cout, K)
    out = matmul_bias(wmat, patches, b, apply_relu)     # (Cout, N*OH*OW)
    return out.reshape(co, n, oh, ow)


def linear_lastdim(x, w, b):
    """PyTorch Linear over the last dim. x: (..., K), w: (Nout, K), b: (Nout,)."""
    lead = x.shape[:-1]
    k = x.shape[-1]
    p = x.reshape(-1, k).T                              # (K, M), M lane-dense
    out = matmul_bias(w, p, b, apply_relu=False)        # (Nout, M)
    return out.T.reshape(*lead, w.shape[0])


# ---------------------------- parameters & model ---------------------------- #

def _init_conv(key, co, ci, kh, kw):
    k1, k2 = jax.random.split(key)
    bound = 1.0 / float(ci * kh * kw) ** 0.5
    w = jax.random.uniform(k1, (co, ci, kh, kw), jnp.float32, -bound, bound)
    b = jax.random.uniform(k2, (co,), jnp.float32, -bound, bound)
    return w, b


def _init_linear(key, n_out, n_in):
    k1, k2 = jax.random.split(key)
    bound = 1.0 / float(n_in) ** 0.5
    w = jax.random.uniform(k1, (n_out, n_in), jnp.float32, -bound, bound)
    b = jax.random.uniform(k2, (n_out,), jnp.float32, -bound, bound)
    return w, b


def init_params(key):
    keys = jax.random.split(key, 4)
    return {
        "enc1": _init_conv(keys[0], 16, 1, 129, 7),
        "enc2": _init_conv(keys[1], 32, 16, 3, 3),
        "enc3": _init_conv(keys[2], 64, 32, 3, 3),
        "fc": _init_linear(keys[3], 1, 64 * 92),
    }


def encode(params, x_nchw):
    """autoencoder.encoder: x NCHW -> encoded NCHW (N, 64, H', W')."""
    h = x_nchw.transpose(1, 0, 2, 3)                          # -> channel-major
    h = conv2d_cm(h, *params["enc1"], (7, 7), (0, 0), True)
    h = conv2d_cm(h, *params["enc2"], (2, 2), (1, 1), True)
    h = conv2d_cm(h, *params["enc3"], (2, 2), (1, 1), True)
    return h.transpose(1, 0, 2, 3)                            # -> NCHW


def seismic_event_predictor(params, x):
    # Literal reference forward: encoder output is computed then discarded,
    # and fc is applied to x itself (over its last dim).
    encoded = encode(params, x)
    _encoded_flat = encoded.reshape(encoded.shape[0], -1)     # unused, as in reference
    output = linear_lastdim(x, *params["fc"])
    return output
    # TODO(synk): if the upstream model is later fixed to `fc(encoded_flat)`,
    # swap the linear_lastdim input accordingly.


# ------------------------- independent XLA reference ------------------------ #

def _ref_conv(x, w, b, stride, padding):
    out = jax.lax.conv_general_dilated(
        x, w, window_strides=stride,
        padding=[(padding[0], padding[0]), (padding[1], padding[1])],
        dimension_numbers=("NCHW", "OIHW", "NCHW"))
    return out + b[None, :, None, None]


def reference_encode(params, x):
    h = jax.nn.relu(_ref_conv(x, *params["enc1"], (7, 7), (0, 0)))
    h = jax.nn.relu(_ref_conv(h, *params["enc2"], (2, 2), (1, 1)))
    h = jax.nn.relu(_ref_conv(h, *params["enc3"], (2, 2), (1, 1)))
    return h


def reference_forward(params, x):
    _ = reference_encode(params, x)             # computed and unused, as in spec
    w, b = params["fc"]
    return jnp.matmul(x, w.T) + b


if __name__ == "__main__":
    key = jax.random.PRNGKey(0)
    pkey, xkey = jax.random.split(key)
    params = init_params(pkey)

    # Spectrogram-like input: (batch=2, channels=1, H=129 freq bins, W frames).
    # The last dim must equal fc.in_features = 64*92 = 5888 for the reference
    # forward (which applies fc directly to x) to be runnable.
    x = jax.random.normal(xkey, (2, 1, 129, 64 * 92), jnp.float32)

    out = jax.block_until_ready(seismic_event_predictor(params, x))
    assert out.shape == (2, 1, 129, 1), out.shape

    # Validate the Pallas encoder path and the fc head against plain XLA.
    enc = jax.block_until_ready(encode(params, x))
    enc_ref = reference_encode(params, x)
    np.testing.assert_allclose(np.asarray(enc), np.asarray(enc_ref),
                               rtol=2e-3, atol=2e-3)

    out_ref = reference_forward(params, x)
    np.testing.assert_allclose(np.asarray(out), np.asarray(out_ref),
                               rtol=2e-3, atol=2e-3)

    print("KERNEL_OK")
</pallas_src>

<mosaic_0001>
module attributes {stable_mosaic.version = 11 : i64} {
  func.func @_wx_bias_kernel(%arg0: i32, %arg1: memref<16x903xf32, #tpu.memory_space<vmem>>, %arg2: memref<903x1682xf32, #tpu.memory_space<vmem>>, %arg3: memref<16x1xf32, #tpu.memory_space<vmem>>, %arg4: memref<16x1682xf32, #tpu.memory_space<vmem>>) attributes {dimension_semantics = [#tpu.dimension_semantics<parallel>], iteration_bounds = array<i64: 1>, scalar_prefetch = 0 : i64, scratch_operands = 0 : i64, tpu.core_type = #tpu.core_type<tc>, window_params = [{pipeline_mode = #tpu.pipeline_mode<synchronous>, transform_indices = @transform_0, window_bounds = array<i64: 16, 903>}, {transform_indices = @transform_1, window_bounds = array<i64: 903, 1682>}, {pipeline_mode = #tpu.pipeline_mode<synchronous>, transform_indices = @transform_2, window_bounds = array<i64: 16, 1>}, {transform_indices = @transform_3, window_bounds = array<i64: 16, 1682>}]} {
    %c0 = arith.constant 0 : index
    %c0_0 = arith.constant 0 : index
    %0 = vector.load %arg1[%c0, %c0_0] : memref<16x903xf32, #tpu.memory_space<vmem>>, vector<16x903xf32>
    %c0_1 = arith.constant 0 : index
    %c0_2 = arith.constant 0 : index
    %1 = vector.load %arg2[%c0_1, %c0_2] : memref<903x1682xf32, #tpu.memory_space<vmem>>, vector<903x1682xf32>
    %cst = arith.constant dense<0.000000e+00> : vector<16x1682xf32>
    %2 = tpu.matmul %0, %1, %cst {dimension_numbers = #tpu.dot_dimension_numbers<[1], [0], [0], [1], [0, 0, 1, 1], [], []>} : vector<16x903xf32>, vector<903x1682xf32>, vector<16x1682xf32> -> vector<16x1682xf32>
    %c0_3 = arith.constant 0 : index
    %c0_4 = arith.constant 0 : index
    %3 = vector.load %arg3[%c0_3, %c0_4] : memref<16x1xf32, #tpu.memory_space<vmem>>, vector<16x1xf32>
    %4 = vector.broadcast %3 : vector<16x1xf32> to vector<16x1682xf32>
    %5 = arith.addf %2, %4 : vector<16x1682xf32>
    %cst_5 = arith.constant 0.000000e+00 : f32
    %6 = vector.broadcast %cst_5 : f32 to vector<16x1682xf32>
    %7 = arith.maximumf %5, %6 : vector<16x1682xf32>
    %c0_6 = arith.constant 0 : index
    %c0_7 = arith.constant 0 : index
    %8 = vector.load %arg4[%c0_6, %c0_7] : memref<16x1682xf32, #tpu.memory_space<vmem>>, vector<16x1682xf32>
    tpu.vector_store %arg4[%c0_6, %c0_7], %7 {strides = array<i32>} : memref<16x1682xf32, #tpu.memory_space<vmem>>, vector<16x1682xf32>,
    return
  }
  func.func @transform_0(%arg0: i32) -> (i32, i32) {
    %c0_i32 = arith.constant 0 : i32
    %c0_i32_0 = arith.constant 0 : i32
    %c0_i32_1 = arith.constant 0 : i32
    return %c0_i32, %c0_i32_0 : i32, i32
  }
  func.func @transform_1(%arg0: i32) -> (i32, i32) {
    %c0_i32 = arith.constant 0 : i32
    %c0_i32_0 = arith.constant 0 : i32
    return %c0_i32, %arg0 : i32, i32
  }
  func.func @transform_2(%arg0: i32) -> (i32, i32) {
    %c0_i32 = arith.constant 0 : i32
    %c0_i32_0 = arith.constant 0 : i32
    %c0_i32_1 = arith.constant 0 : i32
    return %c0_i32, %c0_i32_0 : i32, i32
  }
  func.func @transform_3(%arg0: i32) -> (i32, i32) {
    %c0_i32 = arith.constant 0 : i32
    %c0_i32_0 = arith.constant 0 : i32
    return %c0_i32, %arg0 : i32, i32
  }
}

</mosaic_0001>

<llo_original>
// kernel: tpu_custom_call.1
$region0: #{tpu_custom_call.1}
  #allocation0 [shape = 'u32[]', space=smem, size = 0x4, offset = 0x4, fixed_abs, tag = 'smem constant byte address 0x4 - core index']
  #allocation1 [shape = 'u32[144,128]{1,0:T(1,128)}', space=vmem, size = 0x12000, scoped, tag = 'internal scratch']
  %s0 = inlined_call_operand.hbm [shape: f32[16,903], index: 0, kind: input, shape index: {}]
  %s1 = inlined_call_operand.hbm [shape: f32[903,1682], index: 1, kind: input, shape index: {}]
  %s2 = inlined_call_operand.vmem [shape: f32[16,1], index: 2, kind: input, shape index: {}]
  %s3 = inlined_call_operand.hbm [shape: f32[16,1682], index: 3, kind: output, shape index: {}]
  %s4 = sld [smem:[#allocation0]]
  $region30: #{tpu_custom_call.1} parent=0
    _
  %s6 = ssub.s32 1, %s4
  %s7 = scalar_select 0, %s6, %s4
  $region1: #{tpu_custom_call.1} parent=0
    #allocation2 [shape = 'u8[65536]{0}', space=vmem, size = 0x10000, scoped, tag = 'input window, operand 0, single buffered']
    #allocation3 [shape = 's32[1]{0}', space=sflag, size = 0x4, scoped, tag = 'scoped memory for tpu_custom_call.1']
    #allocation4 [shape = 's32[1]{0}', space=sflag, size = 0x4, scoped, tag = 'scoped memory for tpu_custom_call.1']
    #allocation5 [shape = 'u8[6479872]{0}', space=vmem, size = 0x62e000, scoped, tag = 'input window, operand 1, single buffered']
    #allocation6 [shape = 's32[1]{0}', space=sflag, size = 0x4, scoped, tag = 'scoped memory for tpu_custom_call.1']
    #allocation7 [shape = 'u8[114688]{0}', space=vmem, size = 0x1c000, scoped, tag = 'output window, operand 0, single buffered']
    %8 = vsyncpa [#allocation3], 0
    %9 = vsyncpa [#allocation6], 0
    %10 = vsyncpa [#allocation4], 0
    // Predicated region
    $region2: #{tpu_custom_call.1} parent=1 // pred_check
      _
    $region3: #{tpu_custom_call.1} parent=1 // pred_check_branch
      %12 = sbr.rel (0) target = $region5
    $region4: #{tpu_custom_call.1} parent=1 // pred_region
      %s14 = ssub.s32 2048, 2048
      %15 = vsyncadd [#allocation3], %s14
      %s16 = sshll.u32 [#allocation2], 4
      %s17 = int_to_ptr.vmem [resolvable:$true] %s16
      %22 = dma.hbm_to_vmem [thread:$0]  %s0, 2048, %s17, [#allocation3], 1024, 1024, 64
    $region5: #{tpu_custom_call.1} parent=1 // pred_fallthru
      _
    // Predicated region
    $region6: #{tpu_custom_call.1} parent=1 // pred_check
      _
    $region7: #{tpu_custom_call.1} parent=1 // pred_check_branch
      %24 = sbr.rel (0) target = $region9
    $region8: #{tpu_custom_call.1} parent=1 // pred_region
      %s26 = ssub.s32 202496, 202496
      %27 = vsyncadd [#allocation6], %s26
      %s28 = sshll.u32 [#allocation5], 4
      %s29 = int_to_ptr.vmem [resolvable:$true] %s28
      %34 = dma.hbm_to_vmem [thread:$0]  %s1, 202496, %s29, [#allocation6], 1792, 1792, 112
    $region9: #{tpu_custom_call.1} parent=1 // pred_fallthru
      _
    // Predicated region
    $region10: #{tpu_custom_call.1} parent=1 // pred_check
      _
    $region11: #{tpu_custom_call.1} parent=1 // pred_check_branch
      %36 = sbr.rel (0) target = $region13
    $region12: #{tpu_custom_call.1} parent=1 // pred_region
      _
    $region13: #{tpu_custom_call.1} parent=1 // pred_fallthru
      _
    // Predicated region
    $region14: #{tpu_custom_call.1} parent=1 // pred_check
      _
    $region15: #{tpu_custom_call.1} parent=1 // pred_check_branch
      %38 = sbr.rel (0) target = $region17
    $region16: #{tpu_custom_call.1} parent=1 // pred_region
      %39 = dma.done [#allocation3], 2048
    $region17: #{tpu_custom_call.1} parent=1 // pred_fallthru
      _
    // Predicated region
    $region18: #{tpu_custom_call.1} parent=1 // pred_check
      _
    $region19: #{tpu_custom_call.1} parent=1 // pred_check_branch
      %41 = sbr.rel (0) target = $region21
    $region20: #{tpu_custom_call.1} parent=1 // pred_region
      %42 = dma.done [#allocation6], 202496
    $region21: #{tpu_custom_call.1} parent=1 // pred_fallthru
      _
    %v43 = vld [vmem:[#allocation2] sm:$0xff]
    %v44 = vld [vmem:[#allocation2 + $0x8] sm:$0xff]
    %v45 = vld [vmem:[#allocation2 + $0x10] sm:$0xff]
    %v46 = vld [vmem:[#allocation2 + $0x18] sm:$0xff]
    %v47 = vld [vmem:[#allocation2 + $0x20] sm:$0xff]
    %v48 = vld [vmem:[#allocation2 + $0x28] sm:$0xff]
    %v49 = vld [vmem:[#allocation2 + $0x30] sm:$0xff]
    %v50 = vld [vmem:[#allocation2 + $0x38] sm:$0xff]
    %v51 = vld [vmem:[#allocation2 + $0x40] sm:$0xff]
    %v52 = vld [vmem:[#allocation2 + $0x48] sm:$0xff]
    %v53 = vld [vmem:[#allocation2 + $0x50] sm:$0xff]
    %v54 = vld [vmem:[#allocation2 + $0x58] sm:$0xff]
    %v55 = vld [vmem:[#allocation2 + $0x60] sm:$0xff]
    %v56 = vld [vmem:[#allocation2 + $0x68] sm:$0xff]
    %v57 = vld [vmem:[#allocation2 + $0x70] sm:$0xff]
    %v58 = vld [vmem:[#allocation2 + $0x78] sm:$0xff]
    %v59 = vld [vmem:[#allocation5] sm:$0xff]
    %v60 = vld [vmem:[#allocation5 + $0x8] sm:$0xff]
    %v61 = vld [vmem:[#allocation5 + $0x10] sm:$0xff]
    %v62 = vld [vmem:[#allocation5 + $0x18] sm:$0xff]
    %v63 = vld [vmem:[#allocation5 + $0x20] sm:$0xff]
    %v64 = vld [vmem:[#allocation5 + $0x28] sm:$0xff]
    %v65 = vld [vmem:[#allocation5 + $0x30] sm:$0xff]
    %v66 = vld [vmem:[#allocation5 + $0x38] sm:$0xff]
    %v67 = vld [vmem:[#allocation5 + $0x40] sm:$0xff]
    %v68 = vld [vmem:[#allocation5 + $0x48] sm:$0xff]
    %v69 = vld [vmem:[#allocation5 + $0x50] sm:$0xff]
    %v70 = vld [vmem:[#allocation5 + $0x58] sm:$0xff]
    %v71 = vld [vmem:[#allocation5 + $0x60] sm:$0xff]
    %v72 = vld [vmem:[#allocation5 + $0x68] sm:$0xff]
    %v73 = vld [vmem:[#allocation5 + $0x70] sm:$0xff]
    %v74 = vld [vmem:[#allocation5 + $0x78] sm:$0xff]
    %v75 = vld [vmem:[#allocation5 + $0x80] sm:$0xff]
    %v76 = vld [vmem:[#allocation5 + $0x88] sm:$0xff]
    %v77 = vld [vmem:[#allocation5 + $0x90] sm:$0xff]
    %v78 = vld [vmem:[#allocation5 + $0x98] sm:$0xff]
    %v79 = vld [vmem:[#allocation5 + $0xa0] sm:$0xff]
    %v80 = vld [vmem:[#allocation5 + $0xa8] sm:$0xff]
    %v81 = vld [vmem:[#allocation5 + $0xb0] sm:$0xff]
    %v82 = vld [vmem:[#allocation5 + $0xb8] sm:$0xff]
    %v83 = vld [vmem:[#allocation5 + $0xc0] sm:$0xff]
    %v84 = vld [vmem:[#allocation5 + $0xc8] sm:$0xff]
    %v85 = vld [vmem:[#allocation5 + $0xd0] sm:$0xff]
    %v86 = vld [vmem:[#allocation5 + $0xd8] sm:$0xff]
    %v87 = vld [vmem:[#allocation5 + $0xe0] sm:$0xff]
    %v88 = vld [vmem:[#allocation5 + $0xe8] sm:$0xff]
    %v89 = vld [vmem:[#allocation5 + $0xf0] sm:$0xff]
    %v90 = vld [vmem:[#allocation5 + $0xf8] sm:$0xff]
    %v91 = vld [vmem:[#allocation5 + $0x100] sm:$0xff]
    %v92 = vld [vmem:[#allocation5 + $0x108] sm:$0xff]
    %v93 = vld [vmem:[#allocation5 + $0x110] sm:$0xff]
    %v94 = vld [vmem:[#allocation5 + $0x118] sm:$0xff]
    %v95 = vld [vmem:[#allocation5 + $0x120] sm:$0xff]
    %v96 = vld [vmem:[#allocation5 + $0x128] sm:$0xff]
    %v97 = vld [vmem:[#allocation5 + $0x130] sm:$0xff]
    %v98 = vld [vmem:[#allocation5 + $0x138] sm:$0xff]
    %v99 = vld [vmem:[#allocation5 + $0x140] sm:$0xff]
    %v100 = vld [vmem:[#allocation5 + $0x148] sm:$0xff]
    %v101 = vld [vmem:[#allocation5 + $0x150] sm:$0xff]
    %v102 = vld [vmem:[#allocation5 + $0x158] sm:$0xff]
    %v103 = vld [vmem:[#allocation5 + $0x160] sm:$0xff]
    %v104 = vld [vmem:[#allocation5 + $0x168] sm:$0xff]
    %v105 = vld [vmem:[#allocation5 + $0x170] sm:$0xff]
    %v106 = vld [vmem:[#allocation5 + $0x178] sm:$0xff]
    %v107 = vld [vmem:[#allocation5 + $0x180] sm:$0xff]
    %v108 = vld [vmem:[#allocation5 + $0x188] sm:$0xff]
    %v109 = vld [vmem:[#allocation5 + $0x190] sm:$0xff]
    %v110 = vld [vmem:[#allocation5 + $0x198] sm:$0xff]
    %v111 = vld [vmem:[#allocation5 + $0x1a0] sm:$0xff]
    %v112 = vld [vmem:[#allocation5 + $0x1a8] sm:$0xff]
    %v113 = vld [vmem:[#allocation5 + $0x1b0] sm:$0xff]
    %v114 = vld [vmem:[#allocation5 + $0x1b8] sm:$0xff]
    %v115 = vld [vmem:[#allocation5 + $0x1c0] sm:$0xff]
    %v116 = vld [vmem:[#allocation5 + $0x1c8] sm:$0xff]
    %v117 = vld [vmem:[#allocation5 + $0x1d0] sm:$0xff]
    %v118 = vld [vmem:[#allocation5 + $0x1d8] sm:$0xff]
    %v119 = vld [vmem:[#allocation5 + $0x1e0] sm:$0xff]
    %v120 = vld [vmem:[#allocation5 + $0x1e8] sm:$0xff]
    %v121 = vld [vmem:[#allocation5 + $0x1f0] sm:$0xff]
    %v122 = vld [vmem:[#allocation5 + $0x1f8] sm:$0xff]
    %v123 = vld [vmem:[#allocation5 + $0x200] sm:$0xff]
    %v124 = vld [vmem:[#allocation5 + $0x208] sm:$0xff]
    %v125 = vld [vmem:[#allocation5 + $0x210] sm:$0xff]
    %v126 = vld [vmem:[#allocation5 + $0x218] sm:$0xff]
    %v127 = vld [vmem:[#allocation5 + $0x220] sm:$0xff]
    %v128 = vld [vmem:[#allocation5 + $0x228] sm:$0xff]
    %v129 = vld [vmem:[#allocation5 + $0x230] sm:$0xff]
    %v130 = vld [vmem:[#allocation5 + $0x238] sm:$0xff]
    %v131 = vld [vmem:[#allocation5 + $0x240] sm:$0xff]
    %v132 = vld [vmem:[#allocation5 + $0x248] sm:$0xff]
    %v133 = vld [vmem:[#allocation5 + $0x250] sm:$0xff]
    %v134 = vld [vmem:[#allocation5 + $0x258] sm:$0xff]
    %v135 = vld [vmem:[#allocation5 + $0x260] sm:$0xff]
    %v136 = vld [vmem:[#allocation5 + $0x268] sm:$0xff]
    %v137 = vld [vmem:[#allocation5 + $0x270] sm:$0xff]
    %v138 = vld [vmem:[#allocation5 + $0x278] sm:$0xff]
    %v139 = vld [vmem:[#allocation5 + $0x280] sm:$0xff]
    %v140 = vld [vmem:[#allocation5 + $0x288] sm:$0xff]
    %v141 = vld [vmem:[#allocation5 + $0x290] sm:$0xff]
    %v142 = vld [vmem:[#allocation5 + $0x298] sm:$0xff]
    %v143 = vld [vmem:[#allocation5 + $0x2a0] sm:$0xff]
    %v144 = vld [vmem:[#allocation5 + $0x2a8] sm:$0xff]
    %v145 = vld [vmem:[#allocation5 + $0x2b0] sm:$0xff]
    %v146 = vld [vmem:[#allocation5 + $0x2b8] sm:$0xff]
    %v147 = vld [vmem:[#allocation5 + $0x2c0] sm:$0xff]
    %v148 = vld [vmem:[#allocation5 + $0x2c8] sm:$0xff]
    %v149 = vld [vmem:[#allocation5 + $0x2d0] sm:$0xff]
    %v150 = vld [vmem:[#allocation5 + $0x2d8] sm:$0xff]
    %v151 = vld [vmem:[#allocation5 + $0x2e0] sm:$0xff]
    %v152 = vld [vmem:[#allocation5 + $0x2e8] sm:$0xff]
    %v153 = vld [vmem:[#allocation5 + $0x2f0] sm:$0xff]
    %v154 = vld [vmem:[#allocation5 + $0x2f8] sm:$0xff]
    %v155 = vld [vmem:[#allocation5 + $0x300] sm:$0xff]
    %v156 = vld [vmem:[#allocation5 + $0x308] sm:$0xff]
    %v157 = vld [vmem:[#allocation5 + $0x310] sm:$0xff]
    %v158 = vld [vmem:[#allocation5 + $0x318] sm:$0xff]
    %v159 = vld [vmem:[#allocation5 + $0x320] sm:$0xff]
    %v160 = vld [vmem:[#allocation5 + $0x328] sm:$0xff]
    %v161 = vld [vmem:[#allocation5 + $0x330] sm:$0xff]
    %v162 = vld [vmem:[#allocation5 + $0x338] sm:$0xff]
    %v163 = vld [vmem:[#allocation5 + $0x340] sm:$0xff]
    %v164 = vld [vmem:[#allocation5 + $0x348] sm:$0xff]
    %v165 = vld [vmem:[#allocation5 + $0x350] sm:$0xff]
    %v166 = vld [vmem:[#allocation5 + $0x358] sm:$0xff]
    %v167 = vld [vmem:[#allocation5 + $0x360] sm:$0xff]
    %v168 = vld [vmem:[#allocation5 + $0x368] sm:$0xff]
    %v169 = vld [vmem:[#allocation5 + $0x370] sm:$0xff]
    %v170 = vld [vmem:[#allocation5 + $0x378] sm:$0xff]
    %v171 = vld [vmem:[#allocation5 + $0x380] sm:$0xff]
    %v172 = vld [vmem:[#allocation5 + $0x388] sm:$0xff]
    %v173 = vld [vmem:[#allocation5 + $0x390] sm:$0xff]
    %v174 = vld [vmem:[#allocation5 + $0x398] sm:$0xff]
    %v175 = vld [vmem:[#allocation5 + $0x3a0] sm:$0xff]
    %v176 = vld [vmem:[#allocation5 + $0x3a8] sm:$0xff]
    %v177 = vld [vmem:[#allocation5 + $0x3b0] sm:$0xff]
    %v178 = vld [vmem:[#allocation5 + $0x3b8] sm:$0xff]
    %v179 = vld [vmem:[#allocation5 + $0x3c0] sm:$0xff]
    %v180 = vld [vmem:[#allocation5 + $0x3c8] sm:$0xff]
    %v181 = vld [vmem:[#allocation5 + $0x3d0] sm:$0xff]
    %v182 = vld [vmem:[#allocation5 + $0x3d8] sm:$0xff]
    %v183 = vld [vmem:[#allocation5 + $0x3e0] sm:$0xff]
    %v184 = vld [vmem:[#allocation5 + $0x3e8] sm:$0xff]
    %v185 = vld [vmem:[#allocation5 + $0x3f0] sm:$0xff]
    %v186 = vld [vmem:[#allocation5 + $0x3f8] sm:$0xff]
    %v187 = vld [vmem:[#allocation5 + $0x400] sm:$0xff]
    %v188 = vld [vmem:[#allocation5 + $0x408] sm:$0xff]
    %v189 = vld [vmem:[#allocation5 + $0x410] sm:$0xff]
    %v190 = vld [vmem:[#allocation5 + $0x418] sm:$0xff]
    %v191 = vld [vmem:[#allocation5 + $0x420] sm:$0xff]
    %v192 = vld [vmem:[#allocation5 + $0x428] sm:$0xff]
    %v193 = vld [vmem:[#allocation5 + $0x430] sm:$0xff]
    %v194 = vld [vmem:[#allocation5 + $0x438] sm:$0xff]
    %v195 = vld [vmem:[#allocation5 + $0x440] sm:$0xff]
    %v196 = vld [vmem:[#allocation5 + $0x448] sm:$0xff]
    %v197 = vld [vmem:[#allocation5 + $0x450] sm:$0xff]
    %v198 = vld [vmem:[#allocation5 + $0x458] sm:$0xff]
    %v199 = vld [vmem:[#allocation5 + $0x460] sm:$0xff]
    %v200 = vld [vmem:[#allocation5 + $0x468] sm:$0xff]
    %v201 = vld [vmem:[#allocation5 + $0x470] sm:$0xff]
    %v202 = vld [vmem:[#allocation5 + $0x478] sm:$0xff]
    %v203 = vld [vmem:[#allocation5 + $0x480] sm:$0xff]
    %v204 = vld [vmem:[#allocation5 + $0x488] sm:$0xff]
    %v205 = vld [vmem:[#allocation5 + $0x490] sm:$0xff]
    %v206 = vld [vmem:[#allocation5 + $0x498] sm:$0xff]
    %v207 = vld [vmem:[#allocation5 + $0x4a0] sm:$0xff]
    %v208 = vld [vmem:[#allocation5 + $0x4a8] sm:$0xff]
    %v209 = vld [vmem:[#allocation5 + $0x4b0] sm:$0xff]
    %v210 = vld [vmem:[#allocation5 + $0x4b8] sm:$0xff]
    %v211 = vld [vmem:[#allocation5 + $0x4c0] sm:$0xff]
    %v212 = vld [vmem:[#allocation5 + $0x4c8] sm:$0xff]
    %v213 = vld [vmem:[#allocation5 + $0x4d0] sm:$0xff]
    %v214 = vld [vmem:[#allocation5 + $0x4d8] sm:$0xff]
    %v215 = vld [vmem:[#allocation5 + $0x4e0] sm:$0xff]
    %v216 = vld [vmem:[#allocation5 + $0x4e8] sm:$0xff]
    %v217 = vld [vmem:[#allocation5 + $0x4f0] sm:$0xff]
    %v218 = vld [vmem:[#allocation5 + $0x4f8] sm:$0xff]
    %v219 = vld [vmem:[#allocation5 + $0x500] sm:$0xff]
    %v220 = vld [vmem:[#allocation5 + $0x508] sm:$0xff]
    %v221 = vld [vmem:[#allocation5 + $0x510] sm:$0xff]
    %v222 = vld [vmem:[#allocation5 + $0x518] sm:$0xff]
    %v223 = vld [vmem:[#allocation5 + $0x520] sm:$0xff]
    %v224 = vld [vmem:[#allocation5 + $0x528] sm:$0xff]
    %v225 = vld [vmem:[#allocation5 + $0x530] sm:$0xff]
    %v226 = vld [vmem:[#allocation5 + $0x538] sm:$0xff]
    %v227 = vld [vmem:[#allocation5 + $0x540] sm:$0xff]
    %v228 = vld [vmem:[#allocation5 + $0x548] sm:$0xff]
    %v229 = vld [vmem:[#allocation5 + $0x550] sm:$0xff]
    %v230 = vld [vmem:[#allocation5 + $0x558] sm:$0xff]
    %v231 = vld [vmem:[#allocation5 + $0x560] sm:$0xff]
    %v232 = vld [vmem:[#allocation5 + $0x568] sm:$0xff]
    %v233 = vld [vmem:[#allocation5 + $0x570] sm:$0xff]
    %v234 = vld [vmem:[#allocation5 + $0x578] sm:$0xff]
    %v235 = vld [vmem:[#allocation5 + $0x580] sm:$0xff]
    %v236 = vld [vmem:[#allocation5 + $0x588] sm:$0xff]
    %v237 = vld [vmem:[#allocation5 + $0x590] sm:$0xff]
    %v238 = vld [vmem:[#allocation5 + $0x598] sm:$0xff]
    %v239 = vld [vmem:[#allocation5 + $0x5a0] sm:$0xff]
    %v240 = vld [vmem:[#allocation5 + $0x5a8] sm:$0xff]
    %v241 = vld [vmem:[#allocation5 + $0x5b0] sm:$0xff]
    %v242 = vld [vmem:[#allocation5 + $0x5b8] sm:$0xff]
    %v243 = vld [vmem:[#allocation5 + $0x5c0] sm:$0xff]
    %v244 = vld [vmem:[#allocation5 + $0x5c8] sm:$0xff]
    %v245 = vld [vmem:[#allocation5 + $0x5d0] sm:$0xff]
    %v246 = vld [vmem:[#allocation5 + $0x5d8] sm:$0xff]
    %v247 = vld [vmem:[#allocation5 + $0x5e0] sm:$0xff]
    %v248 = vld [vmem:[#allocation5 + $0x5e8] sm:$0xff]
    %v249 = vld [vmem:[#allocation5 + $0x5f0] sm:$0xff]
    %v250 = vld [vmem:[#allocation5 + $0x5f8] sm:$0xff]
    %v251 = vld [vmem:[#allocation5 + $0x600] sm:$0xff]
    %v252 = vld [vmem:[#allocation5 + $0x608] sm:$0xff]
    %v253 = vld [vmem:[#allocation5 + $0x610] sm:$0xff]
    %v254 = vld [vmem:[#allocation5 + $0x618] sm:$0xff]
    %v255 = vld [vmem:[#allocation5 + $0x620] sm:$0xff]
    %v256 = vld [vmem:[#allocation5 + $0x628] sm:$0xff]
    %v257 = vld [vmem:[#allocation5 + $0x630] sm:$0xff]
    %v258 = vld [vmem:[#allocation5 + $0x638] sm:$0xff]
    %v259 = vld [vmem:[#allocation5 + $0x640] sm:$0xff]
    %v260 = vld [vmem:[#allocation5 + $0x648] sm:$0xff]
    %v261 = vld [vmem:[#allocation5 + $0x650] sm:$0xff]
    %v262 = vld [vmem:[#allocation5 + $0x658] sm:$0xff]
    %v263 = vld [vmem:[#allocation5 + $0x660] sm:$0xff]
    %v264 = vld [vmem:[#allocation5 + $0x668] sm:$0xff]
    %v265 = vld [vmem:[#allocation5 + $0x670] sm:$0xff]
    %v266 = vld [vmem:[#allocation5 + $0x678] sm:$0xff]
    %v267 = vld [vmem:[#allocation5 + $0x680] sm:$0xff]
    %v268 = vld [vmem:[#allocation5 + $0x688] sm:$0xff]
    %v269 = vld [vmem:[#allocation5 + $0x690] sm:$0xff]
    %v270 = vld [vmem:[#allocation5 + $0x698] sm:$0xff]
    %v271 = vld [vmem:[#allocation5 + $0x6a0] sm:$0xff]
    %v272 = vld [vmem:[#allocation5 + $0x6a8] sm:$0xff]
    %v273 = vld [vmem:[#allocation5 + $0x6b0] sm:$0xff]
    %v274 = vld [vmem:[#allocation5 + $0x6b8] sm:$0xff]
    %v275 = vld [vmem:[#allocation5 + $0x6c0] sm:$0xff]
    %v276 = vld [vmem:[#allocation5 + $0x6c8] sm:$0xff]
    %v277 = vld [vmem:[#allocation5 + $0x6d0] sm:$0xff]
    %v278 = vld [vmem:[#allocation5 + $0x6d8] sm:$0xff]
    %v279 = vld [vmem:[#allocation5 + $0x6e0] sm:$0xff]
    %v280 = vld [vmem:[#allocation5 + $0x6e8] sm:$0xff]
    %v281 = vld [vmem:[#allocation5 + $0x6f0] sm:$0xff]
    %v282 = vld [vmem:[#allocation5 + $0x6f8] sm:$0xff]
    %v283 = vld [vmem:[#allocation5 + $0x700] sm:$0xff]
    %v284 = vld [vmem:[#allocation5 + $0x708] sm:$0xff]
    %v285 = vld [vmem:[#allocation5 + $0x710] sm:$0xff]
    %v286 = vld [vmem:[#allocation5 + $0x718] sm:$0xff]
    %v287 = vld [vmem:[#allocation5 + $0x720] sm:$0xff]
    %v288 = vld [vmem:[#allocation5 + $0x728] sm:$0xff]
    %v289 = vld [vmem:[#allocation5 + $0x730] sm:$0xff]
    %v290 = vld [vmem:[#allocation5 + $0x738] sm:$0xff]
    %v291 = vld [vmem:[#allocation5 + $0x740] sm:$0xff]
    %v292 = vld [vmem:[#allocation5 + $0x748] sm:$0xff]
    %v293 = vld [vmem:[#allocation5 + $0x750] sm:$0xff]
    %v294 = vld [vmem:[#allocation5 + $0x758] sm:$0xff]
    %v295 = vld [vmem:[#allocation5 + $0x760] sm:$0xff]
    %v296 = vld [vmem:[#allocation5 + $0x768] sm:$0xff]
    %v297 = vld [vmem:[#allocation5 + $0x770] sm:$0xff]
    %v298 = vld [vmem:[#allocation5 + $0x778] sm:$0xff]
    %v299 = vld [vmem:[#allocation5 + $0x780] sm:$0xff]
    %v300 = vld [vmem:[#allocation5 + $0x788] sm:$0xff]
    %v301 = vld [vmem:[#allocation5 + $0x790] sm:$0xff]
    %v302 = vld [vmem:[#allocation5 + $0x798] sm:$0xff]
    %v303 = vld [vmem:[#allocation5 + $0x7a0] sm:$0xff]
    %v304 = vld [vmem:[#allocation5 + $0x7a8] sm:$0xff]
    %v305 = vld [vmem:[#allocation5 + $0x7b0] sm:$0xff]
    %v306 = vld [vmem:[#allocation5 + $0x7b8] sm:$0xff]
    %v307 = vld [vmem:[#allocation5 + $0x7c0] sm:$0xff]
    %v308 = vld [vmem:[#allocation5 + $0x7c8] sm:$0xff]
    %v309 = vld [vmem:[#allocation5 + $0x7d0] sm:$0xff]
    %v310 = vld [vmem:[#allocation5 + $0x7d8] sm:$0xff]
    %v311 = vld [vmem:[#allocation5 + $0x7e0] sm:$0xff]
    %v312 = vld [vmem:[#allocation5 + $0x7e8] sm:$0xff]
    %v313 = vld [vmem:[#allocation5 + $0x7f0] sm:$0xff]
    %v314 = vld [vmem:[#allocation5 + $0x7f8] sm:$0xff]
    %v315 = vld [vmem:[#allocation5 + $0x800] sm:$0xff]
    %v316 = vld [vmem:[#allocation5 + $0x808] sm:$0xff]
    %v317 = vld [vmem:[#allocation5 + $0x810] sm:$0xff]
    %v318 = vld [vmem:[#allocation5 + $0x818] sm:$0xff]
    %v319 = vld [vmem:[#allocation5 + $0x820] sm:$0xff]
    %v320 = vld [vmem:[#allocation5 + $0x828] sm:$0xff]
    %v321 = vld [vmem:[#allocation5 + $0x830] sm:$0xff]
    %v322 = vld [vmem:[#allocation5 + $0x838] sm:$0xff]
    %v323 = vld [vmem:[#allocation5 + $0x840] sm:$0xff]
    %v324 = vld [vmem:[#allocation5 + $0x848] sm:$0xff]
    %v325 = vld [vmem:[#allocation5 + $0x850] sm:$0xff]
    %v326 = vld [vmem:[#allocation5 + $0x858] sm:$0xff]
    %v327 = vld [vmem:[#allocation5 + $0x860] sm:$0xff]
    %v328 = vld [vmem:[#allocation5 + $0x868] sm:$0xff]
    %v329 = vld [vmem:[#allocation5 + $0x870] sm:$0xff]
    %v330 = vld [vmem:[#allocation5 + $0x878] sm:$0xff]
    %v331 = vld [vmem:[#allocation5 + $0x880] sm:$0xff]
    %v332 = vld [vmem:[#allocation5 + $0x888] sm:$0xff]
    %v333 = vld [vmem:[#allocation5 + $0x890] sm:$0xff]
    %v334 = vld [vmem:[#allocation5 + $0x898] sm:$0xff]
    %v335 = vld [vmem:[#allocation5 + $0x8a0] sm:$0xff]
    %v336 = vld [vmem:[#allocation5 + $0x8a8] sm:$0xff]
    %v337 = vld [vmem:[#allocation5 + $0x8b0] sm:$0xff]
    %v338 = vld [vmem:[#allocation5 + $0x8b8] sm:$0xff]
    %v339 = vld [vmem:[#allocation5 + $0x8c0] sm:$0xff]
    %v340 = vld [vmem:[#allocation5 + $0x8c8] sm:$0xff]
    %v341 = vld [vmem:[#allocation5 + $0x8d0] sm:$0xff]
    %v342 = vld [vmem:[#allocation5 + $0x8d8] sm:$0xff]
    %v343 = vld [vmem:[#allocation5 + $0x8e0] sm:$0xff]
    %v344 = vld [vmem:[#allocation5 + $0x8e8] sm:$0xff]
    %v345 = vld [vmem:[#allocation5 + $0x8f0] sm:$0xff]
    %v346 = vld [vmem:[#allocation5 + $0x8f8] sm:$0xff]
    %v347 = vld [vmem:[#allocation5 + $0x900] sm:$0xff]
    %v348 = vld [vmem:[#allocation5 + $0x908] sm:$0xff]
    %v349 = vld [vmem:[#allocation5 + $0x910] sm:$0xff]
    %v350 = vld [vmem:[#allocation5 + $0x918] sm:$0xff]
    %v351 = vld [vmem:[#allocation5 + $0x920] sm:$0xff]
    %v352 = vld [vmem:[#allocation5 + $0x928] sm:$0xff]
    %v353 = vld [vmem:[#allocation5 + $0x930] sm:$0xff]
    %v354 = vld [vmem:[#allocation5 + $0x938] sm:$0xff]
    %v355 = vld [vmem:[#allocation5 + $0x940] sm:$0xff]
    %v356 = vld [vmem:[#allocation5 + $0x948] sm:$0xff]
    %v357 = vld [vmem:[#allocation5 + $0x950] sm:$0xff]
    %v358 = vld [vmem:[#allocation5 + $0x958] sm:$0xff]
    %v359 = vld [vmem:[#allocation5 + $0x960] sm:$0xff]
    %v360 = vld [vmem:[#allocation5 + $0x968] sm:$0xff]
    %v361 = vld [vmem:[#allocation5 + $0x970] sm:$0xff]
    %v362 = vld [vmem:[#allocation5 + $0x978] sm:$0xff]
    %v363 = vld [vmem:[#allocation5 + $0x980] sm:$0xff]
    %v364 = vld [vmem:[#allocation5 + $0x988] sm:$0xff]
    %v365 = vld [vmem:[#allocation5 + $0x990] sm:$0xff]
    %v366 = vld [vmem:[#allocation5 + $0x998] sm:$0xff]
    %v367 = vld [vmem:[#allocation5 + $0x9a0] sm:$0xff]
    %v368 = vld [vmem:[#allocation5 + $0x9a8] sm:$0xff]
    %v369 = vld [vmem:[#allocation5 + $0x9b0] sm:$0xff]
    %v370 = vld [vmem:[#allocation5 + $0x9b8] sm:$0xff]
    %v371 = vld [vmem:[#allocation5 + $0x9c0] sm:$0xff]
    %v372 = vld [vmem:[#allocation5 + $0x9c8] sm:$0xff]
    %v373 = vld [vmem:[#allocation5 + $0x9d0] sm:$0xff]
    %v374 = vld [vmem:[#allocation5 + $0x9d8] sm:$0xff]
    %v375 = vld [vmem:[#allocation5 + $0x9e0] sm:$0xff]
    %v376 = vld [vmem:[#allocation5 + $0x9e8] sm:$0xff]
    %v377 = vld [vmem:[#allocation5 + $0x9f0] sm:$0xff]
    %v378 = vld [vmem:[#allocation5 + $0x9f8] sm:$0xff]
    %v379 = vld [vmem:[#allocation5 + $0xa00] sm:$0xff]
    %v380 = vld [vmem:[#allocation5 + $0xa08] sm:$0xff]
    %v381 = vld [vmem:[#allocation5 + $0xa10] sm:$0xff]
    %v382 = vld [vmem:[#allocation5 + $0xa18] sm:$0xff]
    %v383 = vld [vmem:[#allocation5 + $0xa20] sm:$0xff]
    %v384 = vld [vmem:[#allocation5 + $0xa28] sm:$0xff]
    %v385 = vld [vmem:[#allocation5 + $0xa30] sm:$0xff]
    %v386 = vld [vmem:[#allocation5 + $0xa38] sm:$0xff]
    %v387 = vld [vmem:[#allocation5 + $0xa40] sm:$0xff]
    %v388 = vld [vmem:[#allocation5 + $0xa48] sm:$0xff]
    %v389 = vld [vmem:[#allocation5 + $0xa50] sm:$0xff]
    %v390 = vld [vmem:[#allocation5 + $0xa58] sm:$0xff]
    %v391 = vld [vmem:[#allocation5 + $0xa60] sm:$0xff]
    %v392 = vld [vmem:[#allocation5 + $0xa68] sm:$0xff]
    %v393 = vld [vmem:[#allocation5 + $0xa70] sm:$0xff]
    %v394 = vld [vmem:[#allocation5 + $0xa78] sm:$0xff]
    %v395 = vld [vmem:[#allocation5 + $0xa80] sm:$0xff]
    %v396 = vld [vmem:[#allocation5 + $0xa88] sm:$0xff]
    %v397 = vld [vmem:[#allocation5 + $0xa90] sm:$0xff]
    %v398 = vld [vmem:[#allocation5 + $0xa98] sm:$0xff]
    %v399 = vld [vmem:[#allocation5 + $0xaa0] sm:$0xff]
    %v400 = vld [vmem:[#allocation5 + $0xaa8] sm:$0xff]
    %v401 = vld [vmem:[#allocation5 + $0xab0] sm:$0xff]
    %v402 = vld [vmem:[#allocation5 + $0xab8] sm:$0xff]
    %v403 = vld [vmem:[#allocation5 + $0xac0] sm:$0xff]
    %v404 = vld [vmem:[#allocation5 + $0xac8] sm:$0xff]
    %v405 = vld [vmem:[#allocation5 + $0xad0] sm:$0xff]
    %v406 = vld [vmem:[#allocation5 + $0xad8] sm:$0xff]
    %v407 = vld [vmem:[#allocation5 + $0xae0] sm:$0xff]
    %v408 = vld [vmem:[#allocation5 + $0xae8] sm:$0xff]
    %v409 = vld [vmem:[#allocation5 + $0xaf0] sm:$0xff]
    %v410 = vld [vmem:[#allocation5 + $0xaf8] sm:$0xff]
    %v411 = vld [vmem:[#allocation5 + $0xb00] sm:$0xff]
    %v412 = vld [vmem:[#allocation5 + $0xb08] sm:$0xff]
    %v413 = vld [vmem:[#allocation5 + $0xb10] sm:$0xff]
    %v414 = vld [vmem:[#allocation5 + $0xb18] sm:$0xff]
    %v415 = vld [vmem:[#allocation5 + $0xb20] sm:$0xff]
    %v416 = vld [vmem:[#allocation5 + $0xb28] sm:$0xff]
    %v417 = vld [vmem:[#allocation5 + $0xb30] sm:$0xff]
    %v418 = vld [vmem:[#allocation5 + $0xb38] sm:$0xff]
    %v419 = vld [vmem:[#allocation5 + $0xb40] sm:$0xff]
    %v420 = vld [vmem:[#allocation5 + $0xb48] sm:$0xff]
    %v421 = vld [vmem:[#allocation5 + $0xb50] sm:$0xff]
    %v422 = vld [vmem:[#allocation5 + $0xb58] sm:$0xff]
    %v423 = vld [vmem:[#allocation5 + $0xb60] sm:$0xff]
    %v424 = vld [vmem:[#allocation5 + $0xb68] sm:$0xff]
    %v425 = vld [vmem:[#allocation5 + $0xb70] sm:$0xff]
    %v426 = vld [vmem:[#allocation5 + $0xb78] sm:$0xff]
    %v427 = vld [vmem:[#allocation5 + $0xb80] sm:$0xff]
    %v428 = vld [vmem:[#allocation5 + $0xb88] sm:$0xff]
    %v429 = vld [vmem:[#allocation5 + $0xb90] sm:$0xff]
    %v430 = vld [vmem:[#allocation5 + $0xb98] sm:$0xff]
    %v431 = vld [vmem:[#allocation5 + $0xba0] sm:$0xff]
    %v432 = vld [vmem:[#allocation5 + $0xba8] sm:$0xff]
    %v433 = vld [vmem:[#allocation5 + $0xbb0] sm:$0xff]
    %v434 = vld [vmem:[#allocation5 + $0xbb8] sm:$0xff]
    %v435 = vld [vmem:[#allocation5 + $0xbc0] sm:$0xff]
    %v436 = vld [vmem:[#allocation5 + $0xbc8] sm:$0xff]
    %v437 = vld [vmem:[#allocation5 + $0xbd0] sm:$0xff]
    %v438 = vld [vmem:[#allocation5 + $0xbd8] sm:$0xff]
    %v439 = vld [vmem:[#allocation5 + $0xbe0] sm:$0xff]
    %v440 = vld [vmem:[#allocation5 + $0xbe8] sm:$0xff]
    %v441 = vld [vmem:[#allocation5 + $0xbf0] sm:$0xff]
    %v442 = vld [vmem:[#allocation5 + $0xbf8] sm:$0xff]
    %v443 = vld [vmem:[#allocation5 + $0xc00] sm:$0xff]
    %v444 = vld [vmem:[#allocation5 + $0xc08] sm:$0xff]
    %v445 = vld [vmem:[#allocation5 + $0xc10] sm:$0xff]
    %v446 = vld [vmem:[#allocation5 + $0xc18] sm:$0xff]
    %v447 = vld [vmem:[#allocation5 + $0xc20] sm:$0xff]
    %v448 = vld [vmem:[#allocation5 + $0xc28] sm:$0xff]
    %v449 = vld [vmem:[#allocation5 + $0xc30] sm:$0xff]
    %v450 = vld [vmem:[#allocation5 + $0xc38] sm:$0xff]
    %v451 = vld [vmem:[#allocation5 + $0xc40] sm:$0xff]
    %v452 = vld [vmem:[#allocation5 + $0xc48] sm:$0xff]
    %v453 = vld [vmem:[#allocation5 + $0xc50] sm:$0xff]
    %v454 = vld [vmem:[#allocation5 + $0xc58] sm:$0xff]
    %v455 = vld [vmem:[#allocation5 + $0xc60] sm:$0xff]
    %v456 = vld [vmem:[#allocation5 + $0xc68] sm:$0xff]
    %v457 = vld [vmem:[#allocation5 + $0xc70] sm:$0xff]
    %v458 = vld [vmem:[#allocation5 + $0xc78] sm:$0xff]
    %v459 = vld [vmem:[#allocation5 + $0xc80] sm:$0xff]
    %v460 = vld [vmem:[#allocation5 + $0xc88] sm:$0xff]
    %v461 = vld [vmem:[#allocation5 + $0xc90] sm:$0xff]
    %v462 = vld [vmem:[#allocation5 + $0xc98] sm:$0xff]
    %v463 = vld [vmem:[#allocation5 + $0xca0] sm:$0xff]
    %v464 = vld [vmem:[#allocation5 + $0xca8] sm:$0xff]
    %v465 = vld [vmem:[#allocation5 + $0xcb0] sm:$0xff]
    %v466 = vld [vmem:[#allocation5 + $0xcb8] sm:$0xff]
    %v467 = vld [vmem:[#allocation5 + $0xcc0] sm:$0xff]
    %v468 = vld [vmem:[#allocation5 + $0xcc8] sm:$0xff]
    %v469 = vld [vmem:[#allocation5 + $0xcd0] sm:$0xff]
    %v470 = vld [vmem:[#allocation5 + $0xcd8] sm:$0xff]
    %v471 = vld [vmem:[#allocation5 + $0xce0] sm:$0xff]
    %v472 = vld [vmem:[#allocation5 + $0xce8] sm:$0xff]
    %v473 = vld [vmem:[#allocation5 + $0xcf0] sm:$0xff]
    %v474 = vld [vmem:[#allocation5 + $0xcf8] sm:$0xff]
    %v475 = vld [vmem:[#allocation5 + $0xd00] sm:$0xff]
    %v476 = vld [vmem:[#allocation5 + $0xd08] sm:$0xff]
    %v477 = vld [vmem:[#allocation5 + $0xd10] sm:$0xff]
    %v478 = vld [vmem:[#allocation5 + $0xd18] sm:$0xff]
    %v479 = vld [vmem:[#allocation5 + $0xd20] sm:$0xff]
    %v480 = vld [vmem:[#allocation5 + $0xd28] sm:$0xff]
    %v481 = vld [vmem:[#allocation5 + $0xd30] sm:$0xff]
    %v482 = vld [vmem:[#allocation5 + $0xd38] sm:$0xff]
    %v483 = vld [vmem:[#allocation5 + $0xd40] sm:$0xff]
    %v484 = vld [vmem:[#allocation5 + $0xd48] sm:$0xff]
    %v485 = vld [vmem:[#allocation5 + $0xd50] sm:$0xff]
    %v486 = vld [vmem:[#allocation5 + $0xd58] sm:$0xff]
    %v487 = vld [vmem:[#allocation5 + $0xd60] sm:$0xff]
    %v488 = vld [vmem:[#allocation5 + $0xd68] sm:$0xff]
    %v489 = vld [vmem:[#allocation5 + $0xd70] sm:$0xff]
    %v490 = vld [vmem:[#allocation5 + $0xd78] sm:$0xff]
    %v491 = vld [vmem:[#allocation5 + $0xd80] sm:$0xff]
    %v492 = vld [vmem:[#allocation5 + $0xd88] sm:$0xff]
    %v493 = vld [vmem:[#allocation5 + $0xd90] sm:$0xff]
    %v494 = vld [vmem:[#allocation5 + $0xd98] sm:$0xff]
    %v495 = vld [vmem:[#allocation5 + $0xda0] sm:$0xff]
    %v496 = vld [vmem:[#allocation5 + $0xda8] sm:$0xff]
    %v497 = vld [vmem:[#allocation5 + $0xdb0] sm:$0xff]
    %v498 = vld [vmem:[#allocation5 + $0xdb8] sm:$0xff]
    %v499 = vld [vmem:[#allocation5 + $0xdc0] sm:$0xff]
    %v500 = vld [vmem:[#allocation5 + $0xdc8] sm:$0xff]
    %v501 = vld [vmem:[#allocation5 + $0xdd0] sm:$0xff]
    %v502 = vld [vmem:[#allocation5 + $0xdd8] sm:$0xff]
    %v503 = vld [vmem:[#allocation5 + $0xde0] sm:$0xff]
    %v504 = vld [vmem:[#allocation5 + $0xde8] sm:$0xff]
    %v505 = vld [vmem:[#allocation5 + $0xdf0] sm:$0xff]
    %v506 = vld [vmem:[#allocation5 + $0xdf8] sm:$0xff]
    %v507 = vld [vmem:[#allocation5 + $0xe00] sm:$0xff]
    %v508 = vld [vmem:[#allocation5 + $0xe08] sm:$0xff]
    %v509 = vld [vmem:[#allocation5 + $0xe10] sm:$0xff]
    %v510 = vld [vmem:[#allocation5 + $0xe18] sm:$0xff]
    %v511 = vld [vmem:[#allocation5 + $0xe20] sm:$0xff]
    %v512 = vld [vmem:[#allocation5 + $0xe28] sm:$0xff]
    %v513 = vld [vmem:[#allocation5 + $0xe30] sm:$0xff]
    %v514 = vld [vmem:[#allocation5 + $0xe38] sm:$0xff]
    %v515 = vld [vmem:[#allocation5 + $0xe40] sm:$0xff]
    %v516 = vld [vmem:[#allocation5 + $0xe48] sm:$0xff]
    %v517 = vld [vmem:[#allocation5 + $0xe50] sm:$0xff]
    %v518 = vld [vmem:[#allocation5 + $0xe58] sm:$0xff]
    %v519 = vld [vmem:[#allocation5 + $0xe60] sm:$0xff]
    %v520 = vld [vmem:[#allocation5 + $0xe68] sm:$0xff]
    %v521 = vld [vmem:[#allocation5 + $0xe70] sm:$0xff]
    %v522 = vld [vmem:[#allocation5 + $0xe78] sm:$0xff]
    %v523 = vld [vmem:[#allocation5 + $0xe80] sm:$0xff]
    %v524 = vld [vmem:[#allocation5 + $0xe88] sm:$0xff]
    %v525 = vld [vmem:[#allocation5 + $0xe90] sm:$0xff]
    %v526 = vld [vmem:[#allocation5 + $0xe98] sm:$0xff]
    %v527 = vld [vmem:[#allocation5 + $0xea0] sm:$0xff]
    %v528 = vld [vmem:[#allocation5 + $0xea8] sm:$0xff]
    %v529 = vld [vmem:[#allocation5 + $0xeb0] sm:$0xff]
    %v530 = vld [vmem:[#allocation5 + $0xeb8] sm:$0xff]
    %v531 = vld [vmem:[#allocation5 + $0xec0] sm:$0xff]
    %v532 = vld [vmem:[#allocation5 + $0xec8] sm:$0xff]
    %v533 = vld [vmem:[#allocation5 + $0xed0] sm:$0xff]
    %v534 = vld [vmem:[#allocation5 + $0xed8] sm:$0xff]
    %v535 = vld [vmem:[#allocation5 + $0xee0] sm:$0xff]
    %v536 = vld [vmem:[#allocation5 + $0xee8] sm:$0xff]
    %v537 = vld [vmem:[#allocation5 + $0xef0] sm:$0xff]
    %v538 = vld [vmem:[#allocation5 + $0xef8] sm:$0xff]
    %v539 = vld [vmem:[#allocation5 + $0xf00] sm:$0xff]
    %v540 = vld [vmem:[#allocation5 + $0xf08] sm:$0xff]
    %v541 = vld [vmem:[#allocation5 + $0xf10] sm:$0xff]
    %v542 = vld [vmem:[#allocation5 + $0xf18] sm:$0xff]
    %v543 = vld [vmem:[#allocation5 + $0xf20] sm:$0xff]
    %v544 = vld [vmem:[#allocation5 + $0xf28] sm:$0xff]
    %v545 = vld [vmem:[#allocation5 + $0xf30] sm:$0xff]
    %v546 = vld [vmem:[#allocation5 + $0xf38] sm:$0xff]
    %v547 = vld [vmem:[#allocation5 + $0xf40] sm:$0xff]
    %v548 = vld [vmem:[#allocation5 + $0xf48] sm:$0xff]
    %v549 = vld [vmem:[#allocation5 + $0xf50] sm:$0xff]
    %v550 = vld [vmem:[#allocation5 + $0xf58] sm:$0xff]
    %v551 = vld [vmem:[#allocation5 + $0xf60] sm:$0xff]
    %v552 = vld [vmem:[#allocation5 + $0xf68] sm:$0xff]
    %v553 = vld [vmem:[#allocation5 + $0xf70] sm:$0xff]
    %v554 = vld [vmem:[#allocation5 + $0xf78] sm:$0xff]
    %v555 = vld [vmem:[#allocation5 + $0xf80] sm:$0xff]
    %v556 = vld [vmem:[#allocation5 + $0xf88] sm:$0xff]
    %v557 = vld [vmem:[#allocation5 + $0xf90] sm:$0xff]
    %v558 = vld [vmem:[#allocation5 + $0xf98] sm:$0xff]
    %v559 = vld [vmem:[#allocation5 + $0xfa0] sm:$0xff]
    %v560 = vld [vmem:[#allocation5 + $0xfa8] sm:$0xff]
    %v561 = vld [vmem:[#allocation5 + $0xfb0] sm:$0xff]
    %v562 = vld [vmem:[#allocation5 + $0xfb8] sm:$0xff]
    %v563 = vld [vmem:[#allocation5 + $0xfc0] sm:$0xff]
    %v564 = vld [vmem:[#allocation5 + $0xfc8] sm:$0xff]
    %v565 = vld [vmem:[#allocation5 + $0xfd0] sm:$0xff]
    %v566 = vld [vmem:[#allocation5 + $0xfd8] sm:$0xff]
    %v567 = vld [vmem:[#allocation5 + $0xfe0] sm:$0xff]
    %v568 = vld [vmem:[#allocation5 + $0xfe8] sm:$0xff]
    %v569 = vld [vmem:[#allocation5 + $0xff0] sm:$0xff]
    %v570 = vld [vmem:[#allocation5 + $0xff8] sm:$0xff]
    %v571 = vld [vmem:[#allocation5 + $0x1000] sm:$0xff]
    %v572 = vld [vmem:[#allocation5 + $0x1008] sm:$0xff]
    %v573 = vld [vmem:[#allocation5 + $0x1010] sm:$0xff]
    %v574 = vld [vmem:[#allocation5 + $0x1018] sm:$0xff]
    %v575 = vld [vmem:[#allocation5 + $0x1020] sm:$0xff]
    %v576 = vld [vmem:[#allocation5 + $0x1028] sm:$0xff]
    %v577 = vld [vmem:[#allocation5 + $0x1030] sm:$0xff]
    %v578 = vld [vmem:[#allocation5 + $0x1038] sm:$0xff]
    %v579 = vld [vmem:[#allocation5 + $0x1040] sm:$0xff]
    %v580 = vld [vmem:[#allocation5 + $0x1048] sm:$0xff]
    %v581 = vld [vmem:[#allocation5 + $0x1050] sm:$0xff]
    %v582 = vld [vmem:[#allocation5 + $0x1058] sm:$0xff]
    %v583 = vld [vmem:[#allocation5 + $0x1060] sm:$0xff]
    %v584 = vld [vmem:[#allocation5 + $0x1068] sm:$0xff]
    %v585 = vld [vmem:[#allocation5 + $0x1070] sm:$0xff]
    %v586 = vld [vmem:[#allocation5 + $0x1078] sm:$0xff]
    %v587 = vld [vmem:[#allocation5 + $0x1080] sm:$0xff]
    %v588 = vld [vmem:[#allocation5 + $0x1088] sm:$0xff]
    %v589 = vld [vmem:[#allocation5 + $0x1090] sm:$0xff]
    %v590 = vld [vmem:[#allocation5 + $0x1098] sm:$0xff]
    %v591 = vld [vmem:[#allocation5 + $0x10a0] sm:$0xff]
    %v592 = vld [vmem:[#allocation5 + $0x10a8] sm:$0xff]
    %v593 = vld [vmem:[#allocation5 + $0x10b0] sm:$0xff]
    %v594 = vld [vmem:[#allocation5 + $0x10b8] sm:$0xff]
    %v595 = vld [vmem:[#allocation5 + $0x10c0] sm:$0xff]
    %v596 = vld [vmem:[#allocation5 + $0x10c8] sm:$0xff]
    %v597 = vld [vmem:[#allocation5 + $0x10d0] sm:$0xff]
    %v598 = vld [vmem:[#allocation5 + $0x10d8] sm:$0xff]
    %v599 = vld [vmem:[#allocation5 + $0x10e0] sm:$0xff]
    %v600 = vld [vmem:[#allocation5 + $0x10e8] sm:$0xff]
    %v601 = vld [vmem:[#allocation5 + $0x10f0] sm:$0xff]
    %v602 = vld [vmem:[#allocation5 + $0x10f8] sm:$0xff]
    %v603 = vld [vmem:[#allocation5 + $0x1100] sm:$0xff]
    %v604 = vld [vmem:[#allocation5 + $0x1108] sm:$0xff]
    %v605 = vld [vmem:[#allocation5 + $0x1110] sm:$0xff]
    %v606 = vld [vmem:[#allocation5 + $0x1118] sm:$0xff]
    %v607 = vld [vmem:[#allocation5 + $0x1120] sm:$0xff]
    %v608 = vld [vmem:[#allocation5 + $0x1128] sm:$0xff]
    %v609 = vld [vmem:[#allocation5 + $0x1130] sm:$0xff]
    %v610 = vld [vmem:[#allocation5 + $0x1138] sm:$0xff]
    %v611 = vld [vmem:[#allocation5 + $0x1140] sm:$0xff]
    %v612 = vld [vmem:[#allocation5 + $0x1148] sm:$0xff]
    %v613 = vld [vmem:[#allocation5 + $0x1150] sm:$0xff]
    %v614 = vld [vmem:[#allocation5 + $0x1158] sm:$0xff]
    %v615 = vld [vmem:[#allocation5 + $0x1160] sm:$0xff]
    %v616 = vld [vmem:[#allocation5 + $0x1168] sm:$0xff]
    %v617 = vld [vmem:[#allocation5 + $0x1170] sm:$0xff]
    %v618 = vld [vmem:[#allocation5 + $0x1178] sm:$0xff]
    %v619 = vld [vmem:[#allocation5 + $0x1180] sm:$0xff]
    %v620 = vld [vmem:[#allocation5 + $0x1188] sm:$0xff]
    %v621 = vld [vmem:[#allocation5 + $0x1190] sm:$0xff]
    %v622 = vld [vmem:[#allocation5 + $0x1198] sm:$0xff]
    %v623 = vld [vmem:[#allocation5 + $0x11a0] sm:$0xff]
    %v624 = vld [vmem:[#allocation5 + $0x11a8] sm:$0xff]
    %v625 = vld [vmem:[#allocation5 + $0x11b0] sm:$0xff]
    %v626 = vld [vmem:[#allocation5 + $0x11b8] sm:$0xff]
    %v627 = vld [vmem:[#allocation5 + $0x11c0] sm:$0xff]
    %v628 = vld [vmem:[#allocation5 + $0x11c8] sm:$0xff]
    %v629 = vld [vmem:[#allocation5 + $0x11d0] sm:$0xff]
    %v630 = vld [vmem:[#allocation5 + $0x11d8] sm:$0xff]
    %v631 = vld [vmem:[#allocation5 + $0x11e0] sm:$0xff]
    %v632 = vld [vmem:[#allocation5 + $0x11e8] sm:$0xff]
    %v633 = vld [vmem:[#allocation5 + $0x11f0] sm:$0xff]
    %v634 = vld [vmem:[#allocation5 + $0x11f8] sm:$0xff]
    %v635 = vld [vmem:[#allocation5 + $0x1200] sm:$0xff]
    %v636 = vld [vmem:[#allocation5 + $0x1208] sm:$0xff]
    %v637 = vld [vmem:[#allocation5 + $0x1210] sm:$0xff]
    %v638 = vld [vmem:[#allocation5 + $0x1218] sm:$0xff]
    %v639 = vld [vmem:[#allocation5 + $0x1220] sm:$0xff]
    %v640 = vld [vmem:[#allocation5 + $0x1228] sm:$0xff]
    %v641 = vld [vmem:[#allocation5 + $0x1230] sm:$0xff]
    %v642 = vld [vmem:[#allocation5 + $0x1238] sm:$0xff]
    %v643 = vld [vmem:[#allocation5 + $0x1240] sm:$0xff]
    %v644 = vld [vmem:[#allocation5 + $0x1248] sm:$0xff]
    %v645 = vld [vmem:[#allocation5 + $0x1250] sm:$0xff]
    %v646 = vld [vmem:[#allocation5 + $0x1258] sm:$0xff]
    %v647 = vld [vmem:[#allocation5 + $0x1260] sm:$0xff]
    %v648 = vld [vmem:[#allocation5 + $0x1268] sm:$0xff]
    %v649 = vld [vmem:[#allocation5 + $0x1270] sm:$0xff]
    %v650 = vld [vmem:[#allocation5 + $0x1278] sm:$0xff]
    %v651 = vld [vmem:[#allocation5 + $0x1280] sm:$0xff]
    %v652 = vld [vmem:[#allocation5 + $0x1288] sm:$0xff]
    %v653 = vld [vmem:[#allocation5 + $0x1290] sm:$0xff]
    %v654 = vld [vmem:[#allocation5 + $0x1298] sm:$0xff]
    %v655 = vld [vmem:[#allocation5 + $0x12a0] sm:$0xff]
    %v656 = vld [vmem:[#allocation5 + $0x12a8] sm:$0xff]
    %v657 = vld [vmem:[#allocation5 + $0x12b0] sm:$0xff]
    %v658 = vld [vmem:[#allocation5 + $0x12b8] sm:$0xff]
    %v659 = vld [vmem:[#allocation5 + $0x12c0] sm:$0xff]
    %v660 = vld [vmem:[#allocation5 + $0x12c8] sm:$0xff]
    %v661 = vld [vmem:[#allocation5 + $0x12d0] sm:$0xff]
    %v662 = vld [vmem:[#allocation5 + $0x12d8] sm:$0xff]
    %v663 = vld [vmem:[#allocation5 + $0x12e0] sm:$0xff]
    %v664 = vld [vmem:[#allocation5 + $0x12e8] sm:$0xff]
    %v665 = vld [vmem:[#allocation5 + $0x12f0] sm:$0xff]
    %v666 = vld [vmem:[#allocation5 + $0x12f8] sm:$0xff]
    %v667 = vld [vmem:[#allocation5 + $0x1300] sm:$0xff]
    %v668 = vld [vmem:[#allocation5 + $0x1308] sm:$0xff]
    %v669 = vld [vmem:[#allocation5 + $0x1310] sm:$0xff]
    %v670 = vld [vmem:[#allocation5 + $0x1318] sm:$0xff]
    %v671 = vld [vmem:[#allocation5 + $0x1320] sm:$0xff]
    %v672 = vld [vmem:[#allocation5 + $0x1328] sm:$0xff]
    %v673 = vld [vmem:[#allocation5 + $0x1330] sm:$0xff]
    %v674 = vld [vmem:[#allocation5 + $0x1338] sm:$0xff]
    %v675 = vld [vmem:[#allocation5 + $0x1340] sm:$0xff]
    %v676 = vld [vmem:[#allocation5 + $0x1348] sm:$0xff]
    %v677 = vld [vmem:[#allocation5 + $0x1350] sm:$0xff]
    %v678 = vld [vmem:[#allocation5 + $0x1358] sm:$0xff]
    %v679 = vld [vmem:[#allocation5 + $0x1360] sm:$0xff]
    %v680 = vld [vmem:[#allocation5 + $0x1368] sm:$0xff]
    %v681 = vld [vmem:[#allocation5 + $0x1370] sm:$0xff]
    %v682 = vld [vmem:[#allocation5 + $0x1378] sm:$0xff]
    %v683 = vld [vmem:[#allocation5 + $0x1380] sm:$0xff]
    %v684 = vld [vmem:[#allocation5 + $0x1388] sm:$0xff]
    %v685 = vld [vmem:[#allocation5 + $0x1390] sm:$0xff]
    %v686 = vld [vmem:[#allocation5 + $0x1398] sm:$0xff]
    %v687 = vld [vmem:[#allocation5 + $0x13a0] sm:$0xff]
    %v688 = vld [vmem:[#allocation5 + $0x13a8] sm:$0xff]
    %v689 = vld [vmem:[#allocation5 + $0x13b0] sm:$0xff]
    %v690 = vld [vmem:[#allocation5 + $0x13b8] sm:$0xff]
    %v691 = vld [vmem:[#allocation5 + $0x13c0] sm:$0xff]
    %v692 = vld [vmem:[#allocation5 + $0x13c8] sm:$0xff]
    %v693 = vld [vmem:[#allocation5 + $0x13d0] sm:$0xff]
    %v694 = vld [vmem:[#allocation5 + $0x13d8] sm:$0xff]
    %v695 = vld [vmem:[#allocation5 + $0x13e0] sm:$0xff]
    %v696 = vld [vmem:[#allocation5 + $0x13e8] sm:$0xff]
    %v697 = vld [vmem:[#allocation5 + $0x13f0] sm:$0xff]
    %v698 = vld [vmem:[#allocation5 + $0x13f8] sm:$0xff]
    %v699 = vld [vmem:[#allocation5 + $0x1400] sm:$0xff]
    %v700 = vld [vmem:[#allocation5 + $0x1408] sm:$0xff]
    %v701 = vld [vmem:[#allocation5 + $0x1410] sm:$0xff]
    %v702 = vld [vmem:[#allocation5 + $0x1418] sm:$0xff]
    %v703 = vld [vmem:[#allocation5 + $0x1420] sm:$0xff]
    %v704 = vld [vmem:[#allocation5 + $0x1428] sm:$0xff]
    %v705 = vld [vmem:[#allocation5 + $0x1430] sm:$0xff]
    %v706 = vld [vmem:[#allocation5 + $0x1438] sm:$0xff]
    %v707 = vld [vmem:[#allocation5 + $0x1440] sm:$0xff]
    %v708 = vld [vmem:[#allocation5 + $0x1448] sm:$0xff]
    %v709 = vld [vmem:[#allocation5 + $0x1450] sm:$0xff]
    %v710 = vld [vmem:[#allocation5 + $0x1458] sm:$0xff]
    %v711 = vld [vmem:[#allocation5 + $0x1460] sm:$0xff]
    %v712 = vld [vmem:[#allocation5 + $0x1468] sm:$0xff]
    %v713 = vld [vmem:[#allocation5 + $0x1470] sm:$0xff]
    %v714 = vld [vmem:[#allocation5 + $0x1478] sm:$0xff]
    %v715 = vld [vmem:[#allocation5 + $0x1480] sm:$0xff]
    %v716 = vld [vmem:[#allocation5 + $0x1488] sm:$0xff]
    %v717 = vld [vmem:[#allocation5 + $0x1490] sm:$0xff]
    %v718 = vld [vmem:[#allocation5 + $0x1498] sm:$0xff]
    %v719 = vld [vmem:[#allocation5 + $0x14a0] sm:$0xff]
    %v720 = vld [vmem:[#allocation5 + $0x14a8] sm:$0xff]
    %v721 = vld [vmem:[#allocation5 + $0x14b0] sm:$0xff]
    %v722 = vld [vmem:[#allocation5 + $0x14b8] sm:$0xff]
    %v723 = vld [vmem:[#allocation5 + $0x14c0] sm:$0xff]
    %v724 = vld [vmem:[#allocation5 + $0x14c8] sm:$0xff]
    %v725 = vld [vmem:[#allocation5 + $0x14d0] sm:$0xff]
    %v726 = vld [vmem:[#allocation5 + $0x14d8] sm:$0xff]
    %v727 = vld [vmem:[#allocation5 + $0x14e0] sm:$0xff]
    %v728 = vld [vmem:[#allocation5 + $0x14e8] sm:$0xff]
    %v729 = vld [vmem:[#allocation5 + $0x14f0] sm:$0xff]
    %v730 = vld [vmem:[#allocation5 + $0x14f8] sm:$0xff]
    %v731 = vld [vmem:[#allocation5 + $0x1500] sm:$0xff]
    %v732 = vld [vmem:[#allocation5 + $0x1508] sm:$0xff]
    %v733 = vld [vmem:[#allocation5 + $0x1510] sm:$0xff]
    %v734 = vld [vmem:[#allocation5 + $0x1518] sm:$0xff]
    %v735 = vld [vmem:[#allocation5 + $0x1520] sm:$0xff]
    %v736 = vld [vmem:[#allocation5 + $0x1528] sm:$0xff]
    %v737 = vld [vmem:[#allocation5 + $0x1530] sm:$0xff]
    %v738 = vld [vmem:[#allocation5 + $0x1538] sm:$0xff]
    %v739 = vld [vmem:[#allocation5 + $0x1540] sm:$0xff]
    %v740 = vld [vmem:[#allocation5 + $0x1548] sm:$0xff]
    %v741 = vld [vmem:[#allocation5 + $0x1550] sm:$0xff]
    %v742 = vld [vmem:[#allocation5 + $0x1558] sm:$0xff]
    %v743 = vld [vmem:[#allocation5 + $0x1560] sm:$0xff]
    %v744 = vld [vmem:[#allocation5 + $0x1568] sm:$0xff]
    %v745 = vld [vmem:[#allocation5 + $0x1570] sm:$0xff]
    %v746 = vld [vmem:[#allocation5 + $0x1578] sm:$0xff]
    %v747 = vld [vmem:[#allocation5 + $0x1580] sm:$0xff]
    %v748 = vld [vmem:[#allocation5 + $0x1588] sm:$0xff]
    %v749 = vld [vmem:[#allocation5 + $0x1590] sm:$0xff]
    %v750 = vld [vmem:[#allocation5 + $0x1598] sm:$0xff]
    %v751 = vld [vmem:[#allocation5 + $0x15a0] sm:$0xff]
    %v752 = vld [vmem:[#allocation5 + $0x15a8] sm:$0xff]
    %v753 = vld [vmem:[#allocation5 + $0x15b0] sm:$0xff]
    %v754 = vld [vmem:[#allocation5 + $0x15b8] sm:$0xff]
    %v755 = vld [vmem:[#allocation5 + $0x15c0] sm:$0xff]
    %v756 = vld [vmem:[#allocation5 + $0x15c8] sm:$0xff]
    %v757 = vld [vmem:[#allocation5 + $0x15d0] sm:$0xff]
    %v758 = vld [vmem:[#allocation5 + $0x15d8] sm:$0xff]
    %v759 = vld [vmem:[#allocation5 + $0x15e0] sm:$0xff]
    %v760 = vld [vmem:[#allocation5 + $0x15e8] sm:$0xff]
    %v761 = vld [vmem:[#allocation5 + $0x15f0] sm:$0xff]
    %v762 = vld [vmem:[#allocation5 + $0x15f8] sm:$0xff]
    %v763 = vld [vmem:[#allocation5 + $0x1600] sm:$0xff]
    %v764 = vld [vmem:[#allocation5 + $0x1608] sm:$0xff]
    %v765 = vld [vmem:[#allocation5 + $0x1610] sm:$0xff]
    %v766 = vld [vmem:[#allocation5 + $0x1618] sm:$0xff]
    %v767 = vld [vmem:[#allocation5 + $0x1620] sm:$0xff]
    %v768 = vld [vmem:[#allocation5 + $0x1628] sm:$0xff]
    %v769 = vld [vmem:[#allocation5 + $0x1630] sm:$0xff]
    %v770 = vld [vmem:[#allocation5 + $0x1638] sm:$0xff]
    %v771 = vld [vmem:[#allocation5 + $0x1640] sm:$0xff]
    %v772 = vld [vmem:[#allocation5 + $0x1648] sm:$0xff]
    %v773 = vld [vmem:[#allocation5 + $0x1650] sm:$0xff]
    %v774 = vld [vmem:[#allocation5 + $0x1658] sm:$0xff]
    %v775 = vld [vmem:[#allocation5 + $0x1660] sm:$0xff]
    %v776 = vld [vmem:[#allocation5 + $0x1668] sm:$0xff]
    %v777 = vld [vmem:[#allocation5 + $0x1670] sm:$0xff]
    %v778 = vld [vmem:[#allocation5 + $0x1678] sm:$0xff]
    %v779 = vld [vmem:[#allocation5 + $0x1680] sm:$0xff]
    %v780 = vld [vmem:[#allocation5 + $0x1688] sm:$0xff]
    %v781 = vld [vmem:[#allocation5 + $0x1690] sm:$0xff]
    %v782 = vld [vmem:[#allocation5 + $0x1698] sm:$0xff]
    %v783 = vld [vmem:[#allocation5 + $0x16a0] sm:$0xff]
    %v784 = vld [vmem:[#allocation5 + $0x16a8] sm:$0xff]
    %v785 = vld [vmem:[#allocation5 + $0x16b0] sm:$0xff]
    %v786 = vld [vmem:[#allocation5 + $0x16b8] sm:$0xff]
    %v787 = vld [vmem:[#allocation5 + $0x16c0] sm:$0xff]
    %v788 = vld [vmem:[#allocation5 + $0x16c8] sm:$0xff]
    %v789 = vld [vmem:[#allocation5 + $0x16d0] sm:$0xff]
    %v790 = vld [vmem:[#allocation5 + $0x16d8] sm:$0xff]
    %v791 = vld [vmem:[#allocation5 + $0x16e0] sm:$0xff]
    %v792 = vld [vmem:[#allocation5 + $0x16e8] sm:$0xff]
    %v793 = vld [vmem:[#allocation5 + $0x16f0] sm:$0xff]
    %v794 = vld [vmem:[#allocation5 + $0x16f8] sm:$0xff]
    %v795 = vld [vmem:[#allocation5 + $0x1700] sm:$0xff]
    %v796 = vld [vmem:[#allocation5 + $0x1708] sm:$0xff]
    %v797 = vld [vmem:[#allocation5 + $0x1710] sm:$0xff]
    %v798 = vld [vmem:[#allocation5 + $0x1718] sm:$0xff]
    %v799 = vld [vmem:[#allocation5 + $0x1720] sm:$0xff]
    %v800 = vld [vmem:[#allocation5 + $0x1728] sm:$0xff]
    %v801 = vld [vmem:[#allocation5 + $0x1730] sm:$0xff]
    %v802 = vld [vmem:[#allocation5 + $0x1738] sm:$0xff]
    %v803 = vld [vmem:[#allocation5 + $0x1740] sm:$0xff]
    %v804 = vld [vmem:[#allocation5 + $0x1748] sm:$0xff]
    %v805 = vld [vmem:[#allocation5 + $0x1750] sm:$0xff]
    %v806 = vld [vmem:[#allocation5 + $0x1758] sm:$0xff]
    %v807 = vld [vmem:[#allocation5 + $0x1760] sm:$0xff]
    %v808 = vld [vmem:[#allocation5 + $0x1768] sm:$0xff]
    %v809 = vld [vmem:[#allocation5 + $0x1770] sm:$0xff]
    %v810 = vld [vmem:[#allocation5 + $0x1778] sm:$0xff]
    %v811 = vld [vmem:[#allocation5 + $0x1780] sm:$0xff]
    %v812 = vld [vmem:[#allocation5 + $0x1788] sm:$0xff]
    %v813 = vld [vmem:[#allocation5 + $0x1790] sm:$0xff]
    %v814 = vld [vmem:[#allocation5 + $0x1798] sm:$0xff]
    %v815 = vld [vmem:[#allocation5 + $0x17a0] sm:$0xff]
    %v816 = vld [vmem:[#allocation5 + $0x17a8] sm:$0xff]
    %v817 = vld [vmem:[#allocation5 + $0x17b0] sm:$0xff]
    %v818 = vld [vmem:[#allocation5 + $0x17b8] sm:$0xff]
    %v819 = vld [vmem:[#allocation5 + $0x17c0] sm:$0xff]
    %v820 = vld [vmem:[#allocation5 + $0x17c8] sm:$0xff]
    %v821 = vld [vmem:[#allocation5 + $0x17d0] sm:$0xff]
    %v822 = vld [vmem:[#allocation5 + $0x17d8] sm:$0xff]
    %v823 = vld [vmem:[#allocation5 + $0x17e0] sm:$0xff]
    %v824 = vld [vmem:[#allocation5 + $0x17e8] sm:$0xff]
    %v825 = vld [vmem:[#allocation5 + $0x17f0] sm:$0xff]
    %v826 = vld [vmem:[#allocation5 + $0x17f8] sm:$0xff]
    %v827 = vld [vmem:[#allocation5 + $0x1800] sm:$0xff]
    %v828 = vld [vmem:[#allocation5 + $0x1808] sm:$0xff]
    %v829 = vld [vmem:[#allocation5 + $0x1810] sm:$0xff]
    %v830 = vld [vmem:[#allocation5 + $0x1818] sm:$0xff]
    %v831 = vld [vmem:[#allocation5 + $0x1820] sm:$0xff]
    %v832 = vld [vmem:[#allocation5 + $0x1828] sm:$0xff]
    %v833 = vld [vmem:[#allocation5 + $0x1830] sm:$0xff]
    %v834 = vld [vmem:[#allocation5 + $0x1838] sm:$0xff]
    %v835 = vld [vmem:[#allocation5 + $0x1840] sm:$0xff]
    %v836 = vld [vmem:[#allocation5 + $0x1848] sm:$0xff]
    %v837 = vld [vmem:[#allocation5 + $0x1850] sm:$0xff]
    %v838 = vld [vmem:[#allocation5 + $0x1858] sm:$0xff]
    %v839 = vld [vmem:[#allocation5 + $0x1860] sm:$0xff]
    %v840 = vld [vmem:[#allocation5 + $0x1868] sm:$0xff]
    %v841 = vld [vmem:[#allocation5 + $0x1870] sm:$0xff]
    %v842 = vld [vmem:[#allocation5 + $0x1878] sm:$0xff]
    %v843 = vld [vmem:[#allocation5 + $0x1880] sm:$0xff]
    %v844 = vld [vmem:[#allocation5 + $0x1888] sm:$0xff]
    %v845 = vld [vmem:[#allocation5 + $0x1890] sm:$0xff]
    %v846 = vld [vmem:[#allocation5 + $0x1898] sm:$0xff]
    %v847 = vld [vmem:[#allocation5 + $0x18a0] sm:$0xff]
    %v848 = vld [vmem:[#allocation5 + $0x18a8] sm:$0xff]
    %v849 = vld [vmem:[#allocation5 + $0x18b0] sm:$0xff]
    %v850 = vld [vmem:[#allocation5 + $0x18b8] sm:$0xff]
    %v851 = vld [vmem:[#allocation5 + $0x18c0] sm:$0xff]
    %v852 = vld [vmem:[#allocation5 + $0x18c8] sm:$0xff]
    %v853 = vld [vmem:[#allocation5 + $0x18d0] sm:$0xff]
    %v854 = vld [vmem:[#allocation5 + $0x18d8] sm:$0xff]
    %v855 = vld [vmem:[#allocation5 + $0x18e0] sm:$0xff]
    %v856 = vld [vmem:[#allocation5 + $0x18e8] sm:$0xff]
    %v857 = vld [vmem:[#allocation5 + $0x18f0] sm:$0xff]
    %v858 = vld [vmem:[#allocation5 + $0x18f8] sm:$0xff]
    %v859 = vld [vmem:[#allocation5 + $0x1900] sm:$0xff]
    %v860 = vld [vmem:[#allocation5 + $0x1908] sm:$0xff]
    %v861 = vld [vmem:[#allocation5 + $0x1910] sm:$0xff]
    %v862 = vld [vmem:[#allocation5 + $0x1918] sm:$0xff]
    %v863 = vld [vmem:[#allocation5 + $0x1920] sm:$0xff]
    %v864 = vld [vmem:[#allocation5 + $0x1928] sm:$0xff]
    %v865 = vld [vmem:[#allocation5 + $0x1930] sm:$0xff]
    %v866 = vld [vmem:[#allocation5 + $0x1938] sm:$0xff]
    %v867 = vld [vmem:[#allocation5 + $0x1940] sm:$0xff]
    %v868 = vld [vmem:[#allocation5 + $0x1948] sm:$0xff]
    %v869 = vld [vmem:[#allocation5 + $0x1950] sm:$0xff]
    %v870 = vld [vmem:[#allocation5 + $0x1958] sm:$0xff]
    %v871 = vld [vmem:[#allocation5 + $0x1960] sm:$0xff]
    %v872 = vld [vmem:[#allocation5 + $0x1968] sm:$0xff]
    %v873 = vld [vmem:[#allocation5 + $0x1970] sm:$0xff]
    %v874 = vld [vmem:[#allocation5 + $0x1978] sm:$0xff]
    %v875 = vld [vmem:[#allocation5 + $0x1980] sm:$0xff]
    %v876 = vld [vmem:[#allocation5 + $0x1988] sm:$0xff]
    %v877 = vld [vmem:[#allocation5 + $0x1990] sm:$0xff]
    %v878 = vld [vmem:[#allocation5 + $0x1998] sm:$0xff]
    %v879 = vld [vmem:[#allocation5 + $0x19a0] sm:$0xff]
    %v880 = vld [vmem:[#allocation5 + $0x19a8] sm:$0xff]
    %v881 = vld [vmem:[#allocation5 + $0x19b0] sm:$0xff]
    %v882 = vld [vmem:[#allocation5 + $0x19b8] sm:$0xff]
    %v883 = vld [vmem:[#allocation5 + $0x19c0] sm:$0xff]
    %v884 = vld [vmem:[#allocation5 + $0x19c8] sm:$0xff]
    %v885 = vld [vmem:[#allocation5 + $0x19d0] sm:$0xff]
    %v886 = vld [vmem:[#allocation5 + $0x19d8] sm:$0xff]
    %v887 = vld [vmem:[#allocation5 + $0x19e0] sm:$0xff]
    %v888 = vld [vmem:[#allocation5 + $0x19e8] sm:$0xff]
    %v889 = vld [vmem:[#allocation5 + $0x19f0] sm:$0xff]
    %v890 = vld [vmem:[#allocation5 + $0x19f8] sm:$0xff]
    %v891 = vld [vmem:[#allocation5 + $0x1a00] sm:$0xff]
    %v892 = vld [vmem:[#allocation5 + $0x1a08] sm:$0xff]
    %v893 = vld [vmem:[#allocation5 + $0x1a10] sm:$0xff]
    %v894 = vld [vmem:[#allocation5 + $0x1a18] sm:$0xff]
    %v895 = vld [vmem:[#allocation5 + $0x1a20] sm:$0xff]
    %v896 = vld [vmem:[#allocation5 + $0x1a28] sm:$0xff]
    %v897 = vld [vmem:[#allocation5 + $0x1a30] sm:$0xff]
    %v898 = vld [vmem:[#allocation5 + $0x1a38] sm:$0xff]
    %v899 = vld [vmem:[#allocation5 + $0x1a40] sm:$0xff]
    %v900 = vld [vmem:[#allocation5 + $0x1a48] sm:$0xff]
    %v901 = vld [vmem:[#allocation5 + $0x1a50] sm:$0xff]
    %v902 = vld [vmem:[#allocation5 + $0x1a58] sm:$0xff]
    %v903 = vld [vmem:[#allocation5 + $0x1a60] sm:$0xff]
    %v904 = vld [vmem:[#allocation5 + $0x1a68] sm:$0xff]
    %v905 = vld [vmem:[#allocation5 + $0x1a70] sm:$0xff]
    %v906 = vld [vmem:[#allocation5 + $0x1a78] sm:$0xff]
    %v907 = vld [vmem:[#allocation5 + $0x1a80] sm:$0xff]
    %v908 = vld [vmem:[#allocation5 + $0x1a88] sm:$0xff]
    %v909 = vld [vmem:[#allocation5 + $0x1a90] sm:$0xff]
    %v910 = vld [vmem:[#allocation5 + $0x1a98] sm:$0xff]
    %v911 = vld [vmem:[#allocation5 + $0x1aa0] sm:$0xff]
    %v912 = vld [vmem:[#allocation5 + $0x1aa8] sm:$0xff]
    %v913 = vld [vmem:[#allocation5 + $0x1ab0] sm:$0xff]
    %v914 = vld [vmem:[#allocation5 + $0x1ab8] sm:$0xff]
    %v915 = vld [vmem:[#allocation5 + $0x1ac0] sm:$0xff]
    %v916 = vld [vmem:[#allocation5 + $0x1ac8] sm:$0xff]
    %v917 = vld [vmem:[#allocation5 + $0x1ad0] sm:$0xff]
    %v918 = vld [vmem:[#allocation5 + $0x1ad8] sm:$0xff]
    %v919 = vld [vmem:[#allocation5 + $0x1ae0] sm:$0xff]
    %v920 = vld [vmem:[#allocation5 + $0x1ae8] sm:$0xff]
    %v921 = vld [vmem:[#allocation5 + $0x1af0] sm:$0xff]
    %v922 = vld [vmem:[#allocation5 + $0x1af8] sm:$0xff]
    %v923 = vld [vmem:[#allocation5 + $0x1b00] sm:$0xff]
    %v924 = vld [vmem:[#allocation5 + $0x1b08] sm:$0xff]
    %v925 = vld [vmem:[#allocation5 + $0x1b10] sm:$0xff]
    %v926 = vld [vmem:[#allocation5 + $0x1b18] sm:$0xff]
    %v927 = vld [vmem:[#allocation5 + $0x1b20] sm:$0xff]
    %v928 = vld [vmem:[#allocation5 + $0x1b28] sm:$0xff]
    %v929 = vld [vmem:[#allocation5 + $0x1b30] sm:$0xff]
    %v930 = vld [vmem:[#allocation5 + $0x1b38] sm:$0xff]
    %v931 = vld [vmem:[#allocation5 + $0x1b40] sm:$0xff]
    %v932 = vld [vmem:[#allocation5 + $0x1b48] sm:$0xff]
    %v933 = vld [vmem:[#allocation5 + $0x1b50] sm:$0xff]
    %v934 = vld [vmem:[#allocation5 + $0x1b58] sm:$0xff]
    %v935 = vld [vmem:[#allocation5 + $0x1b60] sm:$0xff]
    %v936 = vld [vmem:[#allocation5 + $0x1b68] sm:$0xff]
    %v937 = vld [vmem:[#allocation5 + $0x1b70] sm:$0xff]
    %v938 = vld [vmem:[#allocation5 + $0x1b78] sm:$0xff]
    %v939 = vld [vmem:[#allocation5 + $0x1b80] sm:$0xff]
    %v940 = vld [vmem:[#allocation5 + $0x1b88] sm:$0xff]
    %v941 = vld [vmem:[#allocation5 + $0x1b90] sm:$0xff]
    %v942 = vld [vmem:[#allocation5 + $0x1b98] sm:$0xff]
    %v943 = vld [vmem:[#allocation5 + $0x1ba0] sm:$0xff]
    %v944 = vld [vmem:[#allocation5 + $0x1ba8] sm:$0xff]
    %v945 = vld [vmem:[#allocation5 + $0x1bb0] sm:$0xff]
    %v946 = vld [vmem:[#allocation5 + $0x1bb8] sm:$0xff]
    %v947 = vld [vmem:[#allocation5 + $0x1bc0] sm:$0xff]
    %v948 = vld [vmem:[#allocation5 + $0x1bc8] sm:$0xff]
    %v949 = vld [vmem:[#allocation5 + $0x1bd0] sm:$0xff]
    %v950 = vld [vmem:[#allocation5 + $0x1bd8] sm:$0xff]
    %v951 = vld [vmem:[#allocation5 + $0x1be0] sm:$0xff]
    %v952 = vld [vmem:[#allocation5 + $0x1be8] sm:$0xff]
    %v953 = vld [vmem:[#allocation5 + $0x1bf0] sm:$0xff]
    %v954 = vld [vmem:[#allocation5 + $0x1bf8] sm:$0xff]
    %v955 = vld [vmem:[#allocation5 + $0x1c00] sm:$0xff]
    %v956 = vld [vmem:[#allocation5 + $0x1c08] sm:$0xff]
    %v957 = vld [vmem:[#allocation5 + $0x1c10] sm:$0xff]
    %v958 = vld [vmem:[#allocation5 + $0x1c18] sm:$0xff]
    %v959 = vld [vmem:[#allocation5 + $0x1c20] sm:$0xff]
    %v960 = vld [vmem:[#allocation5 + $0x1c28] sm:$0xff]
    %v961 = vld [vmem:[#allocation5 + $0x1c30] sm:$0xff]
    %v962 = vld [vmem:[#allocation5 + $0x1c38] sm:$0xff]
    %v963 = vld [vmem:[#allocation5 + $0x1c40] sm:$0xff]
    %v964 = vld [vmem:[#allocation5 + $0x1c48] sm:$0xff]
    %v965 = vld [vmem:[#allocation5 + $0x1c50] sm:$0xff]
    %v966 = vld [vmem:[#allocation5 + $0x1c58] sm:$0xff]
    %v967 = vld [vmem:[#allocation5 + $0x1c60] sm:$0xff]
    %v968 = vld [vmem:[#allocation5 + $0x1c68] sm:$0xff]
    %v969 = vld [vmem:[#allocation5 + $0x1c70] sm:$0xff]
    %v970 = vld [vmem:[#allocation5 + $0x1c78] sm:$0xff]
    %v971 = vld [vmem:[#allocation5 + $0x1c80] sm:$0xff]
    %v972 = vld [vmem:[#allocation5 + $0x1c88] sm:$0xff]
    %v973 = vld [vmem:[#allocation5 + $0x1c90] sm:$0xff]
    %v974 = vld [vmem:[#allocation5 + $0x1c98] sm:$0xff]
    %v975 = vld [vmem:[#allocation5 + $0x1ca0] sm:$0xff]
    %v976 = vld [vmem:[#allocation5 + $0x1ca8] sm:$0xff]
    %v977 = vld [vmem:[#allocation5 + $0x1cb0] sm:$0xff]
    %v978 = vld [vmem:[#allocation5 + $0x1cb8] sm:$0xff]
    %v979 = vld [vmem:[#allocation5 + $0x1cc0] sm:$0xff]
    %v980 = vld [vmem:[#allocation5 + $0x1cc8] sm:$0xff]
    %v981 = vld [vmem:[#allocation5 + $0x1cd0] sm:$0xff]
    %v982 = vld [vmem:[#allocation5 + $0x1cd8] sm:$0xff]
    %v983 = vld [vmem:[#allocation5 + $0x1ce0] sm:$0xff]
    %v984 = vld [vmem:[#allocation5 + $0x1ce8] sm:$0xff]
    %v985 = vld [vmem:[#allocation5 + $0x1cf0] sm:$0xff]
    %v986 = vld [vmem:[#allocation5 + $0x1cf8] sm:$0xff]
    %v987 = vld [vmem:[#allocation5 + $0x1d00] sm:$0xff]
    %v988 = vld [vmem:[#allocation5 + $0x1d08] sm:$0xff]
    %v989 = vld [vmem:[#allocation5 + $0x1d10] sm:$0xff]
    %v990 = vld [vmem:[#allocation5 + $0x1d18] sm:$0xff]
    %v991 = vld [vmem:[#allocation5 + $0x1d20] sm:$0xff]
    %v992 = vld [vmem:[#allocation5 + $0x1d28] sm:$0xff]
    %v993 = vld [vmem:[#allocation5 + $0x1d30] sm:$0xff]
    %v994 = vld [vmem:[#allocation5 + $0x1d38] sm:$0xff]
    %v995 = vld [vmem:[#allocation5 + $0x1d40] sm:$0xff]
    %v996 = vld [vmem:[#allocation5 + $0x1d48] sm:$0xff]
    %v997 = vld [vmem:[#allocation5 + $0x1d50] sm:$0xff]
    %v998 = vld [vmem:[#allocation5 + $0x1d58] sm:$0xff]
    %v999 = vld [vmem:[#allocation5 + $0x1d60] sm:$0xff]
    %v1000 = vld [vmem:[#allocation5 + $0x1d68] sm:$0xff]
    %v1001 = vld [vmem:[#allocation5 + $0x1d70] sm:$0xff]
    %v1002 = vld [vmem:[#allocation5 + $0x1d78] sm:$0xff]
    %v1003 = vld [vmem:[#allocation5 + $0x1d80] sm:$0xff]
    %v1004 = vld [vmem:[#allocation5 + $0x1d88] sm:$0xff]
    %v1005 = vld [vmem:[#allocation5 + $0x1d90] sm:$0xff]
    %v1006 = vld [vmem:[#allocation5 + $0x1d98] sm:$0xff]
    %v1007 = vld [vmem:[#allocation5 + $0x1da0] sm:$0xff]
    %v1008 = vld [vmem:[#allocation5 + $0x1da8] sm:$0xff]
    %v1009 = vld [vmem:[#allocation5 + $0x1db0] sm:$0xff]
    %v1010 = vld [vmem:[#allocation5 + $0x1db8] sm:$0xff]
    %v1011 = vld [vmem:[#allocation5 + $0x1dc0] sm:$0xff]
    %v1012 = vld [vmem:[#allocation5 + $0x1dc8] sm:$0xff]
    %v1013 = vld [vmem:[#allocation5 + $0x1dd0] sm:$0xff]
    %v1014 = vld [vmem:[#allocation5 + $0x1dd8] sm:$0xff]
    %v1015 = vld [vmem:[#allocation5 + $0x1de0] sm:$0xff]
    %v1016 = vld [vmem:[#allocation5 + $0x1de8] sm:$0xff]
    %v1017 = vld [vmem:[#allocation5 + $0x1df0] sm:$0xff]
    %v1018 = vld [vmem:[#allocation5 + $0x1df8] sm:$0xff]
    %v1019 = vld [vmem:[#allocation5 + $0x1e00] sm:$0xff]
    %v1020 = vld [vmem:[#allocation5 + $0x1e08] sm:$0xff]
    %v1021 = vld [vmem:[#allocation5 + $0x1e10] sm:$0xff]
    %v1022 = vld [vmem:[#allocation5 + $0x1e18] sm:$0xff]
    %v1023 = vld [vmem:[#allocation5 + $0x1e20] sm:$0xff]
    %v1024 = vld [vmem:[#allocation5 + $0x1e28] sm:$0xff]
    %v1025 = vld [vmem:[#allocation5 + $0x1e30] sm:$0xff]
    %v1026 = vld [vmem:[#allocation5 + $0x1e38] sm:$0xff]
    %v1027 = vld [vmem:[#allocation5 + $0x1e40] sm:$0xff]
    %v1028 = vld [vmem:[#allocation5 + $0x1e48] sm:$0xff]
    %v1029 = vld [vmem:[#allocation5 + $0x1e50] sm:$0xff]
    %v1030 = vld [vmem:[#allocation5 + $0x1e58] sm:$0xff]
    %v1031 = vld [vmem:[#allocation5 + $0x1e60] sm:$0xff]
    %v1032 = vld [vmem:[#allocation5 + $0x1e68] sm:$0xff]
    %v1033 = vld [vmem:[#allocation5 + $0x1e70] sm:$0xff]
    %v1034 = vld [vmem:[#allocation5 + $0x1e78] sm:$0xff]
    %v1035 = vld [vmem:[#allocation5 + $0x1e80] sm:$0xff]
    %v1036 = vld [vmem:[#allocation5 + $0x1e88] sm:$0xff]
    %v1037 = vld [vmem:[#allocation5 + $0x1e90] sm:$0xff]
    %v1038 = vld [vmem:[#allocation5 + $0x1e98] sm:$0xff]
    %v1039 = vld [vmem:[#allocation5 + $0x1ea0] sm:$0xff]
    %v1040 = vld [vmem:[#allocation5 + $0x1ea8] sm:$0xff]
    %v1041 = vld [vmem:[#allocation5 + $0x1eb0] sm:$0xff]
    %v1042 = vld [vmem:[#allocation5 + $0x1eb8] sm:$0xff]
    %v1043 = vld [vmem:[#allocation5 + $0x1ec0] sm:$0xff]
    %v1044 = vld [vmem:[#allocation5 + $0x1ec8] sm:$0xff]
    %v1045 = vld [vmem:[#allocation5 + $0x1ed0] sm:$0xff]
    %v1046 = vld [vmem:[#allocation5 + $0x1ed8] sm:$0xff]
    %v1047 = vld [vmem:[#allocation5 + $0x1ee0] sm:$0xff]
    %v1048 = vld [vmem:[#allocation5 + $0x1ee8] sm:$0xff]
    %v1049 = vld [vmem:[#allocation5 + $0x1ef0] sm:$0xff]
    %v1050 = vld [vmem:[#allocation5 + $0x1ef8] sm:$0xff]
    %v1051 = vld [vmem:[#allocation5 + $0x1f00] sm:$0xff]
    %v1052 = vld [vmem:[#allocation5 + $0x1f08] sm:$0xff]
    %v1053 = vld [vmem:[#allocation5 + $0x1f10] sm:$0xff]
    %v1054 = vld [vmem:[#allocation5 + $0x1f18] sm:$0xff]
    %v1055 = vld [vmem:[#allocation5 + $0x1f20] sm:$0xff]
    %v1056 = vld [vmem:[#allocation5 + $0x1f28] sm:$0xff]
    %v1057 = vld [vmem:[#allocation5 + $0x1f30] sm:$0xff]
    %v1058 = vld [vmem:[#allocation5 + $0x1f38] sm:$0xff]
    %v1059 = vld [vmem:[#allocation5 + $0x1f40] sm:$0xff]
    %v1060 = vld [vmem:[#allocation5 + $0x1f48] sm:$0xff]
    %v1061 = vld [vmem:[#allocation5 + $0x1f50] sm:$0xff]
    %v1062 = vld [vmem:[#allocation5 + $0x1f58] sm:$0xff]
    %v1063 = vld [vmem:[#allocation5 + $0x1f60] sm:$0xff]
    %v1064 = vld [vmem:[#allocation5 + $0x1f68] sm:$0xff]
    %v1065 = vld [vmem:[#allocation5 + $0x1f70] sm:$0xff]
    %v1066 = vld [vmem:[#allocation5 + $0x1f78] sm:$0xff]
    %v1067 = vld [vmem:[#allocation5 + $0x1f80] sm:$0xff]
    %v1068 = vld [vmem:[#allocation5 + $0x1f88] sm:$0xff]
    %v1069 = vld [vmem:[#allocation5 + $0x1f90] sm:$0xff]
    %v1070 = vld [vmem:[#allocation5 + $0x1f98] sm:$0xff]
    %v1071 = vld [vmem:[#allocation5 + $0x1fa0] sm:$0xff]
    %v1072 = vld [vmem:[#allocation5 + $0x1fa8] sm:$0xff]
    %v1073 = vld [vmem:[#allocation5 + $0x1fb0] sm:$0xff]
    %v1074 = vld [vmem:[#allocation5 + $0x1fb8] sm:$0xff]
    %v1075 = vld [vmem:[#allocation5 + $0x1fc0] sm:$0xff]
    %v1076 = vld [vmem:[#allocation5 + $0x1fc8] sm:$0xff]
    %v1077 = vld [vmem:[#allocation5 + $0x1fd0] sm:$0xff]
    %v1078 = vld [vmem:[#allocation5 + $0x1fd8] sm:$0xff]
    %v1079 = vld [vmem:[#allocation5 + $0x1fe0] sm:$0xff]
    %v1080 = vld [vmem:[#allocation5 + $0x1fe8] sm:$0xff]
    %v1081 = vld [vmem:[#allocation5 + $0x1ff0] sm:$0xff]
    %v1082 = vld [vmem:[#allocation5 + $0x1ff8] sm:$0xff]
    %v1083 = vld [vmem:[#allocation5 + $0x2000] sm:$0xff]
    %v1084 = vld [vmem:[#allocation5 + $0x2008] sm:$0xff]
    %v1085 = vld [vmem:[#allocation5 + $0x2010] sm:$0xff]
    %v1086 = vld [vmem:[#allocation5 + $0x2018] sm:$0xff]
    %v1087 = vld [vmem:[#allocation5 + $0x2020] sm:$0xff]
    %v1088 = vld [vmem:[#allocation5 + $0x2028] sm:$0xff]
    %v1089 = vld [vmem:[#allocation5 + $0x2030] sm:$0xff]
    %v1090 = vld [vmem:[#allocation5 + $0x2038] sm:$0xff]
    %v1091 = vld [vmem:[#allocation5 + $0x2040] sm:$0xff]
    %v1092 = vld [vmem:[#allocation5 + $0x2048] sm:$0xff]
    %v1093 = vld [vmem:[#allocation5 + $0x2050] sm:$0xff]
    %v1094 = vld [vmem:[#allocation5 + $0x2058] sm:$0xff]
    %v1095 = vld [vmem:[#allocation5 + $0x2060] sm:$0xff]
    %v1096 = vld [vmem:[#allocation5 + $0x2068] sm:$0xff]
    %v1097 = vld [vmem:[#allocation5 + $0x2070] sm:$0xff]
    %v1098 = vld [vmem:[#allocation5 + $0x2078] sm:$0xff]
    %v1099 = vld [vmem:[#allocation5 + $0x2080] sm:$0xff]
    %v1100 = vld [vmem:[#allocation5 + $0x2088] sm:$0xff]
    %v1101 = vld [vmem:[#allocation5 + $0x2090] sm:$0xff]
    %v1102 = vld [vmem:[#allocation5 + $0x2098] sm:$0xff]
    %v1103 = vld [vmem:[#allocation5 + $0x20a0] sm:$0xff]
    %v1104 = vld [vmem:[#allocation5 + $0x20a8] sm:$0xff]
    %v1105 = vld [vmem:[#allocation5 + $0x20b0] sm:$0xff]
    %v1106 = vld [vmem:[#allocation5 + $0x20b8] sm:$0xff]
    %v1107 = vld [vmem:[#allocation5 + $0x20c0] sm:$0xff]
    %v1108 = vld [vmem:[#allocation5 + $0x20c8] sm:$0xff]
    %v1109 = vld [vmem:[#allocation5 + $0x20d0] sm:$0xff]
    %v1110 = vld [vmem:[#allocation5 + $0x20d8] sm:$0xff]
    %v1111 = vld [vmem:[#allocation5 + $0x20e0] sm:$0xff]
    %v1112 = vld [vmem:[#allocation5 + $0x20e8] sm:$0xff]
    %v1113 = vld [vmem:[#allocation5 + $0x20f0] sm:$0xff]
    %v1114 = vld [vmem:[#allocation5 + $0x20f8] sm:$0xff]
    %v1115 = vld [vmem:[#allocation5 + $0x2100] sm:$0xff]
    %v1116 = vld [vmem:[#allocation5 + $0x2108] sm:$0xff]
    %v1117 = vld [vmem:[#allocation5 + $0x2110] sm:$0xff]
    %v1118 = vld [vmem:[#allocation5 + $0x2118] sm:$0xff]
    %v1119 = vld [vmem:[#allocation5 + $0x2120] sm:$0xff]
    %v1120 = vld [vmem:[#allocation5 + $0x2128] sm:$0xff]
    %v1121 = vld [vmem:[#allocation5 + $0x2130] sm:$0xff]
    %v1122 = vld [vmem:[#allocation5 + $0x2138] sm:$0xff]
    %v1123 = vld [vmem:[#allocation5 + $0x2140] sm:$0xff]
    %v1124 = vld [vmem:[#allocation5 + $0x2148] sm:$0xff]
    %v1125 = vld [vmem:[#allocation5 + $0x2150] sm:$0xff]
    %v1126 = vld [vmem:[#allocation5 + $0x2158] sm:$0xff]
    %v1127 = vld [vmem:[#allocation5 + $0x2160] sm:$0xff]
    %v1128 = vld [vmem:[#allocation5 + $0x2168] sm:$0xff]
    %v1129 = vld [vmem:[#allocation5 + $0x2170] sm:$0xff]
    %v1130 = vld [vmem:[#allocation5 + $0x2178] sm:$0xff]
    %v1131 = vld [vmem:[#allocation5 + $0x2180] sm:$0xff]
    %v1132 = vld [vmem:[#allocation5 + $0x2188] sm:$0xff]
    %v1133 = vld [vmem:[#allocation5 + $0x2190] sm:$0xff]
    %v1134 = vld [vmem:[#allocation5 + $0x2198] sm:$0xff]
    %v1135 = vld [vmem:[#allocation5 + $0x21a0] sm:$0xff]
    %v1136 = vld [vmem:[#allocation5 + $0x21a8] sm:$0xff]
    %v1137 = vld [vmem:[#allocation5 + $0x21b0] sm:$0xff]
    %v1138 = vld [vmem:[#allocation5 + $0x21b8] sm:$0xff]
    %v1139 = vld [vmem:[#allocation5 + $0x21c0] sm:$0xff]
    %v1140 = vld [vmem:[#allocation5 + $0x21c8] sm:$0xff]
    %v1141 = vld [vmem:[#allocation5 + $0x21d0] sm:$0xff]
    %v1142 = vld [vmem:[#allocation5 + $0x21d8] sm:$0xff]
    %v1143 = vld [vmem:[#allocation5 + $0x21e0] sm:$0xff]
    %v1144 = vld [vmem:[#allocation5 + $0x21e8] sm:$0xff]
    %v1145 = vld [vmem:[#allocation5 + $0x21f0] sm:$0xff]
    %v1146 = vld [vmem:[#allocation5 + $0x21f8] sm:$0xff]
    %v1147 = vld [vmem:[#allocation5 + $0x2200] sm:$0xff]
    %v1148 = vld [vmem:[#allocation5 + $0x2208] sm:$0xff]
    %v1149 = vld [vmem:[#allocation5 + $0x2210] sm:$0xff]
    %v1150 = vld [vmem:[#allocation5 + $0x2218] sm:$0xff]
    %v1151 = vld [vmem:[#allocation5 + $0x2220] sm:$0xff]
    %v1152 = vld [vmem:[#allocation5 + $0x2228] sm:$0xff]
    %v1153 = vld [vmem:[#allocation5 + $0x2230] sm:$0xff]
    %v1154 = vld [vmem:[#allocation5 + $0x2238] sm:$0xff]
    %v1155 = vld [vmem:[#allocation5 + $0x2240] sm:$0xff]
    %v1156 = vld [vmem:[#allocation5 + $0x2248] sm:$0xff]
    %v1157 = vld [vmem:[#allocation5 + $0x2250] sm:$0xff]
    %v1158 = vld [vmem:[#allocation5 + $0x2258] sm:$0xff]
    %v1159 = vld [vmem:[#allocation5 + $0x2260] sm:$0xff]
    %v1160 = vld [vmem:[#allocation5 + $0x2268] sm:$0xff]
    %v1161 = vld [vmem:[#allocation5 + $0x2270] sm:$0xff]
    %v1162 = vld [vmem:[#allocation5 + $0x2278] sm:$0xff]
    %v1163 = vld [vmem:[#allocation5 + $0x2280] sm:$0xff]
    %v1164 = vld [vmem:[#allocation5 + $0x2288] sm:$0xff]
    %v1165 = vld [vmem:[#allocation5 + $0x2290] sm:$0xff]
    %v1166 = vld [vmem:[#allocation5 + $0x2298] sm:$0xff]
    %v1167 = vld [vmem:[#allocation5 + $0x22a0] sm:$0xff]
    %v1168 = vld [vmem:[#allocation5 + $0x22a8] sm:$0xff]
    %v1169 = vld [vmem:[#allocation5 + $0x22b0] sm:$0xff]
    %v1170 = vld [vmem:[#allocation5 + $0x22b8] sm:$0xff]
    %v1171 = vld [vmem:[#allocation5 + $0x22c0] sm:$0xff]
    %v1172 = vld [vmem:[#allocation5 + $0x22c8] sm:$0xff]
    %v1173 = vld [vmem:[#allocation5 + $0x22d0] sm:$0xff]
    %v1174 = vld [vmem:[#allocation5 + $0x22d8] sm:$0xff]
    %v1175 = vld [vmem:[#allocation5 + $0x22e0] sm:$0xff]
    %v1176 = vld [vmem:[#allocation5 + $0x22e8] sm:$0xff]
    %v1177 = vld [vmem:[#allocation5 + $0x22f0] sm:$0xff]
    %v1178 = vld [vmem:[#allocation5 + $0x22f8] sm:$0xff]
    %v1179 = vld [vmem:[#allocation5 + $0x2300] sm:$0xff]
    %v1180 = vld [vmem:[#allocation5 + $0x2308] sm:$0xff]
    %v1181 = vld [vmem:[#allocation5 + $0x2310] sm:$0xff]
    %v1182 = vld [vmem:[#allocation5 + $0x2318] sm:$0xff]
    %v1183 = vld [vmem:[#allocation5 + $0x2320] sm:$0xff]
    %v1184 = vld [vmem:[#allocation5 + $0x2328] sm:$0xff]
    %v1185 = vld [vmem:[#allocation5 + $0x2330] sm:$0xff]
    %v1186 = vld [vmem:[#allocation5 + $0x2338] sm:$0xff]
    %v1187 = vld [vmem:[#allocation5 + $0x2340] sm:$0xff]
    %v1188 = vld [vmem:[#allocation5 + $0x2348] sm:$0xff]
    %v1189 = vld [vmem:[#allocation5 + $0x2350] sm:$0xff]
    %v1190 = vld [vmem:[#allocation5 + $0x2358] sm:$0xff]
    %v1191 = vld [vmem:[#allocation5 + $0x2360] sm:$0xff]
    %v1192 = vld [vmem:[#allocation5 + $0x2368] sm:$0xff]
    %v1193 = vld [vmem:[#allocation5 + $0x2370] sm:$0xff]
    %v1194 = vld [vmem:[#allocation5 + $0x2378] sm:$0xff]
    %v1195 = vld [vmem:[#allocation5 + $0x2380] sm:$0xff]
    %v1196 = vld [vmem:[#allocation5 + $0x2388] sm:$0xff]
    %v1197 = vld [vmem:[#allocation5 + $0x2390] sm:$0xff]
    %v1198 = vld [vmem:[#allocation5 + $0x2398] sm:$0xff]
    %v1199 = vld [vmem:[#allocation5 + $0x23a0] sm:$0xff]
    %v1200 = vld [vmem:[#allocation5 + $0x23a8] sm:$0xff]
    %v1201 = vld [vmem:[#allocation5 + $0x23b0] sm:$0xff]
    %v1202 = vld [vmem:[#allocation5 + $0x23b8] sm:$0xff]
    %v1203 = vld [vmem:[#allocation5 + $0x23c0] sm:$0xff]
    %v1204 = vld [vmem:[#allocation5 + $0x23c8] sm:$0xff]
    %v1205 = vld [vmem:[#allocation5 + $0x23d0] sm:$0xff]
    %v1206 = vld [vmem:[#allocation5 + $0x23d8] sm:$0xff]
    %v1207 = vld [vmem:[#allocation5 + $0x23e0] sm:$0xff]
    %v1208 = vld [vmem:[#allocation5 + $0x23e8] sm:$0xff]
    %v1209 = vld [vmem:[#allocation5 + $0x23f0] sm:$0xff]
    %v1210 = vld [vmem:[#allocation5 + $0x23f8] sm:$0xff]
    %v1211 = vld [vmem:[#allocation5 + $0x2400] sm:$0xff]
    %v1212 = vld [vmem:[#allocation5 + $0x2408] sm:$0xff]
    %v1213 = vld [vmem:[#allocation5 + $0x2410] sm:$0xff]
    %v1214 = vld [vmem:[#allocation5 + $0x2418] sm:$0xff]
    %v1215 = vld [vmem:[#allocation5 + $0x2420] sm:$0xff]
    %v1216 = vld [vmem:[#allocation5 + $0x2428] sm:$0xff]
    %v1217 = vld [vmem:[#allocation5 + $0x2430] sm:$0xff]
    %v1218 = vld [vmem:[#allocation5 + $0x2438] sm:$0xff]
    %v1219 = vld [vmem:[#allocation5 + $0x2440] sm:$0xff]
    %v1220 = vld [vmem:[#allocation5 + $0x2448] sm:$0xff]
    %v1221 = vld [vmem:[#allocation5 + $0x2450] sm:$0xff]
    %v1222 = vld [vmem:[#allocation5 + $0x2458] sm:$0xff]
    %v1223 = vld [vmem:[#allocation5 + $0x2460] sm:$0xff]
    %v1224 = vld [vmem:[#allocation5 + $0x2468] sm:$0xff]
    %v1225 = vld [vmem:[#allocation5 + $0x2470] sm:$0xff]
    %v1226 = vld [vmem:[#allocation5 + $0x2478] sm:$0xff]
    %v1227 = vld [vmem:[#allocation5 + $0x2480] sm:$0xff]
    %v1228 = vld [vmem:[#allocation5 + $0x2488] sm:$0xff]
    %v1229 = vld [vmem:[#allocation5 + $0x2490] sm:$0xff]
    %v1230 = vld [vmem:[#allocation5 + $0x2498] sm:$0xff]
    %v1231 = vld [vmem:[#allocation5 + $0x24a0] sm:$0xff]
    %v1232 = vld [vmem:[#allocation5 + $0x24a8] sm:$0xff]
    %v1233 = vld [vmem:[#allocation5 + $0x24b0] sm:$0xff]
    %v1234 = vld [vmem:[#allocation5 + $0x24b8] sm:$0xff]
    %v1235 = vld [vmem:[#allocation5 + $0x24c0] sm:$0xff]
    %v1236 = vld [vmem:[#allocation5 + $0x24c8] sm:$0xff]
    %v1237 = vld [vmem:[#allocation5 + $0x24d0] sm:$0xff]
    %v1238 = vld [vmem:[#allocation5 + $0x24d8] sm:$0xff]
    %v1239 = vld [vmem:[#allocation5 + $0x24e0] sm:$0xff]
    %v1240 = vld [vmem:[#allocation5 + $0x24e8] sm:$0xff]
    %v1241 = vld [vmem:[#allocation5 + $0x24f0] sm:$0xff]
    %v1242 = vld [vmem:[#allocation5 + $0x24f8] sm:$0xff]
    %v1243 = vld [vmem:[#allocation5 + $0x2500] sm:$0xff]
    %v1244 = vld [vmem:[#allocation5 + $0x2508] sm:$0xff]
    %v1245 = vld [vmem:[#allocation5 + $0x2510] sm:$0xff]
    %v1246 = vld [vmem:[#allocation5 + $0x2518] sm:$0xff]
    %v1247 = vld [vmem:[#allocation5 + $0x2520] sm:$0xff]
    %v1248 = vld [vmem:[#allocation5 + $0x2528] sm:$0xff]
    %v1249 = vld [vmem:[#allocation5 + $0x2530] sm:$0xff]
    %v1250 = vld [vmem:[#allocation5 + $0x2538] sm:$0xff]
    %v1251 = vld [vmem:[#allocation5 + $0x2540] sm:$0xff]
    %v1252 = vld [vmem:[#allocation5 + $0x2548] sm:$0xff]
    %v1253 = vld [vmem:[#allocation5 + $0x2550] sm:$0xff]
    %v1254 = vld [vmem:[#allocation5 + $0x2558] sm:$0xff]
    %v1255 = vld [vmem:[#allocation5 + $0x2560] sm:$0xff]
    %v1256 = vld [vmem:[#allocation5 + $0x2568] sm:$0xff]
    %v1257 = vld [vmem:[#allocation5 + $0x2570] sm:$0xff]
    %v1258 = vld [vmem:[#allocation5 + $0x2578] sm:$0xff]
    %v1259 = vld [vmem:[#allocation5 + $0x2580] sm:$0xff]
    %v1260 = vld [vmem:[#allocation5 + $0x2588] sm:$0xff]
    %v1261 = vld [vmem:[#allocation5 + $0x2590] sm:$0xff]
    %v1262 = vld [vmem:[#allocation5 + $0x2598] sm:$0xff]
    %v1263 = vld [vmem:[#allocation5 + $0x25a0] sm:$0xff]
    %v1264 = vld [vmem:[#allocation5 + $0x25a8] sm:$0xff]
    %v1265 = vld [vmem:[#allocation5 + $0x25b0] sm:$0xff]
    %v1266 = vld [vmem:[#allocation5 + $0x25b8] sm:$0xff]
    %v1267 = vld [vmem:[#allocation5 + $0x25c0] sm:$0xff]
    %v1268 = vld [vmem:[#allocation5 + $0x25c8] sm:$0xff]
    %v1269 = vld [vmem:[#allocation5 + $0x25d0] sm:$0xff]
    %v1270 = vld [vmem:[#allocation5 + $0x25d8] sm:$0xff]
    %v1271 = vld [vmem:[#allocation5 + $0x25e0] sm:$0xff]
    %v1272 = vld [vmem:[#allocation5 + $0x25e8] sm:$0xff]
    %v1273 = vld [vmem:[#allocation5 + $0x25f0] sm:$0xff]
    %v1274 = vld [vmem:[#allocation5 + $0x25f8] sm:$0xff]
    %v1275 = vld [vmem:[#allocation5 + $0x2600] sm:$0xff]
    %v1276 = vld [vmem:[#allocation5 + $0x2608] sm:$0xff]
    %v1277 = vld [vmem:[#allocation5 + $0x2610] sm:$0xff]
    %v1278 = vld [vmem:[#allocation5 + $0x2618] sm:$0xff]
    %v1279 = vld [vmem:[#allocation5 + $0x2620] sm:$0xff]
    %v1280 = vld [vmem:[#allocation5 + $0x2628] sm:$0xff]
    %v1281 = vld [vmem:[#allocation5 + $0x2630] sm:$0xff]
    %v1282 = vld [vmem:[#allocation5 + $0x2638] sm:$0xff]
    %v1283 = vld [vmem:[#allocation5 + $0x2640] sm:$0xff]
    %v1284 = vld [vmem:[#allocation5 + $0x2648] sm:$0xff]
    %v1285 = vld [vmem:[#allocation5 + $0x2650] sm:$0xff]
    %v1286 = vld [vmem:[#allocation5 + $0x2658] sm:$0xff]
    %v1287 = vld [vmem:[#allocation5 + $0x2660] sm:$0xff]
    %v1288 = vld [vmem:[#allocation5 + $0x2668] sm:$0xff]
    %v1289 = vld [vmem:[#allocation5 + $0x2670] sm:$0xff]
    %v1290 = vld [vmem:[#allocation5 + $0x2678] sm:$0xff]
    %v1291 = vld [vmem:[#allocation5 + $0x2680] sm:$0xff]
    %v1292 = vld [vmem:[#allocation5 + $0x2688] sm:$0xff]
    %v1293 = vld [vmem:[#allocation5 + $0x2690] sm:$0xff]
    %v1294 = vld [vmem:[#allocation5 + $0x2698] sm:$0xff]
    %v1295 = vld [vmem:[#allocation5 + $0x26a0] sm:$0xff]
    %v1296 = vld [vmem:[#allocation5 + $0x26a8] sm:$0xff]
    %v1297 = vld [vmem:[#allocation5 + $0x26b0] sm:$0xff]
    %v1298 = vld [vmem:[#allocation5 + $0x26b8] sm:$0xff]
    %v1299 = vld [vmem:[#allocation5 + $0x26c0] sm:$0xff]
    %v1300 = vld [vmem:[#allocation5 + $0x26c8] sm:$0xff]
    %v1301 = vld [vmem:[#allocation5 + $0x26d0] sm:$0xff]
    %v1302 = vld [vmem:[#allocation5 + $0x26d8] sm:$0xff]
    %v1303 = vld [vmem:[#allocation5 + $0x26e0] sm:$0xff]
    %v1304 = vld [vmem:[#allocation5 + $0x26e8] sm:$0xff]
    %v1305 = vld [vmem:[#allocation5 + $0x26f0] sm:$0xff]
    %v1306 = vld [vmem:[#allocation5 + $0x26f8] sm:$0xff]
    %v1307 = vld [vmem:[#allocation5 + $0x2700] sm:$0xff]
    %v1308 = vld [vmem:[#allocation5 + $0x2708] sm:$0xff]
    %v1309 = vld [vmem:[#allocation5 + $0x2710] sm:$0xff]
    %v1310 = vld [vmem:[#allocation5 + $0x2718] sm:$0xff]
    %v1311 = vld [vmem:[#allocation5 + $0x2720] sm:$0xff]
    %v1312 = vld [vmem:[#allocation5 + $0x2728] sm:$0xff]
    %v1313 = vld [vmem:[#allocation5 + $0x2730] sm:$0xff]
    %v1314 = vld [vmem:[#allocation5 + $0x2738] sm:$0xff]
    %v1315 = vld [vmem:[#allocation5 + $0x2740] sm:$0xff]
    %v1316 = vld [vmem:[#allocation5 + $0x2748] sm:$0xff]
    %v1317 = vld [vmem:[#allocation5 + $0x2750] sm:$0xff]
    %v1318 = vld [vmem:[#allocation5 + $0x2758] sm:$0xff]
    %v1319 = vld [vmem:[#allocation5 + $0x2760] sm:$0xff]
    %v1320 = vld [vmem:[#allocation5 + $0x2768] sm:$0xff]
    %v1321 = vld [vmem:[#allocation5 + $0x2770] sm:$0xff]
    %v1322 = vld [vmem:[#allocation5 + $0x2778] sm:$0xff]
    %v1323 = vld [vmem:[#allocation5 + $0x2780] sm:$0xff]
    %v1324 = vld [vmem:[#allocation5 + $0x2788] sm:$0xff]
    %v1325 = vld [vmem:[#allocation5 + $0x2790] sm:$0xff]
    %v1326 = vld [vmem:[#allocation5 + $0x2798] sm:$0xff]
    %v1327 = vld [vmem:[#allocation5 + $0x27a0] sm:$0xff]
    %v1328 = vld [vmem:[#allocation5 + $0x27a8] sm:$0xff]
    %v1329 = vld [vmem:[#allocation5 + $0x27b0] sm:$0xff]
    %v1330 = vld [vmem:[#allocation5 + $0x27b8] sm:$0xff]
    %v1331 = vld [vmem:[#allocation5 + $0x27c0] sm:$0xff]
    %v1332 = vld [vmem:[#allocation5 + $0x27c8] sm:$0xff]
    %v1333 = vld [vmem:[#allocation5 + $0x27d0] sm:$0xff]
    %v1334 = vld [vmem:[#allocation5 + $0x27d8] sm:$0xff]
    %v1335 = vld [vmem:[#allocation5 + $0x27e0] sm:$0xff]
    %v1336 = vld [vmem:[#allocation5 + $0x27e8] sm:$0xff]
    %v1337 = vld [vmem:[#allocation5 + $0x27f0] sm:$0xff]
    %v1338 = vld [vmem:[#allocation5 + $0x27f8] sm:$0xff]
    %v1339 = vld [vmem:[#allocation5 + $0x2800] sm:$0xff]
    %v1340 = vld [vmem:[#allocation5 + $0x2808] sm:$0xff]
    %v1341 = vld [vmem:[#allocation5 + $0x2810] sm:$0xff]
    %v1342 = vld [vmem:[#allocation5 + $0x2818] sm:$0xff]
    %v1343 = vld [vmem:[#allocation5 + $0x2820] sm:$0xff]
    %v1344 = vld [vmem:[#allocation5 + $0x2828] sm:$0xff]
    %v1345 = vld [vmem:[#allocation5 + $0x2830] sm:$0xff]
    %v1346 = vld [vmem:[#allocation5 + $0x2838] sm:$0xff]
    %v1347 = vld [vmem:[#allocation5 + $0x2840] sm:$0xff]
    %v1348 = vld [vmem:[#allocation5 + $0x2848] sm:$0xff]
    %v1349 = vld [vmem:[#allocation5 + $0x2850] sm:$0xff]
    %v1350 = vld [vmem:[#allocation5 + $0x2858] sm:$0xff]
    %v1351 = vld [vmem:[#allocation5 + $0x2860] sm:$0xff]
    %v1352 = vld [vmem:[#allocation5 + $0x2868] sm:$0xff]
    %v1353 = vld [vmem:[#allocation5 + $0x2870] sm:$0xff]
    %v1354 = vld [vmem:[#allocation5 + $0x2878] sm:$0xff]
    %v1355 = vld [vmem:[#allocation5 + $0x2880] sm:$0xff]
    %v1356 = vld [vmem:[#allocation5 + $0x2888] sm:$0xff]
    %v1357 = vld [vmem:[#allocation5 + $0x2890] sm:$0xff]
    %v1358 = vld [vmem:[#allocation5 + $0x2898] sm:$0xff]
    %v1359 = vld [vmem:[#allocation5 + $0x28a0] sm:$0xff]
    %v1360 = vld [vmem:[#allocation5 + $0x28a8] sm:$0xff]
    %v1361 = vld [vmem:[#allocation5 + $0x28b0] sm:$0xff]
    %v1362 = vld [vmem:[#allocation5 + $0x28b8] sm:$0xff]
    %v1363 = vld [vmem:[#allocation5 + $0x28c0] sm:$0xff]
    %v1364 = vld [vmem:[#allocation5 + $0x28c8] sm:$0xff]
    %v1365 = vld [vmem:[#allocation5 + $0x28d0] sm:$0xff]
    %v1366 = vld [vmem:[#allocation5 + $0x28d8] sm:$0xff]
    %v1367 = vld [vmem:[#allocation5 + $0x28e0] sm:$0xff]
    %v1368 = vld [vmem:[#allocation5 + $0x28e8] sm:$0xff]
    %v1369 = vld [vmem:[#allocation5 + $0x28f0] sm:$0xff]
    %v1370 = vld [vmem:[#allocation5 + $0x28f8] sm:$0xff]
    %v1371 = vld [vmem:[#allocation5 + $0x2900] sm:$0xff]
    %v1372 = vld [vmem:[#allocation5 + $0x2908] sm:$0xff]
    %v1373 = vld [vmem:[#allocation5 + $0x2910] sm:$0xff]
    %v1374 = vld [vmem:[#allocation5 + $0x2918] sm:$0xff]
    %v1375 = vld [vmem:[#allocation5 + $0x2920] sm:$0xff]
    %v1376 = vld [vmem:[#allocation5 + $0x2928] sm:$0xff]
    %v1377 = vld [vmem:[#allocation5 + $0x2930] sm:$0xff]
    %v1378 = vld [vmem:[#allocation5 + $0x2938] sm:$0xff]
    %v1379 = vld [vmem:[#allocation5 + $0x2940] sm:$0xff]
    %v1380 = vld [vmem:[#allocation5 + $0x2948] sm:$0xff]
    %v1381 = vld [vmem:[#allocation5 + $0x2950] sm:$0xff]
    %v1382 = vld [vmem:[#allocation5 + $0x2958] sm:$0xff]
    %v1383 = vld [vmem:[#allocation5 + $0x2960] sm:$0xff]
    %v1384 = vld [vmem:[#allocation5 + $0x2968] sm:$0xff]
    %v1385 = vld [vmem:[#allocation5 + $0x2970] sm:$0xff]
    %v1386 = vld [vmem:[#allocation5 + $0x2978] sm:$0xff]
    %v1387 = vld [vmem:[#allocation5 + $0x2980] sm:$0xff]
    %v1388 = vld [vmem:[#allocation5 + $0x2988] sm:$0xff]
    %v1389 = vld [vmem:[#allocation5 + $0x2990] sm:$0xff]
    %v1390 = vld [vmem:[#allocation5 + $0x2998] sm:$0xff]
    %v1391 = vld [vmem:[#allocation5 + $0x29a0] sm:$0xff]
    %v1392 = vld [vmem:[#allocation5 + $0x29a8] sm:$0xff]
    %v1393 = vld [vmem:[#allocation5 + $0x29b0] sm:$0xff]
    %v1394 = vld [vmem:[#allocation5 + $0x29b8] sm:$0xff]
    %v1395 = vld [vmem:[#allocation5 + $0x29c0] sm:$0xff]
    %v1396 = vld [vmem:[#allocation5 + $0x29c8] sm:$0xff]
    %v1397 = vld [vmem:[#allocation5 + $0x29d0] sm:$0xff]
    %v1398 = vld [vmem:[#allocation5 + $0x29d8] sm:$0xff]
    %v1399 = vld [vmem:[#allocation5 + $0x29e0] sm:$0xff]
    %v1400 = vld [vmem:[#allocation5 + $0x29e8] sm:$0xff]
    %v1401 = vld [vmem:[#allocation5 + $0x29f0] sm:$0xff]
    %v1402 = vld [vmem:[#allocation5 + $0x29f8] sm:$0xff]
    %v1403 = vld [vmem:[#allocation5 + $0x2a00] sm:$0xff]
    %v1404 = vld [vmem:[#allocation5 + $0x2a08] sm:$0xff]
    %v1405 = vld [vmem:[#allocation5 + $0x2a10] sm:$0xff]
    %v1406 = vld [vmem:[#allocation5 + $0x2a18] sm:$0xff]
    %v1407 = vld [vmem:[#allocation5 + $0x2a20] sm:$0xff]
    %v1408 = vld [vmem:[#allocation5 + $0x2a28] sm:$0xff]
    %v1409 = vld [vmem:[#allocation5 + $0x2a30] sm:$0xff]
    %v1410 = vld [vmem:[#allocation5 + $0x2a38] sm:$0xff]
    %v1411 = vld [vmem:[#allocation5 + $0x2a40] sm:$0xff]
    %v1412 = vld [vmem:[#allocation5 + $0x2a48] sm:$0xff]
    %v1413 = vld [vmem:[#allocation5 + $0x2a50] sm:$0xff]
    %v1414 = vld [vmem:[#allocation5 + $0x2a58] sm:$0xff]
    %v1415 = vld [vmem:[#allocation5 + $0x2a60] sm:$0xff]
    %v1416 = vld [vmem:[#allocation5 + $0x2a68] sm:$0xff]
    %v1417 = vld [vmem:[#allocation5 + $0x2a70] sm:$0xff]
    %v1418 = vld [vmem:[#allocation5 + $0x2a78] sm:$0xff]
    %v1419 = vld [vmem:[#allocation5 + $0x2a80] sm:$0xff]
    %v1420 = vld [vmem:[#allocation5 + $0x2a88] sm:$0xff]
    %v1421 = vld [vmem:[#allocation5 + $0x2a90] sm:$0xff]
    %v1422 = vld [vmem:[#allocation5 + $0x2a98] sm:$0xff]
    %v1423 = vld [vmem:[#allocation5 + $0x2aa0] sm:$0xff]
    %v1424 = vld [vmem:[#allocation5 + $0x2aa8] sm:$0xff]
    %v1425 = vld [vmem:[#allocation5 + $0x2ab0] sm:$0xff]
    %v1426 = vld [vmem:[#allocation5 + $0x2ab8] sm:$0xff]
    %v1427 = vld [vmem:[#allocation5 + $0x2ac0] sm:$0xff]
    %v1428 = vld [vmem:[#allocation5 + $0x2ac8] sm:$0xff]
    %v1429 = vld [vmem:[#allocation5 + $0x2ad0] sm:$0xff]
    %v1430 = vld [vmem:[#allocation5 + $0x2ad8] sm:$0xff]
    %v1431 = vld [vmem:[#allocation5 + $0x2ae0] sm:$0xff]
    %v1432 = vld [vmem:[#allocation5 + $0x2ae8] sm:$0xff]
    %v1433 = vld [vmem:[#allocation5 + $0x2af0] sm:$0xff]
    %v1434 = vld [vmem:[#allocation5 + $0x2af8] sm:$0xff]
    %v1435 = vld [vmem:[#allocation5 + $0x2b00] sm:$0xff]
    %v1436 = vld [vmem:[#allocation5 + $0x2b08] sm:$0xff]
    %v1437 = vld [vmem:[#allocation5 + $0x2b10] sm:$0xff]
    %v1438 = vld [vmem:[#allocation5 + $0x2b18] sm:$0xff]
    %v1439 = vld [vmem:[#allocation5 + $0x2b20] sm:$0xff]
    %v1440 = vld [vmem:[#allocation5 + $0x2b28] sm:$0xff]
    %v1441 = vld [vmem:[#allocation5 + $0x2b30] sm:$0xff]
    %v1442 = vld [vmem:[#allocation5 + $0x2b38] sm:$0xff]
    %v1443 = vld [vmem:[#allocation5 + $0x2b40] sm:$0xff]
    %v1444 = vld [vmem:[#allocation5 + $0x2b48] sm:$0xff]
    %v1445 = vld [vmem:[#allocation5 + $0x2b50] sm:$0xff]
    %v1446 = vld [vmem:[#allocation5 + $0x2b58] sm:$0xff]
    %v1447 = vld [vmem:[#allocation5 + $0x2b60] sm:$0xff]
    %v1448 = vld [vmem:[#allocation5 + $0x2b68] sm:$0xff]
    %v1449 = vld [vmem:[#allocation5 + $0x2b70] sm:$0xff]
    %v1450 = vld [vmem:[#allocation5 + $0x2b78] sm:$0xff]
    %v1451 = vld [vmem:[#allocation5 + $0x2b80] sm:$0xff]
    %v1452 = vld [vmem:[#allocation5 + $0x2b88] sm:$0xff]
    %v1453 = vld [vmem:[#allocation5 + $0x2b90] sm:$0xff]
    %v1454 = vld [vmem:[#allocation5 + $0x2b98] sm:$0xff]
    %v1455 = vld [vmem:[#allocation5 + $0x2ba0] sm:$0xff]
    %v1456 = vld [vmem:[#allocation5 + $0x2ba8] sm:$0xff]
    %v1457 = vld [vmem:[#allocation5 + $0x2bb0] sm:$0xff]
    %v1458 = vld [vmem:[#allocation5 + $0x2bb8] sm:$0xff]
    %v1459 = vld [vmem:[#allocation5 + $0x2bc0] sm:$0xff]
    %v1460 = vld [vmem:[#allocation5 + $0x2bc8] sm:$0xff]
    %v1461 = vld [vmem:[#allocation5 + $0x2bd0] sm:$0xff]
    %v1462 = vld [vmem:[#allocation5 + $0x2bd8] sm:$0xff]
    %v1463 = vld [vmem:[#allocation5 + $0x2be0] sm:$0xff]
    %v1464 = vld [vmem:[#allocation5 + $0x2be8] sm:$0xff]
    %v1465 = vld [vmem:[#allocation5 + $0x2bf0] sm:$0xff]
    %v1466 = vld [vmem:[#allocation5 + $0x2bf8] sm:$0xff]
    %v1467 = vld [vmem:[#allocation5 + $0x2c00] sm:$0xff]
    %v1468 = vld [vmem:[#allocation5 + $0x2c08] sm:$0xff]
    %v1469 = vld [vmem:[#allocation5 + $0x2c10] sm:$0xff]
    %v1470 = vld [vmem:[#allocation5 + $0x2c18] sm:$0xff]
    %v1471 = vld [vmem:[#allocation5 + $0x2c20] sm:$0xff]
    %v1472 = vld [vmem:[#allocation5 + $0x2c28] sm:$0xff]
    %v1473 = vld [vmem:[#allocation5 + $0x2c30] sm:$0xff]
    %v1474 = vld [vmem:[#allocation5 + $0x2c38] sm:$0xff]
    %v1475 = vld [vmem:[#allocation5 + $0x2c40] sm:$0xff]
    %v1476 = vld [vmem:[#allocation5 + $0x2c48] sm:$0xff]
    %v1477 = vld [vmem:[#allocation5 + $0x2c50] sm:$0xff]
    %v1478 = vld [vmem:[#allocation5 + $0x2c58] sm:$0xff]
    %v1479 = vld [vmem:[#allocation5 + $0x2c60] sm:$0xff]
    %v1480 = vld [vmem:[#allocation5 + $0x2c68] sm:$0xff]
    %v1481 = vld [vmem:[#allocation5 + $0x2c70] sm:$0xff]
    %v1482 = vld [vmem:[#allocation5 + $0x2c78] sm:$0xff]
    %v1483 = vld [vmem:[#allocation5 + $0x2c80] sm:$0xff]
    %v1484 = vld [vmem:[#allocation5 + $0x2c88] sm:$0xff]
    %v1485 = vld [vmem:[#allocation5 + $0x2c90] sm:$0xff]
    %v1486 = vld [vmem:[#allocation5 + $0x2c98] sm:$0xff]
    %v1487 = vld [vmem:[#allocation5 + $0x2ca0] sm:$0xff]
    %v1488 = vld [vmem:[#allocation5 + $0x2ca8] sm:$0xff]
    %v1489 = vld [vmem:[#allocation5 + $0x2cb0] sm:$0xff]
    %v1490 = vld [vmem:[#allocation5 + $0x2cb8] sm:$0xff]
    %v1491 = vld [vmem:[#allocation5 + $0x2cc0] sm:$0xff]
    %v1492 = vld [vmem:[#allocation5 + $0x2cc8] sm:$0xff]
    %v1493 = vld [vmem:[#allocation5 + $0x2cd0] sm:$0xff]
    %v1494 = vld [vmem:[#allocation5 + $0x2cd8] sm:$0xff]
    %v1495 = vld [vmem:[#allocation5 + $0x2ce0] sm:$0xff]
    %v1496 = vld [vmem:[#allocation5 + $0x2ce8] sm:$0xff]
    %v1497 = vld [vmem:[#allocation5 + $0x2cf0] sm:$0xff]
    %v1498 = vld [vmem:[#allocation5 + $0x2cf8] sm:$0xff]
    %v1499 = vld [vmem:[#allocation5 + $0x2d00] sm:$0xff]
    %v1500 = vld [vmem:[#allocation5 + $0x2d08] sm:$0xff]
    %v1501 = vld [vmem:[#allocation5 + $0x2d10] sm:$0xff]
    %v1502 = vld [vmem:[#allocation5 + $0x2d18] sm:$0xff]
    %v1503 = vld [vmem:[#allocation5 + $0x2d20] sm:$0xff]
    %v1504 = vld [vmem:[#allocation5 + $0x2d28] sm:$0xff]
    %v1505 = vld [vmem:[#allocation5 + $0x2d30] sm:$0xff]
    %v1506 = vld [vmem:[#allocation5 + $0x2d38] sm:$0xff]
    %v1507 = vld [vmem:[#allocation5 + $0x2d40] sm:$0xff]
    %v1508 = vld [vmem:[#allocation5 + $0x2d48] sm:$0xff]
    %v1509 = vld [vmem:[#allocation5 + $0x2d50] sm:$0xff]
    %v1510 = vld [vmem:[#allocation5 + $0x2d58] sm:$0xff]
    %v1511 = vld [vmem:[#allocation5 + $0x2d60] sm:$0xff]
    %v1512 = vld [vmem:[#allocation5 + $0x2d68] sm:$0xff]
    %v1513 = vld [vmem:[#allocation5 + $0x2d70] sm:$0xff]
    %v1514 = vld [vmem:[#allocation5 + $0x2d78] sm:$0xff]
    %v1515 = vld [vmem:[#allocation5 + $0x2d80] sm:$0xff]
    %v1516 = vld [vmem:[#allocation5 + $0x2d88] sm:$0xff]
    %v1517 = vld [vmem:[#allocation5 + $0x2d90] sm:$0xff]
    %v1518 = vld [vmem:[#allocation5 + $0x2d98] sm:$0xff]
    %v1519 = vld [vmem:[#allocation5 + $0x2da0] sm:$0xff]
    %v1520 = vld [vmem:[#allocation5 + $0x2da8] sm:$0xff]
    %v1521 = vld [vmem:[#allocation5 + $0x2db0] sm:$0xff]
    %v1522 = vld [vmem:[#allocation5 + $0x2db8] sm:$0xff]
    %v1523 = vld [vmem:[#allocation5 + $0x2dc0] sm:$0xff]
    %v1524 = vld [vmem:[#allocation5 + $0x2dc8] sm:$0xff]
    %v1525 = vld [vmem:[#allocation5 + $0x2dd0] sm:$0xff]
    %v1526 = vld [vmem:[#allocation5 + $0x2dd8] sm:$0xff]
    %v1527 = vld [vmem:[#allocation5 + $0x2de0] sm:$0xff]
    %v1528 = vld [vmem:[#allocation5 + $0x2de8] sm:$0xff]
    %v1529 = vld [vmem:[#allocation5 + $0x2df0] sm:$0xff]
    %v1530 = vld [vmem:[#allocation5 + $0x2df8] sm:$0xff]
    %v1531 = vld [vmem:[#allocation5 + $0x2e00] sm:$0xff]
    %v1532 = vld [vmem:[#allocation5 + $0x2e08] sm:$0xff]
    %v1533 = vld [vmem:[#allocation5 + $0x2e10] sm:$0xff]
    %v1534 = vld [vmem:[#allocation5 + $0x2e18] sm:$0xff]
    %v1535 = vld [vmem:[#allocation5 + $0x2e20] sm:$0xff]
    %v1536 = vld [vmem:[#allocation5 + $0x2e28] sm:$0xff]
    %v1537 = vld [vmem:[#allocation5 + $0x2e30] sm:$0xff]
    %v1538 = vld [vmem:[#allocation5 + $0x2e38] sm:$0xff]
    %v1539 = vld [vmem:[#allocation5 + $0x2e40] sm:$0xff]
    %v1540 = vld [vmem:[#allocation5 + $0x2e48] sm:$0xff]
    %v1541 = vld [vmem:[#allocation5 + $0x2e50] sm:$0xff]
    %v1542 = vld [vmem:[#allocation5 + $0x2e58] sm:$0xff]
    %v1543 = vld [vmem:[#allocation5 + $0x2e60] sm:$0xff]
    %v1544 = vld [vmem:[#allocation5 + $0x2e68] sm:$0xff]
    %v1545 = vld [vmem:[#allocation5 + $0x2e70] sm:$0xff]
    %v1546 = vld [vmem:[#allocation5 + $0x2e78] sm:$0xff]
    %v1547 = vld [vmem:[#allocation5 + $0x2e80] sm:$0xff]
    %v1548 = vld [vmem:[#allocation5 + $0x2e88] sm:$0xff]
    %v1549 = vld [vmem:[#allocation5 + $0x2e90] sm:$0xff]
    %v1550 = vld [vmem:[#allocation5 + $0x2e98] sm:$0xff]
    %v1551 = vld [vmem:[#allocation5 + $0x2ea0] sm:$0xff]
    %v1552 = vld [vmem:[#allocation5 + $0x2ea8] sm:$0xff]
    %v1553 = vld [vmem:[#allocation5 + $0x2eb0] sm:$0xff]
    %v1554 = vld [vmem:[#allocation5 + $0x2eb8] sm:$0xff]
    %v1555 = vld [vmem:[#allocation5 + $0x2ec0] sm:$0xff]
    %v1556 = vld [vmem:[#allocation5 + $0x2ec8] sm:$0xff]
    %v1557 = vld [vmem:[#allocation5 + $0x2ed0] sm:$0xff]
    %v1558 = vld [vmem:[#allocation5 + $0x2ed8] sm:$0xff]
    %v1559 = vld [vmem:[#allocation5 + $0x2ee0] sm:$0xff]
    %v1560 = vld [vmem:[#allocation5 + $0x2ee8] sm:$0xff]
    %v1561 = vld [vmem:[#allocation5 + $0x2ef0] sm:$0xff]
    %v1562 = vld [vmem:[#allocation5 + $0x2ef8] sm:$0xff]
    %v1563 = vld [vmem:[#allocation5 + $0x2f00] sm:$0xff]
    %v1564 = vld [vmem:[#allocation5 + $0x2f08] sm:$0xff]
    %v1565 = vld [vmem:[#allocation5 + $0x2f10] sm:$0xff]
    %v1566 = vld [vmem:[#allocation5 + $0x2f18] sm:$0xff]
    %v1567 = vld [vmem:[#allocation5 + $0x2f20] sm:$0xff]
    %v1568 = vld [vmem:[#allocation5 + $0x2f28] sm:$0xff]
    %v1569 = vld [vmem:[#allocation5 + $0x2f30] sm:$0xff]
    %v1570 = vld [vmem:[#allocation5 + $0x2f38] sm:$0xff]
    %v1571 = vld [vmem:[#allocation5 + $0x2f40] sm:$0xff]
    %v1572 = vld [vmem:[#allocation5 + $0x2f48] sm:$0xff]
    %v1573 = vld [vmem:[#allocation5 + $0x2f50] sm:$0xff]
    %v1574 = vld [vmem:[#allocation5 + $0x2f58] sm:$0xff]
    %v1575 = vld [vmem:[#allocation5 + $0x2f60] sm:$0xff]
    %v1576 = vld [vmem:[#allocation5 + $0x2f68] sm:$0xff]
    %v1577 = vld [vmem:[#allocation5 + $0x2f70] sm:$0xff]
    %v1578 = vld [vmem:[#allocation5 + $0x2f78] sm:$0xff]
    %v1579 = vld [vmem:[#allocation5 + $0x2f80] sm:$0xff]
    %v1580 = vld [vmem:[#allocation5 + $0x2f88] sm:$0xff]
    %v1581 = vld [vmem:[#allocation5 + $0x2f90] sm:$0xff]
    %v1582 = vld [vmem:[#allocation5 + $0x2f98] sm:$0xff]
    %v1583 = vld [vmem:[#allocation5 + $0x2fa0] sm:$0xff]
    %v1584 = vld [vmem:[#allocation5 + $0x2fa8] sm:$0xff]
    %v1585 = vld [vmem:[#allocation5 + $0x2fb0] sm:$0xff]
    %v1586 = vld [vmem:[#allocation5 + $0x2fb8] sm:$0xff]
    %v1587 = vld [vmem:[#allocation5 + $0x2fc0] sm:$0xff]
    %v1588 = vld [vmem:[#allocation5 + $0x2fc8] sm:$0xff]
    %v1589 = vld [vmem:[#allocation5 + $0x2fd0] sm:$0xff]
    %v1590 = vld [vmem:[#allocation5 + $0x2fd8] sm:$0xff]
    %v1591 = vld [vmem:[#allocation5 + $0x2fe0] sm:$0xff]
    %v1592 = vld [vmem:[#allocation5 + $0x2fe8] sm:$0xff]
    %v1593 = vld [vmem:[#allocation5 + $0x2ff0] sm:$0xff]
    %v1594 = vld [vmem:[#allocation5 + $0x2ff8] sm:$0xff]
    %v1595 = vld [vmem:[#allocation5 + $0x3000] sm:$0xff]
    %v1596 = vld [vmem:[#allocation5 + $0x3008] sm:$0xff]
    %v1597 = vld [vmem:[#allocation5 + $0x3010] sm:$0xff]
    %v1598 = vld [vmem:[#allocation5 + $0x3018] sm:$0xff]
    %v1599 = vld [vmem:[#allocation5 + $0x3020] sm:$0xff]
    %v1600 = vld [vmem:[#allocation5 + $0x3028] sm:$0xff]
    %v1601 = vld [vmem:[#allocation5 + $0x3030] sm:$0xff]
    %v1602 = vld [vmem:[#allocation5 + $0x3038] sm:$0xff]
    %v1603 = vld [vmem:[#allocation5 + $0x3040] sm:$0xff]
    %v1604 = vld [vmem:[#allocation5 + $0x3048] sm:$0xff]
    %v1605 = vld [vmem:[#allocation5 + $0x3050] sm:$0xff]
    %v1606 = vld [vmem:[#allocation5 + $0x3058] sm:$0xff]
    %v1607 = vld [vmem:[#allocation5 + $0x3060] sm:$0xff]
    %v1608 = vld [vmem:[#allocation5 + $0x3068] sm:$0xff]
    %v1609 = vld [vmem:[#allocation5 + $0x3070] sm:$0xff]
    %v1610 = vld [vmem:[#allocation5 + $0x3078] sm:$0xff]
    %v1611 = vld [vmem:[#allocation5 + $0x3080] sm:$0xff]
    %v1612 = vld [vmem:[#allocation5 + $0x3088] sm:$0xff]
    %v1613 = vld [vmem:[#allocation5 + $0x3090] sm:$0xff]
    %v1614 = vld [vmem:[#allocation5 + $0x3098] sm:$0xff]
    %v1615 = vld [vmem:[#allocation5 + $0x30a0] sm:$0xff]
    %v1616 = vld [vmem:[#allocation5 + $0x30a8] sm:$0xff]
    %v1617 = vld [vmem:[#allocation5 + $0x30b0] sm:$0xff]
    %v1618 = vld [vmem:[#allocation5 + $0x30b8] sm:$0xff]
    %v1619 = vld [vmem:[#allocation5 + $0x30c0] sm:$0xff]
    %v1620 = vld [vmem:[#allocation5 + $0x30c8] sm:$0xff]
    %v1621 = vld [vmem:[#allocation5 + $0x30d0] sm:$0xff]
    %v1622 = vld [vmem:[#allocation5 + $0x30d8] sm:$0xff]
    %v1623 = vld [vmem:[#allocation5 + $0x30e0] sm:$0xff]
    %v1624 = vld [vmem:[#allocation5 + $0x30e8] sm:$0xff]
    %v1625 = vld [vmem:[#allocation5 + $0x30f0] sm:$0xff]
    %v1626 = vld [vmem:[#allocation5 + $0x30f8] sm:$0xff]
    %v1627 = vld [vmem:[#allocation5 + $0x3100] sm:$0x7f]
    %v1628 = vld [vmem:[#allocation5 + $0x3108] sm:$0x7f]
    %v1629 = vld [vmem:[#allocation5 + $0x3110] sm:$0x7f]
    %v1630 = vld [vmem:[#allocation5 + $0x3118] sm:$0x7f]
    %v1631 = vld [vmem:[#allocation5 + $0x3120] sm:$0x7f]
    %v1632 = vld [vmem:[#allocation5 + $0x3128] sm:$0x7f]
    %v1633 = vld [vmem:[#allocation5 + $0x3130] sm:$0x7f]
    %v1634 = vld [vmem:[#allocation5 + $0x3138] sm:$0x7f]
    %v1635 = vld [vmem:[#allocation5 + $0x3140] sm:$0x7f]
    %v1636 = vld [vmem:[#allocation5 + $0x3148] sm:$0x7f]
    %v1637 = vld [vmem:[#allocation5 + $0x3150] sm:$0x7f]
    %v1638 = vld [vmem:[#allocation5 + $0x3158] sm:$0x7f]
    %v1639 = vld [vmem:[#allocation5 + $0x3160] sm:$0x7f]
    %v1640 = vld [vmem:[#allocation5 + $0x3168] sm:$0x7f]
    %v1641 = vld [vmem:[%s2] sm:$0xff]
    %v1642 = vld [vmem:[%s2 + $0x8] sm:$0xff]
    %1644 = vset.pattern.permute.xlu0 0
    %1645 = vperm.xlu0 %1644, %v1641
    %v1646 = vpop.permute.xlu0 %1645
    %1649 = vset.pattern.permute.xlu0 0
    %1650 = vperm.xlu0 %1649, %v1642
    %v1651 = vpop.permute.xlu0 %1650
    %vm1653 = vcmask 56320
    %v1655 = vsel %vm1653, %v50, 0
    %v1658 = vsel %vm1653, %v58, 0
    %vm1660 = vcmask 1046528
    %v1662 = vsel %vm1660, %v1627, 0
    %v1665 = vsel %vm1660, %v1628, 0
    %v1668 = vsel %vm1660, %v1629, 0
    %v1671 = vsel %vm1660, %v1630, 0
    %v1674 = vsel %vm1660, %v1631, 0
    %v1677 = vsel %vm1660, %v1632, 0
    %v1680 = vsel %vm1660, %v1633, 0
    %v1683 = vsel %vm1660, %v1634, 0
    %v1686 = vsel %vm1660, %v1635, 0
    %v1689 = vsel %vm1660, %v1636, 0
    %v1692 = vsel %vm1660, %v1637, 0
    %v1695 = vsel %vm1660, %v1638, 0
    %v1698 = vsel %vm1660, %v1639, 0
    %v1701 = vsel %vm1660, %v1640, 0
    %1703 = vmatprep.subr.mxu0 %v60
    %1704 = vmatpush1.msra.mxu0 %v59
    %1705 = vmatprep.subr.mxu0 %v74
    %1706 = vmatpush1.msra.mxu0 %v73
    %1707 = vmatprep.subr.mxu0 %v88
    %1708 = vmatpush1.msra.mxu0 %v87
    %1709 = vmatprep.subr.mxu0 %v102
    %1710 = vmatpush1.msra.mxu0 %v101
    %1711 = vmatprep.subr.mxu0 %v116
    %1712 = vmatpush1.msra.mxu0 %v115
    %1713 = vmatprep.subr.mxu0 %v130
    %1714 = vmatpush1.msra.mxu0 %v129
    %1715 = vmatprep.subr.mxu0 %v144
    %1716 = vmatpush1.msra.mxu0 %v143
    %1717 = vmatprep.subr.mxu0 %v158
    %1718 = vmatpush1.msra.mxu0 %v157
    %1719 = vmatprep.subr.mxu0 %v172
    %1720 = vmatpush1.msra.mxu0 %v171
    %1721 = vmatprep.subr.mxu0 %v186
    %1722 = vmatpush1.msra.mxu0 %v185
    %1723 = vmatprep.subr.mxu0 %v200
    %1724 = vmatpush1.msra.mxu0 %v199
    %1725 = vmatprep.subr.mxu0 %v214
    %1726 = vmatpush1.msra.mxu0 %v213
    %1727 = vmatprep.subr.mxu0 %v228
    %1728 = vmatpush1.msra.mxu0 %v227
    %1729 = vmatprep.subr.mxu0 %v242
    %1730 = vmatpush1.msra.mxu0 %v241
    %1731 = vmatprep.subr.mxu0 %v256
    %1732 = vmatpush1.msra.mxu0 %v255
    %1733 = vmatprep.subr.mxu0 %v270
    %1734 = vmatpush1.msra.mxu0 %v269
    %1735 = vmatprep.subr.mxu0 %v284
    %1736 = vmatpush1.msra.mxu0 %v283
    %1737 = vmatprep.subr.mxu0 %v298
    %1738 = vmatpush1.msra.mxu0 %v297
    %1739 = vmatprep.subr.mxu0 %v312
    %1740 = vmatpush1.msra.mxu0 %v311
    %1741 = vmatprep.subr.mxu0 %v326
    %1742 = vmatpush1.msra.mxu0 %v325
    %1743 = vmatprep.subr.mxu0 %v340
    %1744 = vmatpush1.msra.mxu0 %v339
    %1745 = vmatprep.subr.mxu0 %v354
    %1746 = vmatpush1.msra.mxu0 %v353
    %1747 = vmatprep.subr.mxu0 %v368
    %1748 = vmatpush1.msra.mxu0 %v367
    %1749 = vmatprep.subr.mxu0 %v382
    %1750 = vmatpush1.msra.mxu0 %v381
    %1751 = vmatprep.subr.mxu0 %v396
    %1752 = vmatpush1.msra.mxu0 %v395
    %1753 = vmatprep.subr.mxu0 %v410
    %1754 = vmatpush1.msra.mxu0 %v409
    %1755 = vmatprep.subr.mxu0 %v424
    %1756 = vmatpush1.msra.mxu0 %v423
    %1757 = vmatprep.subr.mxu0 %v438
    %1758 = vmatpush1.msra.mxu0 %v437
    %1759 = vmatprep.subr.mxu0 %v452
    %1760 = vmatpush1.msra.mxu0 %v451
    %1761 = vmatprep.subr.mxu0 %v466
    %1762 = vmatpush1.msra.mxu0 %v465
    %1763 = vmatprep.subr.mxu0 %v480
    %1764 = vmatpush1.msra.mxu0 %v479
    %1765 = vmatprep.subr.mxu0 %v494
    %1766 = vmatpush1.msra.mxu0 %v493
    %1767 = vmatprep.mubr.f32.mxu0 %v44
    %1768 = vmatmul.mubr.f32.gmra.mrb[0].mxu0 %v43
    %v1769 = vpop.f32.mrb[0].mxu0
    %v1770 = vadd.f32 %v1646, %v1769
    %v1771 = vpop.f32.mrb[0].mxu0
    %v1772 = vadd.f32 %v1646, %v1771
    %1773 = vmatprep.mubr.f32.mxu0 %v52
    %1774 = vmatmul.mubr.f32.gmra.mrb[0].mxu0 %v51
    %v1775 = vpop.f32.mrb[0].mxu0
    %v1776 = vadd.f32 %v1651, %v1775
    %v1777 = vpop.f32.mrb[0].mxu0
    %v1778 = vadd.f32 %v1651, %v1777
    %1779 = vdwg.mxu0
    %1780 = vmatprep.subr.mxu0 %v508
    %1781 = vmatpush1.msra.mxu0 %v507
    %1782 = vmatprep.subr.mxu0 %v522
    %1783 = vmatpush1.msra.mxu0 %v521
    %1784 = vmatprep.subr.mxu0 %v536
    %1785 = vmatpush1.msra.mxu0 %v535
    %1786 = vmatprep.subr.mxu0 %v550
    %1787 = vmatpush1.msra.mxu0 %v549
    %1788 = vmatprep.subr.mxu0 %v564
    %1789 = vmatpush1.msra.mxu0 %v563
    %1790 = vmatprep.subr.mxu0 %v578
    %1791 = vmatpush1.msra.mxu0 %v577
    %1792 = vmatprep.subr.mxu0 %v592
    %1793 = vmatpush1.msra.mxu0 %v591
    %1794 = vmatprep.subr.mxu0 %v606
    %1795 = vmatpush1.msra.mxu0 %v605
    %1796 = vmatprep.subr.mxu0 %v620
    %1797 = vmatpush1.msra.mxu0 %v619
    %1798 = vmatprep.subr.mxu0 %v634
    %1799 = vmatpush1.msra.mxu0 %v633
    %1800 = vmatprep.subr.mxu0 %v648
    %1801 = vmatpush1.msra.mxu0 %v647
    %1802 = vmatprep.subr.mxu0 %v662
    %1803 = vmatpush1.msra.mxu0 %v661
    %1804 = vmatprep.subr.mxu0 %v676
    %1805 = vmatpush1.msra.mxu0 %v675
    %1806 = vmatprep.subr.mxu0 %v690
    %1807 = vmatpush1.msra.mxu0 %v689
    %1808 = vmatprep.subr.mxu0 %v704
    %1809 = vmatpush1.msra.mxu0 %v703
    %1810 = vmatprep.subr.mxu0 %v718
    %1811 = vmatpush1.msra.mxu0 %v717
    %1812 = vmatprep.subr.mxu0 %v732
    %1813 = vmatpush1.msra.mxu0 %v731
    %1814 = vmatprep.subr.mxu0 %v746
    %1815 = vmatpush1.msra.mxu0 %v745
    %1816 = vmatprep.subr.mxu0 %v760
    %1817 = vmatpush1.msra.mxu0 %v759
    %1818 = vmatprep.subr.mxu0 %v774
    %1819 = vmatpush1.msra.mxu0 %v773
    %1820 = vmatprep.subr.mxu0 %v788
    %1821 = vmatpush1.msra.mxu0 %v787
    %1822 = vmatprep.subr.mxu0 %v802
    %1823 = vmatpush1.msra.mxu0 %v801
    %1824 = vmatprep.subr.mxu0 %v816
    %1825 = vmatpush1.msra.mxu0 %v815
    %1826 = vmatprep.subr.mxu0 %v830
    %1827 = vmatpush1.msra.mxu0 %v829
    %1828 = vmatprep.subr.mxu0 %v844
    %1829 = vmatpush1.msra.mxu0 %v843
    %1830 = vmatprep.subr.mxu0 %v858
    %1831 = vmatpush1.msra.mxu0 %v857
    %1832 = vmatprep.subr.mxu0 %v872
    %1833 = vmatpush1.msra.mxu0 %v871
    %1834 = vmatprep.subr.mxu0 %v886
    %1835 = vmatpush1.msra.mxu0 %v885
    %1836 = vmatprep.subr.mxu0 %v900
    %1837 = vmatpush1.msra.mxu0 %v899
    %1838 = vmatprep.subr.mxu0 %v914
    %1839 = vmatpush1.msra.mxu0 %v913
    %1840 = vmatprep.subr.mxu0 %v928
    %1841 = vmatpush1.msra.mxu0 %v927
    %1842 = vmatprep.subr.mxu0 %v942
    %1843 = vmatpush1.msra.mxu0 %v941
    %1844 = vmatprep.mubr.f32.mxu0 %v46
    %1845 = vmatmul.mubr.f32.gmra.mrb[0].mxu0 %v45
    %v1846 = vpop.f32.mrb[0].mxu0
    %v1847 = vadd.f32 %v1770, %v1846
    %v1848 = vpop.f32.mrb[0].mxu0
    %v1849 = vadd.f32 %v1772, %v1848
    %1850 = vmatprep.mubr.f32.mxu0 %v54
    %1851 = vmatmul.mubr.f32.gmra.mrb[0].mxu0 %v53
    %v1852 = vpop.f32.mrb[0].mxu0
    %v1853 = vadd.f32 %v1776, %v1852
    %v1854 = vpop.f32.mrb[0].mxu0
    %v1855 = vadd.f32 %v1778, %v1854
    %1856 = vdwg.mxu0
    %1857 = vmatprep.subr.mxu0 %v956
    %1858 = vmatpush1.msra.mxu0 %v955
    %1859 = vmatprep.subr.mxu0 %v970
    %1860 = vmatpush1.msra.mxu0 %v969
    %1861 = vmatprep.subr.mxu0 %v984
    %1862 = vmatpush1.msra.mxu0 %v983
    %1863 = vmatprep.subr.mxu0 %v998
    %1864 = vmatpush1.msra.mxu0 %v997
    %1865 = vmatprep.subr.mxu0 %v1012
    %1866 = vmatpush1.msra.mxu0 %v1011
    %1867 = vmatprep.subr.mxu0 %v1026
    %1868 = vmatpush1.msra.mxu0 %v1025
    %1869 = vmatprep.subr.mxu0 %v1040
    %1870 = vmatpush1.msra.mxu0 %v1039
    %1871 = vmatprep.subr.mxu0 %v1054
    %1872 = vmatpush1.msra.mxu0 %v1053
    %1873 = vmatprep.subr.mxu0 %v1068
    %1874 = vmatpush1.msra.mxu0 %v1067
    %1875 = vmatprep.subr.mxu0 %v1082
    %1876 = vmatpush1.msra.mxu0 %v1081
    %1877 = vmatprep.subr.mxu0 %v1096
    %1878 = vmatpush1.msra.mxu0 %v1095
    %1879 = vmatprep.subr.mxu0 %v1110
    %1880 = vmatpush1.msra.mxu0 %v1109
    %1881 = vmatprep.subr.mxu0 %v1124
    %1882 = vmatpush1.msra.mxu0 %v1123
    %1883 = vmatprep.subr.mxu0 %v1138
    %1884 = vmatpush1.msra.mxu0 %v1137
    %1885 = vmatprep.subr.mxu0 %v1152
    %1886 = vmatpush1.msra.mxu0 %v1151
    %1887 = vmatprep.subr.mxu0 %v1166
    %1888 = vmatpush1.msra.mxu0 %v1165
    %1889 = vmatprep.subr.mxu0 %v1180
    %1890 = vmatpush1.msra.mxu0 %v1179
    %1891 = vmatprep.subr.mxu0 %v1194
    %1892 = vmatpush1.msra.mxu0 %v1193
    %1893 = vmatprep.subr.mxu0 %v1208
    %1894 = vmatpush1.msra.mxu0 %v1207
    %1895 = vmatprep.subr.mxu0 %v1222
    %1896 = vmatpush1.msra.mxu0 %v1221
    %1897 = vmatprep.subr.mxu0 %v1236
    %1898 = vmatpush1.msra.mxu0 %v1235
    %1899 = vmatprep.subr.mxu0 %v1250
    %1900 = vmatpush1.msra.mxu0 %v1249
    %1901 = vmatprep.subr.mxu0 %v1264
    %1902 = vmatpush1.msra.mxu0 %v1263
    %1903 = vmatprep.subr.mxu0 %v1278
    %1904 = vmatpush1.msra.mxu0 %v1277
    %1905 = vmatprep.subr.mxu0 %v1292
    %1906 = vmatpush1.msra.mxu0 %v1291
    %1907 = vmatprep.subr.mxu0 %v1306
    %1908 = vmatpush1.msra.mxu0 %v1305
    %1909 = vmatprep.subr.mxu0 %v1320
    %1910 = vmatpush1.msra.mxu0 %v1319
    %1911 = vmatprep.subr.mxu0 %v1334
    %1912 = vmatpush1.msra.mxu0 %v1333
    %1913 = vmatprep.subr.mxu0 %v1348
    %1914 = vmatpush1.msra.mxu0 %v1347
    %1915 = vmatprep.subr.mxu0 %v1362
    %1916 = vmatpush1.msra.mxu0 %v1361
    %1917 = vmatprep.subr.mxu0 %v1376
    %1918 = vmatpush1.msra.mxu0 %v1375
    %1919 = vmatprep.subr.mxu0 %v1390
    %1920 = vmatpush1.msra.mxu0 %v1389
    %1921 = vmatprep.mubr.f32.mxu0 %v48
    %1922 = vmatmul.mubr.f32.gmra.mrb[0].mxu0 %v47
    %v1923 = vpop.f32.mrb[0].mxu0
    %v1924 = vadd.f32 %v1847, %v1923
    %v1925 = vpop.f32.mrb[0].mxu0
    %v1926 = vadd.f32 %v1849, %v1925
    %1927 = vmatprep.mubr.f32.mxu0 %v56
    %1928 = vmatmul.mubr.f32.gmra.mrb[0].mxu0 %v55
    %v1929 = vpop.f32.mrb[0].mxu0
    %v1930 = vadd.f32 %v1853, %v1929
    %v1931 = vpop.f32.mrb[0].mxu0
    %v1932 = vadd.f32 %v1855, %v1931
    %1933 = vdwg.mxu0
    %1934 = vmatprep.subr.mxu0 %v1404
    %1935 = vmatpush1.msra.mxu0 %v1403
    %1936 = vmatprep.subr.mxu0 %v1418
    %1937 = vmatpush1.msra.mxu0 %v1417
    %1938 = vmatprep.subr.mxu0 %v1432
    %1939 = vmatpush1.msra.mxu0 %v1431
    %1940 = vmatprep.subr.mxu0 %v1446
    %1941 = vmatpush1.msra.mxu0 %v1445
    %1942 = vmatprep.subr.mxu0 %v1460
    %1943 = vmatpush1.msra.mxu0 %v1459
    %1944 = vmatprep.subr.mxu0 %v1474
    %1945 = vmatpush1.msra.mxu0 %v1473
    %1946 = vmatprep.subr.mxu0 %v1488
    %1947 = vmatpush1.msra.mxu0 %v1487
    %1948 = vmatprep.subr.mxu0 %v1502
    %1949 = vmatpush1.msra.mxu0 %v1501
    %1950 = vmatprep.subr.mxu0 %v1516
    %1951 = vmatpush1.msra.mxu0 %v1515
    %1952 = vmatprep.subr.mxu0 %v1530
    %1953 = vmatpush1.msra.mxu0 %v1529
    %1954 = vmatprep.subr.mxu0 %v1544
    %1955 = vmatpush1.msra.mxu0 %v1543
    %1956 = vmatprep.subr.mxu0 %v1558
    %1957 = vmatpush1.msra.mxu0 %v1557
    %1958 = vmatprep.subr.mxu0 %v1572
    %1959 = vmatpush1.msra.mxu0 %v1571
    %1960 = vmatprep.subr.mxu0 %v1586
    %1961 = vmatpush1.msra.mxu0 %v1585
    %1962 = vmatprep.subr.mxu0 %v1600
    %1963 = vmatpush1.msra.mxu0 %v1599
    %1964 = vmatprep.subr.mxu0 %v1614
    %1965 = vmatpush1.msra.mxu0 %v1613
    %1966 = vmatprep.subr.mxu0 %v1665
    %1967 = vmatpush1.msra.mxu0 %v1662
    %1968 = vmatprep.subr.mxu0 0.0
    %1969 = vmatpush1.msra.mxu0 0.0
    %1970 = vmatprep.subr.mxu0 0.0
    %1971 = vmatpush1.msra.mxu0 0.0
    %1972 = vmatprep.subr.mxu0 0.0
    %1973 = vmatpush1.msra.mxu0 0.0
    %1974 = vmatprep.subr.mxu0 0.0
    %1975 = vmatpush1.msra.mxu0 0.0
    %1976 = vmatprep.subr.mxu0 0.0
    %1977 = vmatpush1.msra.mxu0 0.0
    %1978 = vmatprep.subr.mxu0 0.0
    %1979 = vmatpush1.msra.mxu0 0.0
    %1980 = vmatprep.subr.mxu0 0.0
    %1981 = vmatpush1.msra.mxu0 0.0
    %1982 = vmatprep.subr.mxu0 0.0
    %1983 = vmatpush1.msra.mxu0 0.0
    %1984 = vmatprep.subr.mxu0 0.0
    %1985 = vmatpush1.msra.mxu0 0.0
    %1986 = vmatprep.subr.mxu0 0.0
    %1987 = vmatpush1.msra.mxu0 0.0
    %1988 = vmatprep.subr.mxu0 0.0
    %1989 = vmatpush1.msra.mxu0 0.0
    %1990 = vmatprep.subr.mxu0 0.0
    %1991 = vmatpush1.msra.mxu0 0.0
    %1992 = vmatprep.subr.mxu0 0.0
    %1993 = vmatpush1.msra.mxu0 0.0
    %1994 = vmatprep.subr.mxu0 0.0
    %1995 = vmatpush1.msra.mxu0 0.0
    %1996 = vmatprep.subr.mxu0 0.0
    %1997 = vmatpush1.msra.mxu0 0.0
    %1998 = vmatprep.mubr.f32.mxu0 %v1655
    %1999 = vmatmul.mubr.f32.gmra.mrb[0].mxu0 %v49
    %v2000 = vpop.f32.mrb[0].mxu0
    %v2001 = vadd.f32 %v1924, %v2000
    %v2002 = vpop.f32.mrb[0].mxu0
    %v2003 = vadd.f32 %v1926, %v2002
    %2004 = vmatprep.mubr.f32.mxu0 %v1658
    %2005 = vmatmul.mubr.f32.gmra.mrb[0].mxu0 %v57
    %v2006 = vpop.f32.mrb[0].mxu0
    %v2007 = vadd.f32 %v1930, %v2006
    %v2008 = vpop.f32.mrb[0].mxu0
    %v2009 = vadd.f32 %v1932, %v2008
    %2010 = vdwg.mxu0
    %2011 = vmatprep.subr.mxu0 %v62
    %2012 = vmatpush1.msra.mxu0 %v61
    %2013 = vmatprep.subr.mxu0 %v76
    %2014 = vmatpush1.msra.mxu0 %v75
    %2015 = vmatprep.subr.mxu0 %v90
    %2016 = vmatpush1.msra.mxu0 %v89
    %2017 = vmatprep.subr.mxu0 %v104
    %2018 = vmatpush1.msra.mxu0 %v103
    %2019 = vmatprep.subr.mxu0 %v118
    %2020 = vmatpush1.msra.mxu0 %v117
    %2021 = vmatprep.subr.mxu0 %v132
    %2022 = vmatpush1.msra.mxu0 %v131
    %2023 = vmatprep.subr.mxu0 %v146
    %2024 = vmatpush1.msra.mxu0 %v145
    %2025 = vmatprep.subr.mxu0 %v160
    %2026 = vmatpush1.msra.mxu0 %v159
    %2027 = vmatprep.subr.mxu0 %v174
    %2028 = vmatpush1.msra.mxu0 %v173
    %2029 = vmatprep.subr.mxu0 %v188
    %2030 = vmatpush1.msra.mxu0 %v187
    %2031 = vmatprep.subr.mxu0 %v202
    %2032 = vmatpush1.msra.mxu0 %v201
    %2033 = vmatprep.subr.mxu0 %v216
    %2034 = vmatpush1.msra.mxu0 %v215
    %2035 = vmatprep.subr.mxu0 %v230
    %2036 = vmatpush1.msra.mxu0 %v229
    %2037 = vmatprep.subr.mxu0 %v244
    %2038 = vmatpush1.msra.mxu0 %v243
    %2039 = vmatprep.subr.mxu0 %v258
    %2040 = vmatpush1.msra.mxu0 %v257
    %2041 = vmatprep.subr.mxu0 %v272
    %2042 = vmatpush1.msra.mxu0 %v271
    %2043 = vmatprep.subr.mxu0 %v286
    %2044 = vmatpush1.msra.mxu0 %v285
    %2045 = vmatprep.subr.mxu0 %v300
    %2046 = vmatpush1.msra.mxu0 %v299
    %2047 = vmatprep.subr.mxu0 %v314
    %2048 = vmatpush1.msra.mxu0 %v313
    %2049 = vmatprep.subr.mxu0 %v328
    %2050 = vmatpush1.msra.mxu0 %v327
    %2051 = vmatprep.subr.mxu0 %v342
    %2052 = vmatpush1.msra.mxu0 %v341
    %2053 = vmatprep.subr.mxu0 %v356
    %2054 = vmatpush1.msra.mxu0 %v355
    %2055 = vmatprep.subr.mxu0 %v370
    %2056 = vmatpush1.msra.mxu0 %v369
    %2057 = vmatprep.subr.mxu0 %v384
    %2058 = vmatpush1.msra.mxu0 %v383
    %2059 = vmatprep.subr.mxu0 %v398
    %2060 = vmatpush1.msra.mxu0 %v397
    %2061 = vmatprep.subr.mxu0 %v412
    %2062 = vmatpush1.msra.mxu0 %v411
    %2063 = vmatprep.subr.mxu0 %v426
    %2064 = vmatpush1.msra.mxu0 %v425
    %2065 = vmatprep.subr.mxu0 %v440
    %2066 = vmatpush1.msra.mxu0 %v439
    %2067 = vmatprep.subr.mxu0 %v454
    %2068 = vmatpush1.msra.mxu0 %v453
    %2069 = vmatprep.subr.mxu0 %v468
    %2070 = vmatpush1.msra.mxu0 %v467
    %2071 = vmatprep.subr.mxu0 %v482
    %2072 = vmatpush1.msra.mxu0 %v481
    %2073 = vmatprep.subr.mxu0 %v496
    %2074 = vmatpush1.msra.mxu0 %v495
    %2075 = vmatprep.mubr.f32.mxu0 %v44
    %2076 = vmatmul.mubr.f32.gmra.mrb[0].mxu0 %v43
    %v2077 = vpop.f32.mrb[0].mxu0
    %v2078 = vadd.f32 %v1646, %v2077
    %v2079 = vpop.f32.mrb[0].mxu0
    %v2080 = vadd.f32 %v1646, %v2079
    %2081 = vmatprep.mubr.f32.mxu0 %v52
    %2082 = vmatmul.mubr.f32.gmra.mrb[0].mxu0 %v51
    %v2083 = vpop.f32.mrb[0].mxu0
    %v2084 = vadd.f32 %v1651, %v2083
    %v2085 = vpop.f32.mrb[0].mxu0
    %v2086 = vadd.f32 %v1651, %v2085
    %2087 = vdwg.mxu0
    %2088 = vmatprep.subr.mxu0 %v510
    %2089 = vmatpush1.msra.mxu0 %v509
    %2090 = vmatprep.subr.mxu0 %v524
    %2091 = vmatpush1.msra.mxu0 %v523
    %2092 = vmatprep.subr.mxu0 %v538
    %2093 = vmatpush1.msra.mxu0 %v537
    %2094 = vmatprep.subr.mxu0 %v552
    %2095 = vmatpush1.msra.mxu0 %v551
    %2096 = vmatprep.subr.mxu0 %v566
    %2097 = vmatpush1.msra.mxu0 %v565
    %2098 = vmatprep.subr.mxu0 %v580
    %2099 = vmatpush1.msra.mxu0 %v579
    %2100 = vmatprep.subr.mxu0 %v594
    %2101 = vmatpush1.msra.mxu0 %v593
    %2102 = vmatprep.subr.mxu0 %v608
    %2103 = vmatpush1.msra.mxu0 %v607
    %2104 = vmatprep.subr.mxu0 %v622
    %2105 = vmatpush1.msra.mxu0 %v621
    %2106 = vmatprep.subr.mxu0 %v636
    %2107 = vmatpush1.msra.mxu0 %v635
    %2108 = vmatprep.subr.mxu0 %v650
    %2109 = vmatpush1.msra.mxu0 %v649
    %2110 = vmatprep.subr.mxu0 %v664
    %2111 = vmatpush1.msra.mxu0 %v663
    %2112 = vmatprep.subr.mxu0 %v678
    %2113 = vmatpush1.msra.mxu0 %v677
    %2114 = vmatprep.subr.mxu0 %v692
    %2115 = vmatpush1.msra.mxu0 %v691
    %2116 = vmatprep.subr.mxu0 %v706
    %2117 = vmatpush1.msra.mxu0 %v705
    %2118 = vmatprep.subr.mxu0 %v720
    %2119 = vmatpush1.msra.mxu0 %v719
    %2120 = vmatprep.subr.mxu0 %v734
    %2121 = vmatpush1.msra.mxu0 %v733
    %2122 = vmatprep.subr.mxu0 %v748
    %2123 = vmatpush1.msra.mxu0 %v747
    %2124 = vmatprep.subr.mxu0 %v762
    %2125 = vmatpush1.msra.mxu0 %v761
    %2126 = vmatprep.subr.mxu0 %v776
    %2127 = vmatpush1.msra.mxu0 %v775
    %2128 = vmatprep.subr.mxu0 %v790
    %2129 = vmatpush1.msra.mxu0 %v789
    %2130 = vmatprep.subr.mxu0 %v804
    %2131 = vmatpush1.msra.mxu0 %v803
    %2132 = vmatprep.subr.mxu0 %v818
    %2133 = vmatpush1.msra.mxu0 %v817
    %2134 = vmatprep.subr.mxu0 %v832
    %2135 = vmatpush1.msra.mxu0 %v831
    %2136 = vmatprep.subr.mxu0 %v846
    %2137 = vmatpush1.msra.mxu0 %v845
    %2138 = vmatprep.subr.mxu0 %v860
    %2139 = vmatpush1.msra.mxu0 %v859
    %2140 = vmatprep.subr.mxu0 %v874
    %2141 = vmatpush1.msra.mxu0 %v873
    %2142 = vmatprep.subr.mxu0 %v888
    %2143 = vmatpush1.msra.mxu0 %v887
    %2144 = vmatprep.subr.mxu0 %v902
    %2145 = vmatpush1.msra.mxu0 %v901
    %2146 = vmatprep.subr.mxu0 %v916
    %2147 = vmatpush1.msra.mxu0 %v915
    %2148 = vmatprep.subr.mxu0 %v930
    %2149 = vmatpush1.msra.mxu0 %v929
    %2150 = vmatprep.subr.mxu0 %v944
    %2151 = vmatpush1.msra.mxu0 %v943
    %2152 = vmatprep.mubr.f32.mxu0 %v46
    %2153 = vmatmul.mubr.f32.gmra.mrb[0].mxu0 %v45
    %v2154 = vpop.f32.mrb[0].mxu0
    %v2155 = vadd.f32 %v2078, %v2154
    %v2156 = vpop.f32.mrb[0].mxu0
    %v2157 = vadd.f32 %v2080, %v2156
    %2158 = vmatprep.mubr.f32.mxu0 %v54
    %2159 = vmatmul.mubr.f32.gmra.mrb[0].mxu0 %v53
    %v2160 = vpop.f32.mrb[0].mxu0
    %v2161 = vadd.f32 %v2084, %v2160
    %v2162 = vpop.f32.mrb[0].mxu0
    %v2163 = vadd.f32 %v2086, %v2162
    %2164 = vdwg.mxu0
    %2165 = vmatprep.subr.mxu0 %v958
    %2166 = vmatpush1.msra.mxu0 %v957
    %2167 = vmatprep.subr.mxu0 %v972
    %2168 = vmatpush1.msra.mxu0 %v971
    %2169 = vmatprep.subr.mxu0 %v986
    %2170 = vmatpush1.msra.mxu0 %v985
    %2171 = vmatprep.subr.mxu0 %v1000
    %2172 = vmatpush1.msra.mxu0 %v999
    %2173 = vmatprep.subr.mxu0 %v1014
    %2174 = vmatpush1.msra.mxu0 %v1013
    %2175 = vmatprep.subr.mxu0 %v1028
    %2176 = vmatpush1.msra.mxu0 %v1027
    %2177 = vmatprep.subr.mxu0 %v1042
    %2178 = vmatpush1.msra.mxu0 %v1041
    %2179 = vmatprep.subr.mxu0 %v1056
    %2180 = vmatpush1.msra.mxu0 %v1055
    %2181 = vmatprep.subr.mxu0 %v1070
    %2182 = vmatpush1.msra.mxu0 %v1069
    %2183 = vmatprep.subr.mxu0 %v1084
    %2184 = vmatpush1.msra.mxu0 %v1083
    %2185 = vmatprep.subr.mxu0 %v1098
    %2186 = vmatpush1.msra.mxu0 %v1097
    %2187 = vmatprep.subr.mxu0 %v1112
    %2188 = vmatpush1.msra.mxu0 %v1111
    %2189 = vmatprep.subr.mxu0 %v1126
    %2190 = vmatpush1.msra.mxu0 %v1125
    %2191 = vmatprep.subr.mxu0 %v1140
    %2192 = vmatpush1.msra.mxu0 %v1139
    %2193 = vmatprep.subr.mxu0 %v1154
    %2194 = vmatpush1.msra.mxu0 %v1153
    %2195 = vmatprep.subr.mxu0 %v1168
    %2196 = vmatpush1.msra.mxu0 %v1167
    %2197 = vmatprep.subr.mxu0 %v1182
    %2198 = vmatpush1.msra.mxu0 %v1181
    %2199 = vmatprep.subr.mxu0 %v1196
    %2200 = vmatpush1.msra.mxu0 %v1195
    %2201 = vmatprep.subr.mxu0 %v1210
    %2202 = vmatpush1.msra.mxu0 %v1209
    %2203 = vmatprep.subr.mxu0 %v1224
    %2204 = vmatpush1.msra.mxu0 %v1223
    %2205 = vmatprep.subr.mxu0 %v1238
    %2206 = vmatpush1.msra.mxu0 %v1237
    %2207 = vmatprep.subr.mxu0 %v1252
    %2208 = vmatpush1.msra.mxu0 %v1251
    %2209 = vmatprep.subr.mxu0 %v1266
    %2210 = vmatpush1.msra.mxu0 %v1265
    %2211 = vmatprep.subr.mxu0 %v1280
    %2212 = vmatpush1.msra.mxu0 %v1279
    %2213 = vmatprep.subr.mxu0 %v1294
    %2214 = vmatpush1.msra.mxu0 %v1293
    %2215 = vmatprep.subr.mxu0 %v1308
    %2216 = vmatpush1.msra.mxu0 %v1307
    %2217 = vmatprep.subr.mxu0 %v1322
    %2218 = vmatpush1.msra.mxu0 %v1321
    %2219 = vmatprep.subr.mxu0 %v1336
    %2220 = vmatpush1.msra.mxu0 %v1335
    %2221 = vmatprep.subr.mxu0 %v1350
    %2222 = vmatpush1.msra.mxu0 %v1349
    %2223 = vmatprep.subr.mxu0 %v1364
    %2224 = vmatpush1.msra.mxu0 %v1363
    %2225 = vmatprep.subr.mxu0 %v1378
    %2226 = vmatpush1.msra.mxu0 %v1377
    %2227 = vmatprep.subr.mxu0 %v1392
    %2228 = vmatpush1.msra.mxu0 %v1391
    %2229 = vmatprep.mubr.f32.mxu0 %v48
    %2230 = vmatmul.mubr.f32.gmra.mrb[0].mxu0 %v47
    %v2231 = vpop.f32.mrb[0].mxu0
    %v2232 = vadd.f32 %v2155, %v2231
    %v2233 = vpop.f32.mrb[0].mxu0
    %v2234 = vadd.f32 %v2157, %v2233
    %2235 = vmatprep.mubr.f32.mxu0 %v56
    %2236 = vmatmul.mubr.f32.gmra.mrb[0].mxu0 %v55
    %v2237 = vpop.f32.mrb[0].mxu0
    %v2238 = vadd.f32 %v2161, %v2237
    %v2239 = vpop.f32.mrb[0].mxu0
    %v2240 = vadd.f32 %v2163, %v2239
    %2241 = vdwg.mxu0
    %2242 = vmatprep.subr.mxu0 %v1406
    %2243 = vmatpush1.msra.mxu0 %v1405
    %2244 = vmatprep.subr.mxu0 %v1420
    %2245 = vmatpush1.msra.mxu0 %v1419
    %2246 = vmatprep.subr.mxu0 %v1434
    %2247 = vmatpush1.msra.mxu0 %v1433
    %2248 = vmatprep.subr.mxu0 %v1448
    %2249 = vmatpush1.msra.mxu0 %v1447
    %2250 = vmatprep.subr.mxu0 %v1462
    %2251 = vmatpush1.msra.mxu0 %v1461
    %2252 = vmatprep.subr.mxu0 %v1476
    %2253 = vmatpush1.msra.mxu0 %v1475
    %2254 = vmatprep.subr.mxu0 %v1490
    %2255 = vmatpush1.msra.mxu0 %v1489
    %2256 = vmatprep.subr.mxu0 %v1504
    %2257 = vmatpush1.msra.mxu0 %v1503
    %2258 = vmatprep.subr.mxu0 %v1518
    %2259 = vmatpush1.msra.mxu0 %v1517
    %2260 = vmatprep.subr.mxu0 %v1532
    %2261 = vmatpush1.msra.mxu0 %v1531
    %2262 = vmatprep.subr.mxu0 %v1546
    %2263 = vmatpush1.msra.mxu0 %v1545
    %2264 = vmatprep.subr.mxu0 %v1560
    %2265 = vmatpush1.msra.mxu0 %v1559
    %2266 = vmatprep.subr.mxu0 %v1574
    %2267 = vmatpush1.msra.mxu0 %v1573
    %2268 = vmatprep.subr.mxu0 %v1588
    %2269 = vmatpush1.msra.mxu0 %v1587
    %2270 = vmatprep.subr.mxu0 %v1602
    %2271 = vmatpush1.msra.mxu0 %v1601
    %2272 = vmatprep.subr.mxu0 %v1616
    %2273 = vmatpush1.msra.mxu0 %v1615
    %2274 = vmatprep.subr.mxu0 %v1671
    %2275 = vmatpush1.msra.mxu0 %v1668
    %2276 = vmatprep.subr.mxu0 0.0
    %2277 = vmatpush1.msra.mxu0 0.0
    %2278 = vmatprep.subr.mxu0 0.0
    %2279 = vmatpush1.msra.mxu0 0.0
    %2280 = vmatprep.subr.mxu0 0.0
    %2281 = vmatpush1.msra.mxu0 0.0
    %2282 = vmatprep.subr.mxu0 0.0
    %2283 = vmatpush1.msra.mxu0 0.0
    %2284 = vmatprep.subr.mxu0 0.0
    %2285 = vmatpush1.msra.mxu0 0.0
    %2286 = vmatprep.subr.mxu0 0.0
    %2287 = vmatpush1.msra.mxu0 0.0
    %2288 = vmatprep.subr.mxu0 0.0
    %2289 = vmatpush1.msra.mxu0 0.0
    %2290 = vmatprep.subr.mxu0 0.0
    %2291 = vmatpush1.msra.mxu0 0.0
    %2292 = vmatprep.subr.mxu0 0.0
    %2293 = vmatpush1.msra.mxu0 0.0
    %2294 = vmatprep.subr.mxu0 0.0
    %2295 = vmatpush1.msra.mxu0 0.0
    %2296 = vmatprep.subr.mxu0 0.0
    %2297 = vmatpush1.msra.mxu0 0.0
    %2298 = vmatprep.subr.mxu0 0.0
    %2299 = vmatpush1.msra.mxu0 0.0
    %2300 = vmatprep.subr.mxu0 0.0
    %2301 = vmatpush1.msra.mxu0 0.0
    %2302 = vmatprep.subr.mxu0 0.0
    %2303 = vmatpush1.msra.mxu0 0.0
    %2304 = vmatprep.subr.mxu0 0.0
    %2305 = vmatpush1.msra.mxu0 0.0
    %2306 = vmatprep.mubr.f32.mxu0 %v1655
    %2307 = vmatmul.mubr.f32.gmra.mrb[0].mxu0 %v49
    %v2308 = vpop.f32.mrb[0].mxu0
    %v2309 = vadd.f32 %v2232, %v2308
    %v2310 = vpop.f32.mrb[0].mxu0
    %v2311 = vadd.f32 %v2234, %v2310
    %2312 = vmatprep.mubr.f32.mxu0 %v1658
    %2313 = vmatmul.mubr.f32.gmra.mrb[0].mxu0 %v57
    %v2314 = vpop.f32.mrb[0].mxu0
    %v2315 = vadd.f32 %v2238, %v2314
    %v2316 = vpop.f32.mrb[0].mxu0
    %v2317 = vadd.f32 %v2240, %v2316
    %2318 = vdwg.mxu0
    %2319 = vmatprep.subr.mxu0 %v64
    %2320 = vmatpush1.msra.mxu0 %v63
    %2321 = vmatprep.subr.mxu0 %v78
    %2322 = vmatpush1.msra.mxu0 %v77
    %2323 = vmatprep.subr.mxu0 %v92
    %2324 = vmatpush1.msra.mxu0 %v91
    %2325 = vmatprep.subr.mxu0 %v106
    %2326 = vmatpush1.msra.mxu0 %v105
    %2327 = vmatprep.subr.mxu0 %v120
    %2328 = vmatpush1.msra.mxu0 %v119
    %2329 = vmatprep.subr.mxu0 %v134
    %2330 = vmatpush1.msra.mxu0 %v133
    %2331 = vmatprep.subr.mxu0 %v148
    %2332 = vmatpush1.msra.mxu0 %v147
    %2333 = vmatprep.subr.mxu0 %v162
    %2334 = vmatpush1.msra.mxu0 %v161
    %2335 = vmatprep.subr.mxu0 %v176
    %2336 = vmatpush1.msra.mxu0 %v175
    %2337 = vmatprep.subr.mxu0 %v190
    %2338 = vmatpush1.msra.mxu0 %v189
    %2339 = vmatprep.subr.mxu0 %v204
    %2340 = vmatpush1.msra.mxu0 %v203
    %2341 = vmatprep.subr.mxu0 %v218
    %2342 = vmatpush1.msra.mxu0 %v217
    %2343 = vmatprep.subr.mxu0 %v232
    %2344 = vmatpush1.msra.mxu0 %v231
    %2345 = vmatprep.subr.mxu0 %v246
    %2346 = vmatpush1.msra.mxu0 %v245
    %2347 = vmatprep.subr.mxu0 %v260
    %2348 = vmatpush1.msra.mxu0 %v259
    %2349 = vmatprep.subr.mxu0 %v274
    %2350 = vmatpush1.msra.mxu0 %v273
    %2351 = vmatprep.subr.mxu0 %v288
    %2352 = vmatpush1.msra.mxu0 %v287
    %2353 = vmatprep.subr.mxu0 %v302
    %2354 = vmatpush1.msra.mxu0 %v301
    %2355 = vmatprep.subr.mxu0 %v316
    %2356 = vmatpush1.msra.mxu0 %v315
    %2357 = vmatprep.subr.mxu0 %v330
    %2358 = vmatpush1.msra.mxu0 %v329
    %2359 = vmatprep.subr.mxu0 %v344
    %2360 = vmatpush1.msra.mxu0 %v343
    %2361 = vmatprep.subr.mxu0 %v358
    %2362 = vmatpush1.msra.mxu0 %v357
    %2363 = vmatprep.subr.mxu0 %v372
    %2364 = vmatpush1.msra.mxu0 %v371
    %2365 = vmatprep.subr.mxu0 %v386
    %2366 = vmatpush1.msra.mxu0 %v385
    %2367 = vmatprep.subr.mxu0 %v400
    %2368 = vmatpush1.msra.mxu0 %v399
    %2369 = vmatprep.subr.mxu0 %v414
    %2370 = vmatpush1.msra.mxu0 %v413
    %2371 = vmatprep.subr.mxu0 %v428
    %2372 = vmatpush1.msra.mxu0 %v427
    %2373 = vmatprep.subr.mxu0 %v442
    %2374 = vmatpush1.msra.mxu0 %v441
    %2375 = vmatprep.subr.mxu0 %v456
    %2376 = vmatpush1.msra.mxu0 %v455
    %2377 = vmatprep.subr.mxu0 %v470
    %2378 = vmatpush1.msra.mxu0 %v469
    %2379 = vmatprep.subr.mxu0 %v484
    %2380 = vmatpush1.msra.mxu0 %v483
    %2381 = vmatprep.subr.mxu0 %v498
    %2382 = vmatpush1.msra.mxu0 %v497
    %2383 = vmatprep.mubr.f32.mxu0 %v44
    %2384 = vmatmul.mubr.f32.gmra.mrb[0].mxu0 %v43
    %v2385 = vpop.f32.mrb[0].mxu0
    %v2386 = vadd.f32 %v1646, %v2385
    %v2387 = vpop.f32.mrb[0].mxu0
    %v2388 = vadd.f32 %v1646, %v2387
    %2389 = vmatprep.mubr.f32.mxu0 %v52
    %2390 = vmatmul.mubr.f32.gmra.mrb[0].mxu0 %v51
    %v2391 = vpop.f32.mrb[0].mxu0
    %v2392 = vadd.f32 %v1651, %v2391
    %v2393 = vpop.f32.mrb[0].mxu0
    %v2394 = vadd.f32 %v1651, %v2393
    %2395 = vdwg.mxu0
    %2396 = vmatprep.subr.mxu0 %v512
    %2397 = vmatpush1.msra.mxu0 %v511
    %2398 = vmatprep.subr.mxu0 %v526
    %2399 = vmatpush1.msra.mxu0 %v525
    %2400 = vmatprep.subr.mxu0 %v540
    %2401 = vmatpush1.msra.mxu0 %v539
    %2402 = vmatprep.subr.mxu0 %v554
    %2403 = vmatpush1.msra.mxu0 %v553
    %2404 = vmatprep.subr.mxu0 %v568
    %2405 = vmatpush1.msra.mxu0 %v567
    %2406 = vmatprep.subr.mxu0 %v582
    %2407 = vmatpush1.msra.mxu0 %v581
    %2408 = vmatprep.subr.mxu0 %v596
    %2409 = vmatpush1.msra.mxu0 %v595
    %2410 = vmatprep.subr.mxu0 %v610
    %2411 = vmatpush1.msra.mxu0 %v609
    %2412 = vmatprep.subr.mxu0 %v624
    %2413 = vmatpush1.msra.mxu0 %v623
    %2414 = vmatprep.subr.mxu0 %v638
    %2415 = vmatpush1.msra.mxu0 %v637
    %2416 = vmatprep.subr.mxu0 %v652
    %2417 = vmatpush1.msra.mxu0 %v651
    %2418 = vmatprep.subr.mxu0 %v666
    %2419 = vmatpush1.msra.mxu0 %v665
    %2420 = vmatprep.subr.mxu0 %v680
    %2421 = vmatpush1.msra.mxu0 %v679
    %2422 = vmatprep.subr.mxu0 %v694
    %2423 = vmatpush1.msra.mxu0 %v693
    %2424 = vmatprep.subr.mxu0 %v708
    %2425 = vmatpush1.msra.mxu0 %v707
    %2426 = vmatprep.subr.mxu0 %v722
    %2427 = vmatpush1.msra.mxu0 %v721
    %2428 = vmatprep.subr.mxu0 %v736
    %2429 = vmatpush1.msra.mxu0 %v735
    %2430 = vmatprep.subr.mxu0 %v750
    %2431 = vmatpush1.msra.mxu0 %v749
    %2432 = vmatprep.subr.mxu0 %v764
    %2433 = vmatpush1.msra.mxu0 %v763
    %2434 = vmatprep.subr.mxu0 %v778
    %2435 = vmatpush1.msra.mxu0 %v777
    %2436 = vmatprep.subr.mxu0 %v792
    %2437 = vmatpush1.msra.mxu0 %v791
    %2438 = vmatprep.subr.mxu0 %v806
    %2439 = vmatpush1.msra.mxu0 %v805
    %2440 = vmatprep.subr.mxu0 %v820
    %2441 = vmatpush1.msra.mxu0 %v819
    %2442 = vmatprep.subr.mxu0 %v834
    %2443 = vmatpush1.msra.mxu0 %v833
    %2444 = vmatprep.subr.mxu0 %v848
    %2445 = vmatpush1.msra.mxu0 %v847
    %2446 = vmatprep.subr.mxu0 %v862
    %2447 = vmatpush1.msra.mxu0 %v861
    %2448 = vmatprep.subr.mxu0 %v876
    %2449 = vmatpush1.msra.mxu0 %v875
    %2450 = vmatprep.subr.mxu0 %v890
    %2451 = vmatpush1.msra.mxu0 %v889
    %2452 = vmatprep.subr.mxu0 %v904
    %2453 = vmatpush1.msra.mxu0 %v903
    %2454 = vmatprep.subr.mxu0 %v918
    %2455 = vmatpush1.msra.mxu0 %v917
    %2456 = vmatprep.subr.mxu0 %v932
    %2457 = vmatpush1.msra.mxu0 %v931
    %2458 = vmatprep.subr.mxu0 %v946
    %2459 = vmatpush1.msra.mxu0 %v945
    %2460 = vmatprep.mubr.f32.mxu0 %v46
    %2461 = vmatmul.mubr.f32.gmra.mrb[0].mxu0 %v45
    %v2462 = vpop.f32.mrb[0].mxu0
    %v2463 = vadd.f32 %v2386, %v2462
    %v2464 = vpop.f32.mrb[0].mxu0
    %v2465 = vadd.f32 %v2388, %v2464
    %2466 = vmatprep.mubr.f32.mxu0 %v54
    %2467 = vmatmul.mubr.f32.gmra.mrb[0].mxu0 %v53
    %v2468 = vpop.f32.mrb[0].mxu0
    %v2469 = vadd.f32 %v2392, %v2468
    %v2470 = vpop.f32.mrb[0].mxu0
    %v2471 = vadd.f32 %v2394, %v2470
    %2472 = vdwg.mxu0
    %2473 = vmatprep.subr.mxu0 %v960
    %2474 = vmatpush1.msra.mxu0 %v959
    %2475 = vmatprep.subr.mxu0 %v974
    %2476 = vmatpush1.msra.mxu0 %v973
    %2477 = vmatprep.subr.mxu0 %v988
    %2478 = vmatpush1.msra.mxu0 %v987
    %2479 = vmatprep.subr.mxu0 %v1002
    %2480 = vmatpush1.msra.mxu0 %v1001
    %2481 = vmatprep.subr.mxu0 %v1016
    %2482 = vmatpush1.msra.mxu0 %v1015
    %2483 = vmatprep.subr.mxu0 %v1030
    %2484 = vmatpush1.msra.mxu0 %v1029
    %2485 = vmatprep.subr.mxu0 %v1044
    %2486 = vmatpush1.msra.mxu0 %v1043
    %2487 = vmatprep.subr.mxu0 %v1058
    %2488 = vmatpush1.msra.mxu0 %v1057
    %2489 = vmatprep.subr.mxu0 %v1072
    %2490 = vmatpush1.msra.mxu0 %v1071
    %2491 = vmatprep.subr.mxu0 %v1086
    %2492 = vmatpush1.msra.mxu0 %v1085
    %2493 = vmatprep.subr.mxu0 %v1100
    %2494 = vmatpush1.msra.mxu0 %v1099
    %2495 = vmatprep.subr.mxu0 %v1114
    %2496 = vmatpush1.msra.mxu0 %v1113
    %2497 = vmatprep.subr.mxu0 %v1128
    %2498 = vmatpush1.msra.mxu0 %v1127
    %2499 = vmatprep.subr.mxu0 %v1142
    %2500 = vmatpush1.msra.mxu0 %v1141
    %2501 = vmatprep.subr.mxu0 %v1156
    %2502 = vmatpush1.msra.mxu0 %v1155
    %2503 = vmatprep.subr.mxu0 %v1170
    %2504 = vmatpush1.msra.mxu0 %v1169
    %2505 = vmatprep.subr.mxu0 %v1184
    %2506 = vmatpush1.msra.mxu0 %v1183
    %2507 = vmatprep.subr.mxu0 %v1198
    %2508 = vmatpush1.msra.mxu0 %v1197
    %2509 = vmatprep.subr.mxu0 %v1212
    %2510 = vmatpush1.msra.mxu0 %v1211
    %2511 = vmatprep.subr.mxu0 %v1226
    %2512 = vmatpush1.msra.mxu0 %v1225
    %2513 = vmatprep.subr.mxu0 %v1240
    %2514 = vmatpush1.msra.mxu0 %v1239
    %2515 = vmatprep.subr.mxu0 %v1254
    %2516 = vmatpush1.msra.mxu0 %v1253
    %2517 = vmatprep.subr.mxu0 %v1268
    %2518 = vmatpush1.msra.mxu0 %v1267
    %2519 = vmatprep.subr.mxu0 %v1282
    %2520 = vmatpush1.msra.mxu0 %v1281
    %2521 = vmatprep.subr.mxu0 %v1296
    %2522 = vmatpush1.msra.mxu0 %v1295
    %2523 = vmatprep.subr.mxu0 %v1310
    %2524 = vmatpush1.msra.mxu0 %v1309
    %2525 = vmatprep.subr.mxu0 %v1324
    %2526 = vmatpush1.msra.mxu0 %v1323
    %2527 = vmatprep.subr.mxu0 %v1338
    %2528 = vmatpush1.msra.mxu0 %v1337
    %2529 = vmatprep.subr.mxu0 %v1352
    %2530 = vmatpush1.msra.mxu0 %v1351
    %2531 = vmatprep.subr.mxu0 %v1366
    %2532 = vmatpush1.msra.mxu0 %v1365
    %2533 = vmatprep.subr.mxu0 %v1380
    %2534 = vmatpush1.msra.mxu0 %v1379
    %2535 = vmatprep.subr.mxu0 %v1394
    %2536 = vmatpush1.msra.mxu0 %v1393
    %2537 = vmatprep.mubr.f32.mxu0 %v48
    %2538 = vmatmul.mubr.f32.gmra.mrb[0].mxu0 %v47
    %v2539 = vpop.f32.mrb[0].mxu0
    %v2540 = vadd.f32 %v2463, %v2539
    %v2541 = vpop.f32.mrb[0].mxu0
    %v2542 = vadd.f32 %v2465, %v2541
    %2543 = vmatprep.mubr.f32.mxu0 %v56
    %2544 = vmatmul.mubr.f32.gmra.mrb[0].mxu0 %v55
    %v2545 = vpop.f32.mrb[0].mxu0
    %v2546 = vadd.f32 %v2469, %v2545
    %v2547 = vpop.f32.mrb[0].mxu0
    %v2548 = vadd.f32 %v2471, %v2547
    %2549 = vdwg.mxu0
    %2550 = vmatprep.subr.mxu0 %v1408
    %2551 = vmatpush1.msra.mxu0 %v1407
    %2552 = vmatprep.subr.mxu0 %v1422
    %2553 = vmatpush1.msra.mxu0 %v1421
    %2554 = vmatprep.subr.mxu0 %v1436
    %2555 = vmatpush1.msra.mxu0 %v1435
    %2556 = vmatprep.subr.mxu0 %v1450
    %2557 = vmatpush1.msra.mxu0 %v1449
    %2558 = vmatprep.subr.mxu0 %v1464
    %2559 = vmatpush1.msra.mxu0 %v1463
    %2560 = vmatprep.subr.mxu0 %v1478
    %2561 = vmatpush1.msra.mxu0 %v1477
    %2562 = vmatprep.subr.mxu0 %v1492
    %2563 = vmatpush1.msra.mxu0 %v1491
    %2564 = vmatprep.subr.mxu0 %v1506
    %2565 = vmatpush1.msra.mxu0 %v1505
    %2566 = vmatprep.subr.mxu0 %v1520
    %2567 = vmatpush1.msra.mxu0 %v1519
    %2568 = vmatprep.subr.mxu0 %v1534
    %2569 = vmatpush1.msra.mxu0 %v1533
    %2570 = vmatprep.subr.mxu0 %v1548
    %2571 = vmatpush1.msra.mxu0 %v1547
    %2572 = vmatprep.subr.mxu0 %v1562
    %2573 = vmatpush1.msra.mxu0 %v1561
    %2574 = vmatprep.subr.mxu0 %v1576
    %2575 = vmatpush1.msra.mxu0 %v1575
    %2576 = vmatprep.subr.mxu0 %v1590
    %2577 = vmatpush1.msra.mxu0 %v1589
    %2578 = vmatprep.subr.mxu0 %v1604
    %2579 = vmatpush1.msra.mxu0 %v1603
    %2580 = vmatprep.subr.mxu0 %v1618
    %2581 = vmatpush1.msra.mxu0 %v1617
    %2582 = vmatprep.subr.mxu0 %v1677
    %2583 = vmatpush1.msra.mxu0 %v1674
    %2584 = vmatprep.subr.mxu0 0.0
    %2585 = vmatpush1.msra.mxu0 0.0
    %2586 = vmatprep.subr.mxu0 0.0
    %2587 = vmatpush1.msra.mxu0 0.0
    %2588 = vmatprep.subr.mxu0 0.0
    %2589 = vmatpush1.msra.mxu0 0.0
    %2590 = vmatprep.subr.mxu0 0.0
    %2591 = vmatpush1.msra.mxu0 0.0
    %2592 = vmatprep.subr.mxu0 0.0
    %2593 = vmatpush1.msra.mxu0 0.0
    %2594 = vmatprep.subr.mxu0 0.0
    %2595 = vmatpush1.msra.mxu0 0.0
    %2596 = vmatprep.subr.mxu0 0.0
    %2597 = vmatpush1.msra.mxu0 0.0
    %2598 = vmatprep.subr.mxu0 0.0
    %2599 = vmatpush1.msra.mxu0 0.0
    %2600 = vmatprep.subr.mxu0 0.0
    %2601 = vmatpush1.msra.mxu0 0.0
    %2602 = vmatprep.subr.mxu0 0.0
    %2603 = vmatpush1.msra.mxu0 0.0
    %2604 = vmatprep.subr.mxu0 0.0
    %2605 = vmatpush1.msra.mxu0 0.0
    %2606 = vmatprep.subr.mxu0 0.0
    %2607 = vmatpush1.msra.mxu0 0.0
    %2608 = vmatprep.subr.mxu0 0.0
    %2609 = vmatpush1.msra.mxu0 0.0
    %2610 = vmatprep.subr.mxu0 0.0
    %2611 = vmatpush1.msra.mxu0 0.0
    %2612 = vmatprep.subr.mxu0 0.0
    %2613 = vmatpush1.msra.mxu0 0.0
    %2614 = vmatprep.mubr.f32.mxu0 %v1655
    %2615 = vmatmul.mubr.f32.gmra.mrb[0].mxu0 %v49
    %v2616 = vpop.f32.mrb[0].mxu0
    %v2617 = vadd.f32 %v2540, %v2616
    %v2618 = vpop.f32.mrb[0].mxu0
    %v2619 = vadd.f32 %v2542, %v2618
    %2620 = vmatprep.mubr.f32.mxu0 %v1658
    %2621 = vmatmul.mubr.f32.gmra.mrb[0].mxu0 %v57
    %v2622 = vpop.f32.mrb[0].mxu0
    %v2623 = vadd.f32 %v2546, %v2622
    %v2624 = vpop.f32.mrb[0].mxu0
    %v2625 = vadd.f32 %v2548, %v2624
    %2626 = vdwg.mxu0
    %2627 = vmatprep.subr.mxu0 %v66
    %2628 = vmatpush1.msra.mxu0 %v65
    %2629 = vmatprep.subr.mxu0 %v80
    %2630 = vmatpush1.msra.mxu0 %v79
    %2631 = vmatprep.subr.mxu0 %v94
    %2632 = vmatpush1.msra.mxu0 %v93
    %2633 = vmatprep.subr.mxu0 %v108
    %2634 = vmatpush1.msra.mxu0 %v107
    %2635 = vmatprep.subr.mxu0 %v122
    %2636 = vmatpush1.msra.mxu0 %v121
    %2637 = vmatprep.subr.mxu0 %v136
    %2638 = vmatpush1.msra.mxu0 %v135
    %2639 = vmatprep.subr.mxu0 %v150
    %2640 = vmatpush1.msra.mxu0 %v149
    %2641 = vmatprep.subr.mxu0 %v164
    %2642 = vmatpush1.msra.mxu0 %v163
    %2643 = vmatprep.subr.mxu0 %v178
    %2644 = vmatpush1.msra.mxu0 %v177
    %2645 = vmatprep.subr.mxu0 %v192
    %2646 = vmatpush1.msra.mxu0 %v191
    %2647 = vmatprep.subr.mxu0 %v206
    %2648 = vmatpush1.msra.mxu0 %v205
    %2649 = vmatprep.subr.mxu0 %v220
    %2650 = vmatpush1.msra.mxu0 %v219
    %2651 = vmatprep.subr.mxu0 %v234
    %2652 = vmatpush1.msra.mxu0 %v233
    %2653 = vmatprep.subr.mxu0 %v248
    %2654 = vmatpush1.msra.mxu0 %v247
    %2655 = vmatprep.subr.mxu0 %v262
    %2656 = vmatpush1.msra.mxu0 %v261
    %2657 = vmatprep.subr.mxu0 %v276
    %2658 = vmatpush1.msra.mxu0 %v275
    %2659 = vmatprep.subr.mxu0 %v290
    %2660 = vmatpush1.msra.mxu0 %v289
    %2661 = vmatprep.subr.mxu0 %v304
    %2662 = vmatpush1.msra.mxu0 %v303
    %2663 = vmatprep.subr.mxu0 %v318
    %2664 = vmatpush1.msra.mxu0 %v317
    %2665 = vmatprep.subr.mxu0 %v332
    %2666 = vmatpush1.msra.mxu0 %v331
    %2667 = vmatprep.subr.mxu0 %v346
    %2668 = vmatpush1.msra.mxu0 %v345
    %2669 = vmatprep.subr.mxu0 %v360
    %2670 = vmatpush1.msra.mxu0 %v359
    %2671 = vmatprep.subr.mxu0 %v374
    %2672 = vmatpush1.msra.mxu0 %v373
    %2673 = vmatprep.subr.mxu0 %v388
    %2674 = vmatpush1.msra.mxu0 %v387
    %2675 = vmatprep.subr.mxu0 %v402
    %2676 = vmatpush1.msra.mxu0 %v401
    %2677 = vmatprep.subr.mxu0 %v416
    %2678 = vmatpush1.msra.mxu0 %v415
    %2679 = vmatprep.subr.mxu0 %v430
    %2680 = vmatpush1.msra.mxu0 %v429
    %2681 = vmatprep.subr.mxu0 %v444
    %2682 = vmatpush1.msra.mxu0 %v443
    %2683 = vmatprep.subr.mxu0 %v458
    %2684 = vmatpush1.msra.mxu0 %v457
    %2685 = vmatprep.subr.mxu0 %v472
    %2686 = vmatpush1.msra.mxu0 %v471
    %2687 = vmatprep.subr.mxu0 %v486
    %2688 = vmatpush1.msra.mxu0 %v485
    %2689 = vmatprep.subr.mxu0 %v500
    %2690 = vmatpush1.msra.mxu0 %v499
    %2691 = vmatprep.mubr.f32.mxu0 %v44
    %2692 = vmatmul.mubr.f32.gmra.mrb[0].mxu0 %v43
    %v2693 = vpop.f32.mrb[0].mxu0
    %v2694 = vadd.f32 %v1646, %v2693
    %v2695 = vpop.f32.mrb[0].mxu0
    %v2696 = vadd.f32 %v1646, %v2695
    %2697 = vmatprep.mubr.f32.mxu0 %v52
    %2698 = vmatmul.mubr.f32.gmra.mrb[0].mxu0 %v51
    %v2699 = vpop.f32.mrb[0].mxu0
    %v2700 = vadd.f32 %v1651, %v2699
    %v2701 = vpop.f32.mrb[0].mxu0
    %v2702 = vadd.f32 %v1651, %v2701
    %2703 = vdwg.mxu0
    %2704 = vmatprep.subr.mxu0 %v514
    %2705 = vmatpush1.msra.mxu0 %v513
    %2706 = vmatprep.subr.mxu0 %v528
    %2707 = vmatpush1.msra.mxu0 %v527
    %2708 = vmatprep.subr.mxu0 %v542
    %2709 = vmatpush1.msra.mxu0 %v541
    %2710 = vmatprep.subr.mxu0 %v556
    %2711 = vmatpush1.msra.mxu0 %v555
    %2712 = vmatprep.subr.mxu0 %v570
    %2713 = vmatpush1.msra.mxu0 %v569
    %2714 = vmatprep.subr.mxu0 %v584
    %2715 = vmatpush1.msra.mxu0 %v583
    %2716 = vmatprep.subr.mxu0 %v598
    %2717 = vmatpush1.msra.mxu0 %v597
    %2718 = vmatprep.subr.mxu0 %v612
    %2719 = vmatpush1.msra.mxu0 %v611
    %2720 = vmatprep.subr.mxu0 %v626
    %2721 = vmatpush1.msra.mxu0 %v625
    %2722 = vmatprep.subr.mxu0 %v640
    %2723 = vmatpush1.msra.mxu0 %v639
    %2724 = vmatprep.subr.mxu0 %v654
    %2725 = vmatpush1.msra.mxu0 %v653
    %2726 = vmatprep.subr.mxu0 %v668
    %2727 = vmatpush1.msra.mxu0 %v667
    %2728 = vmatprep.subr.mxu0 %v682
    %2729 = vmatpush1.msra.mxu0 %v681
    %2730 = vmatprep.subr.mxu0 %v696
    %2731 = vmatpush1.msra.mxu0 %v695
    %2732 = vmatprep.subr.mxu0 %v710
    %2733 = vmatpush1.msra.mxu0 %v709
    %2734 = vmatprep.subr.mxu0 %v724
    %2735 = vmatpush1.msra.mxu0 %v723
    %2736 = vmatprep.subr.mxu0 %v738
    %2737 = vmatpush1.msra.mxu0 %v737
    %2738 = vmatprep.subr.mxu0 %v752
    %2739 = vmatpush1.msra.mxu0 %v751
    %2740 = vmatprep.subr.mxu0 %v766
    %2741 = vmatpush1.msra.mxu0 %v765
    %2742 = vmatprep.subr.mxu0 %v780
    %2743 = vmatpush1.msra.mxu0 %v779
    %2744 = vmatprep.subr.mxu0 %v794
    %2745 = vmatpush1.msra.mxu0 %v793
    %2746 = vmatprep.subr.mxu0 %v808
    %2747 = vmatpush1.msra.mxu0 %v807
    %2748 = vmatprep.subr.mxu0 %v822
    %2749 = vmatpush1.msra.mxu0 %v821
    %2750 = vmatprep.subr.mxu0 %v836
    %2751 = vmatpush1.msra.mxu0 %v835
    %2752 = vmatprep.subr.mxu0 %v850
    %2753 = vmatpush1.msra.mxu0 %v849
    %2754 = vmatprep.subr.mxu0 %v864
    %2755 = vmatpush1.msra.mxu0 %v863
    %2756 = vmatprep.subr.mxu0 %v878
    %2757 = vmatpush1.msra.mxu0 %v877
    %2758 = vmatprep.subr.mxu0 %v892
    %2759 = vmatpush1.msra.mxu0 %v891
    %2760 = vmatprep.subr.mxu0 %v906
    %2761 = vmatpush1.msra.mxu0 %v905
    %2762 = vmatprep.subr.mxu0 %v920
    %2763 = vmatpush1.msra.mxu0 %v919
    %2764 = vmatprep.subr.mxu0 %v934
    %2765 = vmatpush1.msra.mxu0 %v933
    %2766 = vmatprep.subr.mxu0 %v948
    %2767 = vmatpush1.msra.mxu0 %v947
    %2768 = vmatprep.mubr.f32.mxu0 %v46
    %2769 = vmatmul.mubr.f32.gmra.mrb[0].mxu0 %v45
    %v2770 = vpop.f32.mrb[0].mxu0
    %v2771 = vadd.f32 %v2694, %v2770
    %v2772 = vpop.f32.mrb[0].mxu0
    %v2773 = vadd.f32 %v2696, %v2772
    %2774 = vmatprep.mubr.f32.mxu0 %v54
    %2775 = vmatmul.mubr.f32.gmra.mrb[0].mxu0 %v53
    %v2776 = vpop.f32.mrb[0].mxu0
    %v2777 = vadd.f32 %v2700, %v2776
    %v2778 = vpop.f32.mrb[0].mxu0
    %v2779 = vadd.f32 %v2702, %v2778
    %2780 = vdwg.mxu0
    %2781 = vmatprep.subr.mxu0 %v962
    %2782 = vmatpush1.msra.mxu0 %v961
    %2783 = vmatprep.subr.mxu0 %v976
    %2784 = vmatpush1.msra.mxu0 %v975
    %2785 = vmatprep.subr.mxu0 %v990
    %2786 = vmatpush1.msra.mxu0 %v989
    %2787 = vmatprep.subr.mxu0 %v1004
    %2788 = vmatpush1.msra.mxu0 %v1003
    %2789 = vmatprep.subr.mxu0 %v1018
    %2790 = vmatpush1.msra.mxu0 %v1017
    %2791 = vmatprep.subr.mxu0 %v1032
    %2792 = vmatpush1.msra.mxu0 %v1031
    %2793 = vmatprep.subr.mxu0 %v1046
    %2794 = vmatpush1.msra.mxu0 %v1045
    %2795 = vmatprep.subr.mxu0 %v1060
    %2796 = vmatpush1.msra.mxu0 %v1059
    %2797 = vmatprep.subr.mxu0 %v1074
    %2798 = vmatpush1.msra.mxu0 %v1073
    %2799 = vmatprep.subr.mxu0 %v1088
    %2800 = vmatpush1.msra.mxu0 %v1087
    %2801 = vmatprep.subr.mxu0 %v1102
    %2802 = vmatpush1.msra.mxu0 %v1101
    %2803 = vmatprep.subr.mxu0 %v1116
    %2804 = vmatpush1.msra.mxu0 %v1115
    %2805 = vmatprep.subr.mxu0 %v1130
    %2806 = vmatpush1.msra.mxu0 %v1129
    %2807 = vmatprep.subr.mxu0 %v1144
    %2808 = vmatpush1.msra.mxu0 %v1143
    %2809 = vmatprep.subr.mxu0 %v1158
    %2810 = vmatpush1.msra.mxu0 %v1157
    %2811 = vmatprep.subr.mxu0 %v1172
    %2812 = vmatpush1.msra.mxu0 %v1171
    %2813 = vmatprep.subr.mxu0 %v1186
    %2814 = vmatpush1.msra.mxu0 %v1185
    %2815 = vmatprep.subr.mxu0 %v1200
    %2816 = vmatpush1.msra.mxu0 %v1199
    %2817 = vmatprep.subr.mxu0 %v1214
    %2818 = vmatpush1.msra.mxu0 %v1213
    %2819 = vmatprep.subr.mxu0 %v1228
    %2820 = vmatpush1.msra.mxu0 %v1227
    %2821 = vmatprep.subr.mxu0 %v1242
    %2822 = vmatpush1.msra.mxu0 %v1241
    %2823 = vmatprep.subr.mxu0 %v1256
    %2824 = vmatpush1.msra.mxu0 %v1255
    %2825 = vmatprep.subr.mxu0 %v1270
    %2826 = vmatpush1.msra.mxu0 %v1269
    %2827 = vmatprep.subr.mxu0 %v1284
    %2828 = vmatpush1.msra.mxu0 %v1283
    %2829 = vmatprep.subr.mxu0 %v1298
    %2830 = vmatpush1.msra.mxu0 %v1297
    %2831 = vmatprep.subr.mxu0 %v1312
    %2832 = vmatpush1.msra.mxu0 %v1311
    %2833 = vmatprep.subr.mxu0 %v1326
    %2834 = vmatpush1.msra.mxu0 %v1325
    %2835 = vmatprep.subr.mxu0 %v1340
    %2836 = vmatpush1.msra.mxu0 %v1339
    %2837 = vmatprep.subr.mxu0 %v1354
    %2838 = vmatpush1.msra.mxu0 %v1353
    %2839 = vmatprep.subr.mxu0 %v1368
    %2840 = vmatpush1.msra.mxu0 %v1367
    %2841 = vmatprep.subr.mxu0 %v1382
    %2842 = vmatpush1.msra.mxu0 %v1381
    %2843 = vmatprep.subr.mxu0 %v1396
    %2844 = vmatpush1.msra.mxu0 %v1395
    %2845 = vmatprep.mubr.f32.mxu0 %v48
    %2846 = vmatmul.mubr.f32.gmra.mrb[0].mxu0 %v47
    %v2847 = vpop.f32.mrb[0].mxu0
    %v2848 = vadd.f32 %v2771, %v2847
    %v2849 = vpop.f32.mrb[0].mxu0
    %v2850 = vadd.f32 %v2773, %v2849
    %2851 = vmatprep.mubr.f32.mxu0 %v56
    %2852 = vmatmul.mubr.f32.gmra.mrb[0].mxu0 %v55
    %v2853 = vpop.f32.mrb[0].mxu0
    %v2854 = vadd.f32 %v2777, %v2853
    %v2855 = vpop.f32.mrb[0].mxu0
    %v2856 = vadd.f32 %v2779, %v2855
    %2857 = vdwg.mxu0
    %2858 = vmatprep.subr.mxu0 %v1410
    %2859 = vmatpush1.msra.mxu0 %v1409
    %2860 = vmatprep.subr.mxu0 %v1424
    %2861 = vmatpush1.msra.mxu0 %v1423
    %2862 = vmatprep.subr.mxu0 %v1438
    %2863 = vmatpush1.msra.mxu0 %v1437
    %2864 = vmatprep.subr.mxu0 %v1452
    %2865 = vmatpush1.msra.mxu0 %v1451
    %2866 = vmatprep.subr.mxu0 %v1466
    %2867 = vmatpush1.msra.mxu0 %v1465
    %2868 = vmatprep.subr.mxu0 %v1480
    %2869 = vmatpush1.msra.mxu0 %v1479
    %2870 = vmatprep.subr.mxu0 %v1494
    %2871 = vmatpush1.msra.mxu0 %v1493
    %2872 = vmatprep.subr.mxu0 %v1508
    %2873 = vmatpush1.msra.mxu0 %v1507
    %2874 = vmatprep.subr.mxu0 %v1522
    %2875 = vmatpush1.msra.mxu0 %v1521
    %2876 = vmatprep.subr.mxu0 %v1536
    %2877 = vmatpush1.msra.mxu0 %v1535
    %2878 = vmatprep.subr.mxu0 %v1550
    %2879 = vmatpush1.msra.mxu0 %v1549
    %2880 = vmatprep.subr.mxu0 %v1564
    %2881 = vmatpush1.msra.mxu0 %v1563
    %2882 = vmatprep.subr.mxu0 %v1578
    %2883 = vmatpush1.msra.mxu0 %v1577
    %2884 = vmatprep.subr.mxu0 %v1592
    %2885 = vmatpush1.msra.mxu0 %v1591
    %2886 = vmatprep.subr.mxu0 %v1606
    %2887 = vmatpush1.msra.mxu0 %v1605
    %2888 = vmatprep.subr.mxu0 %v1620
    %2889 = vmatpush1.msra.mxu0 %v1619
    %2890 = vmatprep.subr.mxu0 %v1683
    %2891 = vmatpush1.msra.mxu0 %v1680
    %2892 = vmatprep.subr.mxu0 0.0
    %2893 = vmatpush1.msra.mxu0 0.0
    %2894 = vmatprep.subr.mxu0 0.0
    %2895 = vmatpush1.msra.mxu0 0.0
    %2896 = vmatprep.subr.mxu0 0.0
    %2897 = vmatpush1.msra.mxu0 0.0
    %2898 = vmatprep.subr.mxu0 0.0
    %2899 = vmatpush1.msra.mxu0 0.0
    %2900 = vmatprep.subr.mxu0 0.0
    %2901 = vmatpush1.msra.mxu0 0.0
    %2902 = vmatprep.subr.mxu0 0.0
    %2903 = vmatpush1.msra.mxu0 0.0
    %2904 = vmatprep.subr.mxu0 0.0
    %2905 = vmatpush1.msra.mxu0 0.0
    %2906 = vmatprep.subr.mxu0 0.0
    %2907 = vmatpush1.msra.mxu0 0.0
    %2908 = vmatprep.subr.mxu0 0.0
    %2909 = vmatpush1.msra.mxu0 0.0
    %2910 = vmatprep.subr.mxu0 0.0
    %2911 = vmatpush1.msra.mxu0 0.0
    %2912 = vmatprep.subr.mxu0 0.0
    %2913 = vmatpush1.msra.mxu0 0.0
    %2914 = vmatprep.subr.mxu0 0.0
    %2915 = vmatpush1.msra.mxu0 0.0
    %2916 = vmatprep.subr.mxu0 0.0
    %2917 = vmatpush1.msra.mxu0 0.0
    %2918 = vmatprep.subr.mxu0 0.0
    %2919 = vmatpush1.msra.mxu0 0.0
    %2920 = vmatprep.subr.mxu0 0.0
    %2921 = vmatpush1.msra.mxu0 0.0
    %2922 = vmatprep.mubr.f32.mxu0 %v1655
    %2923 = vmatmul.mubr.f32.gmra.mrb[0].mxu0 %v49
    %v2924 = vpop.f32.mrb[0].mxu0
    %v2925 = vadd.f32 %v2848, %v2924
    %v2926 = vpop.f32.mrb[0].mxu0
    %v2927 = vadd.f32 %v2850, %v2926
    %2928 = vmatprep.mubr.f32.mxu0 %v1658
    %2929 = vmatmul.mubr.f32.gmra.mrb[0].mxu0 %v57
    %v2930 = vpop.f32.mrb[0].mxu0
    %v2931 = vadd.f32 %v2854, %v2930
    %v2932 = vpop.f32.mrb[0].mxu0
    %v2933 = vadd.f32 %v2856, %v2932
    %2934 = vdwg.mxu0
    %2935 = vmatprep.subr.mxu0 %v68
    %2936 = vmatpush1.msra.mxu0 %v67
    %2937 = vmatprep.subr.mxu0 %v82
    %2938 = vmatpush1.msra.mxu0 %v81
    %2939 = vmatprep.subr.mxu0 %v96
    %2940 = vmatpush1.msra.mxu0 %v95
    %2941 = vmatprep.subr.mxu0 %v110
    %2942 = vmatpush1.msra.mxu0 %v109
    %2943 = vmatprep.subr.mxu0 %v124
    %2944 = vmatpush1.msra.mxu0 %v123
    %2945 = vmatprep.subr.mxu0 %v138
    %2946 = vmatpush1.msra.mxu0 %v137
    %2947 = vmatprep.subr.mxu0 %v152
    %2948 = vmatpush1.msra.mxu0 %v151
    %2949 = vmatprep.subr.mxu0 %v166
    %2950 = vmatpush1.msra.mxu0 %v165
    %2951 = vmatprep.subr.mxu0 %v180
    %2952 = vmatpush1.msra.mxu0 %v179
    %2953 = vmatprep.subr.mxu0 %v194
    %2954 = vmatpush1.msra.mxu0 %v193
    %2955 = vmatprep.subr.mxu0 %v208
    %2956 = vmatpush1.msra.mxu0 %v207
    %2957 = vmatprep.subr.mxu0 %v222
    %2958 = vmatpush1.msra.mxu0 %v221
    %2959 = vmatprep.subr.mxu0 %v236
    %2960 = vmatpush1.msra.mxu0 %v235
    %2961 = vmatprep.subr.mxu0 %v250
    %2962 = vmatpush1.msra.mxu0 %v249
    %2963 = vmatprep.subr.mxu0 %v264
    %2964 = vmatpush1.msra.mxu0 %v263
    %2965 = vmatprep.subr.mxu0 %v278
    %2966 = vmatpush1.msra.mxu0 %v277
    %2967 = vmatprep.subr.mxu0 %v292
    %2968 = vmatpush1.msra.mxu0 %v291
    %2969 = vmatprep.subr.mxu0 %v306
    %2970 = vmatpush1.msra.mxu0 %v305
    %2971 = vmatprep.subr.mxu0 %v320
    %2972 = vmatpush1.msra.mxu0 %v319
    %2973 = vmatprep.subr.mxu0 %v334
    %2974 = vmatpush1.msra.mxu0 %v333
    %2975 = vmatprep.subr.mxu0 %v348
    %2976 = vmatpush1.msra.mxu0 %v347
    %2977 = vmatprep.subr.mxu0 %v362
    %2978 = vmatpush1.msra.mxu0 %v361
    %2979 = vmatprep.subr.mxu0 %v376
    %2980 = vmatpush1.msra.mxu0 %v375
    %2981 = vmatprep.subr.mxu0 %v390
    %2982 = vmatpush1.msra.mxu0 %v389
    %2983 = vmatprep.subr.mxu0 %v404
    %2984 = vmatpush1.msra.mxu0 %v403
    %2985 = vmatprep.subr.mxu0 %v418
    %2986 = vmatpush1.msra.mxu0 %v417
    %2987 = vmatprep.subr.mxu0 %v432
    %2988 = vmatpush1.msra.mxu0 %v431
    %2989 = vmatprep.subr.mxu0 %v446
    %2990 = vmatpush1.msra.mxu0 %v445
    %2991 = vmatprep.subr.mxu0 %v460
    %2992 = vmatpush1.msra.mxu0 %v459
    %2993 = vmatprep.subr.mxu0 %v474
    %2994 = vmatpush1.msra.mxu0 %v473
    %2995 = vmatprep.subr.mxu0 %v488
    %2996 = vmatpush1.msra.mxu0 %v487
    %2997 = vmatprep.subr.mxu0 %v502
    %2998 = vmatpush1.msra.mxu0 %v501
    %2999 = vmatprep.mubr.f32.mxu0 %v44
    %3000 = vmatmul.mubr.f32.gmra.mrb[0].mxu0 %v43
    %v3001 = vpop.f32.mrb[0].mxu0
    %v3002 = vadd.f32 %v1646, %v3001
    %v3003 = vpop.f32.mrb[0].mxu0
    %v3004 = vadd.f32 %v1646, %v3003
    %3005 = vmatprep.mubr.f32.mxu0 %v52
    %3006 = vmatmul.mubr.f32.gmra.mrb[0].mxu0 %v51
    %v3007 = vpop.f32.mrb[0].mxu0
    %v3008 = vadd.f32 %v1651, %v3007
    %v3009 = vpop.f32.mrb[0].mxu0
    %v3010 = vadd.f32 %v1651, %v3009
    %3011 = vdwg.mxu0
    %3012 = vmatprep.subr.mxu0 %v516
    %3013 = vmatpush1.msra.mxu0 %v515
    %3014 = vmatprep.subr.mxu0 %v530
    %3015 = vmatpush1.msra.mxu0 %v529
    %3016 = vmatprep.subr.mxu0 %v544
    %3017 = vmatpush1.msra.mxu0 %v543
    %3018 = vmatprep.subr.mxu0 %v558
    %3019 = vmatpush1.msra.mxu0 %v557
    %3020 = vmatprep.subr.mxu0 %v572
    %3021 = vmatpush1.msra.mxu0 %v571
    %3022 = vmatprep.subr.mxu0 %v586
    %3023 = vmatpush1.msra.mxu0 %v585
    %3024 = vmatprep.subr.mxu0 %v600
    %3025 = vmatpush1.msra.mxu0 %v599
    %3026 = vmatprep.subr.mxu0 %v614
    %3027 = vmatpush1.msra.mxu0 %v613
    %3028 = vmatprep.subr.mxu0 %v628
    %3029 = vmatpush1.msra.mxu0 %v627
    %3030 = vmatprep.subr.mxu0 %v642
    %3031 = vmatpush1.msra.mxu0 %v641
    %3032 = vmatprep.subr.mxu0 %v656
    %3033 = vmatpush1.msra.mxu0 %v655
    %3034 = vmatprep.subr.mxu0 %v670
    %3035 = vmatpush1.msra.mxu0 %v669
    %3036 = vmatprep.subr.mxu0 %v684
    %3037 = vmatpush1.msra.mxu0 %v683
    %3038 = vmatprep.subr.mxu0 %v698
    %3039 = vmatpush1.msra.mxu0 %v697
    %3040 = vmatprep.subr.mxu0 %v712
    %3041 = vmatpush1.msra.mxu0 %v711
    %3042 = vmatprep.subr.mxu0 %v726
    %3043 = vmatpush1.msra.mxu0 %v725
    %3044 = vmatprep.subr.mxu0 %v740
    %3045 = vmatpush1.msra.mxu0 %v739
    %3046 = vmatprep.subr.mxu0 %v754
    %3047 = vmatpush1.msra.mxu0 %v753
    %3048 = vmatprep.subr.mxu0 %v768
    %3049 = vmatpush1.msra.mxu0 %v767
    %3050 = vmatprep.subr.mxu0 %v782
    %3051 = vmatpush1.msra.mxu0 %v781
    %3052 = vmatprep.subr.mxu0 %v796
    %3053 = vmatpush1.msra.mxu0 %v795
    %3054 = vmatprep.subr.mxu0 %v810
    %3055 = vmatpush1.msra.mxu0 %v809
    %3056 = vmatprep.subr.mxu0 %v824
    %3057 = vmatpush1.msra.mxu0 %v823
    %3058 = vmatprep.subr.mxu0 %v838
    %3059 = vmatpush1.msra.mxu0 %v837
    %3060 = vmatprep.subr.mxu0 %v852
    %3061 = vmatpush1.msra.mxu0 %v851
    %3062 = vmatprep.subr.mxu0 %v866
    %3063 = vmatpush1.msra.mxu0 %v865
    %3064 = vmatprep.subr.mxu0 %v880
    %3065 = vmatpush1.msra.mxu0 %v879
    %3066 = vmatprep.subr.mxu0 %v894
    %3067 = vmatpush1.msra.mxu0 %v893
    %3068 = vmatprep.subr.mxu0 %v908
    %3069 = vmatpush1.msra.mxu0 %v907
    %3070 = vmatprep.subr.mxu0 %v922
    %3071 = vmatpush1.msra.mxu0 %v921
    %3072 = vmatprep.subr.mxu0 %v936
    %3073 = vmatpush1.msra.mxu0 %v935
    %3074 = vmatprep.subr.mxu0 %v950
    %3075 = vmatpush1.msra.mxu0 %v949
    %3076 = vmatprep.mubr.f32.mxu0 %v46
    %3077 = vmatmul.mubr.f32.gmra.mrb[0].mxu0 %v45
    %v3078 = vpop.f32.mrb[0].mxu0
    %v3079 = vadd.f32 %v3002, %v3078
    %v3080 = vpop.f32.mrb[0].mxu0
    %v3081 = vadd.f32 %v3004, %v3080
    %3082 = vmatprep.mubr.f32.mxu0 %v54
    %3083 = vmatmul.mubr.f32.gmra.mrb[0].mxu0 %v53
    %v3084 = vpop.f32.mrb[0].mxu0
    %v3085 = vadd.f32 %v3008, %v3084
    %v3086 = vpop.f32.mrb[0].mxu0
    %v3087 = vadd.f32 %v3010, %v3086
    %3088 = vdwg.mxu0
    %3089 = vmatprep.subr.mxu0 %v964
    %3090 = vmatpush1.msra.mxu0 %v963
    %3091 = vmatprep.subr.mxu0 %v978
    %3092 = vmatpush1.msra.mxu0 %v977
    %3093 = vmatprep.subr.mxu0 %v992
    %3094 = vmatpush1.msra.mxu0 %v991
    %3095 = vmatprep.subr.mxu0 %v1006
    %3096 = vmatpush1.msra.mxu0 %v1005
    %3097 = vmatprep.subr.mxu0 %v1020
    %3098 = vmatpush1.msra.mxu0 %v1019
    %3099 = vmatprep.subr.mxu0 %v1034
    %3100 = vmatpush1.msra.mxu0 %v1033
    %3101 = vmatprep.subr.mxu0 %v1048
    %3102 = vmatpush1.msra.mxu0 %v1047
    %3103 = vmatprep.subr.mxu0 %v1062
    %3104 = vmatpush1.msra.mxu0 %v1061
    %3105 = vmatprep.subr.mxu0 %v1076
    %3106 = vmatpush1.msra.mxu0 %v1075
    %3107 = vmatprep.subr.mxu0 %v1090
    %3108 = vmatpush1.msra.mxu0 %v1089
    %3109 = vmatprep.subr.mxu0 %v1104
    %3110 = vmatpush1.msra.mxu0 %v1103
    %3111 = vmatprep.subr.mxu0 %v1118
    %3112 = vmatpush1.msra.mxu0 %v1117
    %3113 = vmatprep.subr.mxu0 %v1132
    %3114 = vmatpush1.msra.mxu0 %v1131
    %3115 = vmatprep.subr.mxu0 %v1146
    %3116 = vmatpush1.msra.mxu0 %v1145
    %3117 = vmatprep.subr.mxu0 %v1160
    %3118 = vmatpush1.msra.mxu0 %v1159
    %3119 = vmatprep.subr.mxu0 %v1174
    %3120 = vmatpush1.msra.mxu0 %v1173
    %3121 = vmatprep.subr.mxu0 %v1188
    %3122 = vmatpush1.msra.mxu0 %v1187
    %3123 = vmatprep.subr.mxu0 %v1202
    %3124 = vmatpush1.msra.mxu0 %v1201
    %3125 = vmatprep.subr.mxu0 %v1216
    %3126 = vmatpush1.msra.mxu0 %v1215
    %3127 = vmatprep.subr.mxu0 %v1230
    %3128 = vmatpush1.msra.mxu0 %v1229
    %3129 = vmatprep.subr.mxu0 %v1244
    %3130 = vmatpush1.msra.mxu0 %v1243
    %3131 = vmatprep.subr.mxu0 %v1258
    %3132 = vmatpush1.msra.mxu0 %v1257
    %3133 = vmatprep.subr.mxu0 %v1272
    %3134 = vmatpush1.msra.mxu0 %v1271
    %3135 = vmatprep.subr.mxu0 %v1286
    %3136 = vmatpush1.msra.mxu0 %v1285
    %3137 = vmatprep.subr.mxu0 %v1300
    %3138 = vmatpush1.msra.mxu0 %v1299
    %3139 = vmatprep.subr.mxu0 %v1314
    %3140 = vmatpush1.msra.mxu0 %v1313
    %3141 = vmatprep.subr.mxu0 %v1328
    %3142 = vmatpush1.msra.mxu0 %v1327
    %3143 = vmatprep.subr.mxu0 %v1342
    %3144 = vmatpush1.msra.mxu0 %v1341
    %3145 = vmatprep.subr.mxu0 %v1356
    %3146 = vmatpush1.msra.mxu0 %v1355
    %3147 = vmatprep.subr.mxu0 %v1370
    %3148 = vmatpush1.msra.mxu0 %v1369
    %3149 = vmatprep.subr.mxu0 %v1384
    %3150 = vmatpush1.msra.mxu0 %v1383
    %3151 = vmatprep.subr.mxu0 %v1398
    %3152 = vmatpush1.msra.mxu0 %v1397
    %3153 = vmatprep.mubr.f32.mxu0 %v48
    %3154 = vmatmul.mubr.f32.gmra.mrb[0].mxu0 %v47
    %v3155 = vpop.f32.mrb[0].mxu0
    %v3156 = vadd.f32 %v3079, %v3155
    %v3157 = vpop.f32.mrb[0].mxu0
    %v3158 = vadd.f32 %v3081, %v3157
    %3159 = vmatprep.mubr.f32.mxu0 %v56
    %3160 = vmatmul.mubr.f32.gmra.mrb[0].mxu0 %v55
    %v3161 = vpop.f32.mrb[0].mxu0
    %v3162 = vadd.f32 %v3085, %v3161
    %v3163 = vpop.f32.mrb[0].mxu0
    %v3164 = vadd.f32 %v3087, %v3163
    %3165 = vdwg.mxu0
    %3166 = vmatprep.subr.mxu0 %v1412
    %3167 = vmatpush1.msra.mxu0 %v1411
    %3168 = vmatprep.subr.mxu0 %v1426
    %3169 = vmatpush1.msra.mxu0 %v1425
    %3170 = vmatprep.subr.mxu0 %v1440
    %3171 = vmatpush1.msra.mxu0 %v1439
    %3172 = vmatprep.subr.mxu0 %v1454
    %3173 = vmatpush1.msra.mxu0 %v1453
    %3174 = vmatprep.subr.mxu0 %v1468
    %3175 = vmatpush1.msra.mxu0 %v1467
    %3176 = vmatprep.subr.mxu0 %v1482
    %3177 = vmatpush1.msra.mxu0 %v1481
    %3178 = vmatprep.subr.mxu0 %v1496
    %3179 = vmatpush1.msra.mxu0 %v1495
    %3180 = vmatprep.subr.mxu0 %v1510
    %3181 = vmatpush1.msra.mxu0 %v1509
    %3182 = vmatprep.subr.mxu0 %v1524
    %3183 = vmatpush1.msra.mxu0 %v1523
    %3184 = vmatprep.subr.mxu0 %v1538
    %3185 = vmatpush1.msra.mxu0 %v1537
    %3186 = vmatprep.subr.mxu0 %v1552
    %3187 = vmatpush1.msra.mxu0 %v1551
    %3188 = vmatprep.subr.mxu0 %v1566
    %3189 = vmatpush1.msra.mxu0 %v1565
    %3190 = vmatprep.subr.mxu0 %v1580
    %3191 = vmatpush1.msra.mxu0 %v1579
    %3192 = vmatprep.subr.mxu0 %v1594
    %3193 = vmatpush1.msra.mxu0 %v1593
    %3194 = vmatprep.subr.mxu0 %v1608
    %3195 = vmatpush1.msra.mxu0 %v1607
    %3196 = vmatprep.subr.mxu0 %v1622
    %3197 = vmatpush1.msra.mxu0 %v1621
    %3198 = vmatprep.subr.mxu0 %v1689
    %3199 = vmatpush1.msra.mxu0 %v1686
    %3200 = vmatprep.subr.mxu0 0.0
    %3201 = vmatpush1.msra.mxu0 0.0
    %3202 = vmatprep.subr.mxu0 0.0
    %3203 = vmatpush1.msra.mxu0 0.0
    %3204 = vmatprep.subr.mxu0 0.0
    %3205 = vmatpush1.msra.mxu0 0.0
    %3206 = vmatprep.subr.mxu0 0.0
    %3207 = vmatpush1.msra.mxu0 0.0
    %3208 = vmatprep.subr.mxu0 0.0
    %3209 = vmatpush1.msra.mxu0 0.0
    %3210 = vmatprep.subr.mxu0 0.0
    %3211 = vmatpush1.msra.mxu0 0.0
    %3212 = vmatprep.subr.mxu0 0.0
    %3213 = vmatpush1.msra.mxu0 0.0
    %3214 = vmatprep.subr.mxu0 0.0
    %3215 = vmatpush1.msra.mxu0 0.0
    %3216 = vmatprep.subr.mxu0 0.0
    %3217 = vmatpush1.msra.mxu0 0.0
    %3218 = vmatprep.subr.mxu0 0.0
    %3219 = vmatpush1.msra.mxu0 0.0
    %3220 = vmatprep.subr.mxu0 0.0
    %3221 = vmatpush1.msra.mxu0 0.0
    %3222 = vmatprep.subr.mxu0 0.0
    %3223 = vmatpush1.msra.mxu0 0.0
    %3224 = vmatprep.subr.mxu0 0.0
    %3225 = vmatpush1.msra.mxu0 0.0
    %3226 = vmatprep.subr.mxu0 0.0
    %3227 = vmatpush1.msra.mxu0 0.0
    %3228 = vmatprep.subr.mxu0 0.0
    %3229 = vmatpush1.msra.mxu0 0.0
    %3230 = vmatprep.mubr.f32.mxu0 %v1655
    %3231 = vmatmul.mubr.f32.gmra.mrb[0].mxu0 %v49
    %v3232 = vpop.f32.mrb[0].mxu0
    %v3233 = vadd.f32 %v3156, %v3232
    %v3234 = vpop.f32.mrb[0].mxu0
    %v3235 = vadd.f32 %v3158, %v3234
    %3236 = vmatprep.mubr.f32.mxu0 %v1658
    %3237 = vmatmul.mubr.f32.gmra.mrb[0].mxu0 %v57
    %v3238 = vpop.f32.mrb[0].mxu0
    %v3239 = vadd.f32 %v3162, %v3238
    %v3240 = vpop.f32.mrb[0].mxu0
    %v3241 = vadd.f32 %v3164, %v3240
    %3242 = vdwg.mxu0
    %3243 = vmatprep.subr.mxu0 %v70
    %3244 = vmatpush1.msra.mxu0 %v69
    %3245 = vmatprep.subr.mxu0 %v84
    %3246 = vmatpush1.msra.mxu0 %v83
    %3247 = vmatprep.subr.mxu0 %v98
    %3248 = vmatpush1.msra.mxu0 %v97
    %3249 = vmatprep.subr.mxu0 %v112
    %3250 = vmatpush1.msra.mxu0 %v111
    %3251 = vmatprep.subr.mxu0 %v126
    %3252 = vmatpush1.msra.mxu0 %v125
    %3253 = vmatprep.subr.mxu0 %v140
    %3254 = vmatpush1.msra.mxu0 %v139
    %3255 = vmatprep.subr.mxu0 %v154
    %3256 = vmatpush1.msra.mxu0 %v153
    %3257 = vmatprep.subr.mxu0 %v168
    %3258 = vmatpush1.msra.mxu0 %v167
    %3259 = vmatprep.subr.mxu0 %v182
    %3260 = vmatpush1.msra.mxu0 %v181
    %3261 = vmatprep.subr.mxu0 %v196
    %3262 = vmatpush1.msra.mxu0 %v195
    %3263 = vmatprep.subr.mxu0 %v210
    %3264 = vmatpush1.msra.mxu0 %v209
    %3265 = vmatprep.subr.mxu0 %v224
    %3266 = vmatpush1.msra.mxu0 %v223
    %3267 = vmatprep.subr.mxu0 %v238
    %3268 = vmatpush1.msra.mxu0 %v237
    %3269 = vmatprep.subr.mxu0 %v252
    %3270 = vmatpush1.msra.mxu0 %v251
    %3271 = vmatprep.subr.mxu0 %v266
    %3272 = vmatpush1.msra.mxu0 %v265
    %3273 = vmatprep.subr.mxu0 %v280
    %3274 = vmatpush1.msra.mxu0 %v279
    %3275 = vmatprep.subr.mxu0 %v294
    %3276 = vmatpush1.msra.mxu0 %v293
    %3277 = vmatprep.subr.mxu0 %v308
    %3278 = vmatpush1.msra.mxu0 %v307
    %3279 = vmatprep.subr.mxu0 %v322
    %3280 = vmatpush1.msra.mxu0 %v321
    %3281 = vmatprep.subr.mxu0 %v336
    %3282 = vmatpush1.msra.mxu0 %v335
    %3283 = vmatprep.subr.mxu0 %v350
    %3284 = vmatpush1.msra.mxu0 %v349
    %3285 = vmatprep.subr.mxu0 %v364
    %3286 = vmatpush1.msra.mxu0 %v363
    %3287 = vmatprep.subr.mxu0 %v378
    %3288 = vmatpush1.msra.mxu0 %v377
    %3289 = vmatprep.subr.mxu0 %v392
    %3290 = vmatpush1.msra.mxu0 %v391
    %3291 = vmatprep.subr.mxu0 %v406
    %3292 = vmatpush1.msra.mxu0 %v405
    %3293 = vmatprep.subr.mxu0 %v420
    %3294 = vmatpush1.msra.mxu0 %v419
    %3295 = vmatprep.subr.mxu0 %v434
    %3296 = vmatpush1.msra.mxu0 %v433
    %3297 = vmatprep.subr.mxu0 %v448
    %3298 = vmatpush1.msra.mxu0 %v447
    %3299 = vmatprep.subr.mxu0 %v462
    %3300 = vmatpush1.msra.mxu0 %v461
    %3301 = vmatprep.subr.mxu0 %v476
    %3302 = vmatpush1.msra.mxu0 %v475
    %3303 = vmatprep.subr.mxu0 %v490
    %3304 = vmatpush1.msra.mxu0 %v489
    %3305 = vmatprep.subr.mxu0 %v504
    %3306 = vmatpush1.msra.mxu0 %v503
    %3307 = vmatprep.mubr.f32.mxu0 %v44
    %3308 = vmatmul.mubr.f32.gmra.mrb[0].mxu0 %v43
    %v3309 = vpop.f32.mrb[0].mxu0
    %v3310 = vadd.f32 %v1646, %v3309
    %v3311 = vpop.f32.mrb[0].mxu0
    %v3312 = vadd.f32 %v1646, %v3311
    %3313 = vmatprep.mubr.f32.mxu0 %v52
    %3314 = vmatmul.mubr.f32.gmra.mrb[0].mxu0 %v51
    %v3315 = vpop.f32.mrb[0].mxu0
    %v3316 = vadd.f32 %v1651, %v3315
    %v3317 = vpop.f32.mrb[0].mxu0
    %v3318 = vadd.f32 %v1651, %v3317
    %3319 = vdwg.mxu0
    %3320 = vmatprep.subr.mxu0 %v518
    %3321 = vmatpush1.msra.mxu0 %v517
    %3322 = vmatprep.subr.mxu0 %v532
    %3323 = vmatpush1.msra.mxu0 %v531
    %3324 = vmatprep.subr.mxu0 %v546
    %3325 = vmatpush1.msra.mxu0 %v545
    %3326 = vmatprep.subr.mxu0 %v560
    %3327 = vmatpush1.msra.mxu0 %v559
    %3328 = vmatprep.subr.mxu0 %v574
    %3329 = vmatpush1.msra.mxu0 %v573
    %3330 = vmatprep.subr.mxu0 %v588
    %3331 = vmatpush1.msra.mxu0 %v587
    %3332 = vmatprep.subr.mxu0 %v602
    %3333 = vmatpush1.msra.mxu0 %v601
    %3334 = vmatprep.subr.mxu0 %v616
    %3335 = vmatpush1.msra.mxu0 %v615
    %3336 = vmatprep.subr.mxu0 %v630
    %3337 = vmatpush1.msra.mxu0 %v629
    %3338 = vmatprep.subr.mxu0 %v644
    %3339 = vmatpush1.msra.mxu0 %v643
    %3340 = vmatprep.subr.mxu0 %v658
    %3341 = vmatpush1.msra.mxu0 %v657
    %3342 = vmatprep.subr.mxu0 %v672
    %3343 = vmatpush1.msra.mxu0 %v671
    %3344 = vmatprep.subr.mxu0 %v686
    %3345 = vmatpush1.msra.mxu0 %v685
    %3346 = vmatprep.subr.mxu0 %v700
    %3347 = vmatpush1.msra.mxu0 %v699
    %3348 = vmatprep.subr.mxu0 %v714
    %3349 = vmatpush1.msra.mxu0 %v713
    %3350 = vmatprep.subr.mxu0 %v728
    %3351 = vmatpush1.msra.mxu0 %v727
    %3352 = vmatprep.subr.mxu0 %v742
    %3353 = vmatpush1.msra.mxu0 %v741
    %3354 = vmatprep.subr.mxu0 %v756
    %3355 = vmatpush1.msra.mxu0 %v755
    %3356 = vmatprep.subr.mxu0 %v770
    %3357 = vmatpush1.msra.mxu0 %v769
    %3358 = vmatprep.subr.mxu0 %v784
    %3359 = vmatpush1.msra.mxu0 %v783
    %3360 = vmatprep.subr.mxu0 %v798
    %3361 = vmatpush1.msra.mxu0 %v797
    %3362 = vmatprep.subr.mxu0 %v812
    %3363 = vmatpush1.msra.mxu0 %v811
    %3364 = vmatprep.subr.mxu0 %v826
    %3365 = vmatpush1.msra.mxu0 %v825
    %3366 = vmatprep.subr.mxu0 %v840
    %3367 = vmatpush1.msra.mxu0 %v839
    %3368 = vmatprep.subr.mxu0 %v854
    %3369 = vmatpush1.msra.mxu0 %v853
    %3370 = vmatprep.subr.mxu0 %v868
    %3371 = vmatpush1.msra.mxu0 %v867
    %3372 = vmatprep.subr.mxu0 %v882
    %3373 = vmatpush1.msra.mxu0 %v881
    %3374 = vmatprep.subr.mxu0 %v896
    %3375 = vmatpush1.msra.mxu0 %v895
    %3376 = vmatprep.subr.mxu0 %v910
    %3377 = vmatpush1.msra.mxu0 %v909
    %3378 = vmatprep.subr.mxu0 %v924
    %3379 = vmatpush1.msra.mxu0 %v923
    %3380 = vmatprep.subr.mxu0 %v938
    %3381 = vmatpush1.msra.mxu0 %v937
    %3382 = vmatprep.subr.mxu0 %v952
    %3383 = vmatpush1.msra.mxu0 %v951
    %3384 = vmatprep.mubr.f32.mxu0 %v46
    %3385 = vmatmul.mubr.f32.gmra.mrb[0].mxu0 %v45
    %v3386 = vpop.f32.mrb[0].mxu0
    %v3387 = vadd.f32 %v3310, %v3386
    %v3388 = vpop.f32.mrb[0].mxu0
    %v3389 = vadd.f32 %v3312, %v3388
    %3390 = vmatprep.mubr.f32.mxu0 %v54
    %3391 = vmatmul.mubr.f32.gmra.mrb[0].mxu0 %v53
    %v3392 = vpop.f32.mrb[0].mxu0
    %v3393 = vadd.f32 %v3316, %v3392
    %v3394 = vpop.f32.mrb[0].mxu0
    %v3395 = vadd.f32 %v3318, %v3394
    %3396 = vdwg.mxu0
    %3397 = vmatprep.subr.mxu0 %v966
    %3398 = vmatpush1.msra.mxu0 %v965
    %3399 = vmatprep.subr.mxu0 %v980
    %3400 = vmatpush1.msra.mxu0 %v979
    %3401 = vmatprep.subr.mxu0 %v994
    %3402 = vmatpush1.msra.mxu0 %v993
    %3403 = vmatprep.subr.mxu0 %v1008
    %3404 = vmatpush1.msra.mxu0 %v1007
    %3405 = vmatprep.subr.mxu0 %v1022
    %3406 = vmatpush1.msra.mxu0 %v1021
    %3407 = vmatprep.subr.mxu0 %v1036
    %3408 = vmatpush1.msra.mxu0 %v1035
    %3409 = vmatprep.subr.mxu0 %v1050
    %3410 = vmatpush1.msra.mxu0 %v1049
    %3411 = vmatprep.subr.mxu0 %v1064
    %3412 = vmatpush1.msra.mxu0 %v1063
    %3413 = vmatprep.subr.mxu0 %v1078
    %3414 = vmatpush1.msra.mxu0 %v1077
    %3415 = vmatprep.subr.mxu0 %v1092
    %3416 = vmatpush1.msra.mxu0 %v1091
    %3417 = vmatprep.subr.mxu0 %v1106
    %3418 = vmatpush1.msra.mxu0 %v1105
    %3419 = vmatprep.subr.mxu0 %v1120
    %3420 = vmatpush1.msra.mxu0 %v1119
    %3421 = vmatprep.subr.mxu0 %v1134
    %3422 = vmatpush1.msra.mxu0 %v1133
    %3423 = vmatprep.subr.mxu0 %v1148
    %3424 = vmatpush1.msra.mxu0 %v1147
    %3425 = vmatprep.subr.mxu0 %v1162
    %3426 = vmatpush1.msra.mxu0 %v1161
    %3427 = vmatprep.subr.mxu0 %v1176
    %3428 = vmatpush1.msra.mxu0 %v1175
    %3429 = vmatprep.subr.mxu0 %v1190
    %3430 = vmatpush1.msra.mxu0 %v1189
    %3431 = vmatprep.subr.mxu0 %v1204
    %3432 = vmatpush1.msra.mxu0 %v1203
    %3433 = vmatprep.subr.mxu0 %v1218
    %3434 = vmatpush1.msra.mxu0 %v1217
    %3435 = vmatprep.subr.mxu0 %v1232
    %3436 = vmatpush1.msra.mxu0 %v1231
    %3437 = vmatprep.subr.mxu0 %v1246
    %3438 = vmatpush1.msra.mxu0 %v1245
    %3439 = vmatprep.subr.mxu0 %v1260
    %3440 = vmatpush1.msra.mxu0 %v1259
    %3441 = vmatprep.subr.mxu0 %v1274
    %3442 = vmatpush1.msra.mxu0 %v1273
    %3443 = vmatprep.subr.mxu0 %v1288
    %3444 = vmatpush1.msra.mxu0 %v1287
    %3445 = vmatprep.subr.mxu0 %v1302
    %3446 = vmatpush1.msra.mxu0 %v1301
    %3447 = vmatprep.subr.mxu0 %v1316
    %3448 = vmatpush1.msra.mxu0 %v1315
    %3449 = vmatprep.subr.mxu0 %v1330
    %3450 = vmatpush1.msra.mxu0 %v1329
    %3451 = vmatprep.subr.mxu0 %v1344
    %3452 = vmatpush1.msra.mxu0 %v1343
    %3453 = vmatprep.subr.mxu0 %v1358
    %3454 = vmatpush1.msra.mxu0 %v1357
    %3455 = vmatprep.subr.mxu0 %v1372
    %3456 = vmatpush1.msra.mxu0 %v1371
    %3457 = vmatprep.subr.mxu0 %v1386
    %3458 = vmatpush1.msra.mxu0 %v1385
    %3459 = vmatprep.subr.mxu0 %v1400
    %3460 = vmatpush1.msra.mxu0 %v1399
    %3461 = vmatprep.mubr.f32.mxu0 %v48
    %3462 = vmatmul.mubr.f32.gmra.mrb[0].mxu0 %v47
    %v3463 = vpop.f32.mrb[0].mxu0
    %v3464 = vadd.f32 %v3387, %v3463
    %v3465 = vpop.f32.mrb[0].mxu0
    %v3466 = vadd.f32 %v3389, %v3465
    %3467 = vmatprep.mubr.f32.mxu0 %v56
    %3468 = vmatmul.mubr.f32.gmra.mrb[0].mxu0 %v55
    %v3469 = vpop.f32.mrb[0].mxu0
    %v3470 = vadd.f32 %v3393, %v3469
    %v3471 = vpop.f32.mrb[0].mxu0
    %v3472 = vadd.f32 %v3395, %v3471
    %3473 = vdwg.mxu0
    %3474 = vmatprep.subr.mxu0 %v1414
    %3475 = vmatpush1.msra.mxu0 %v1413
    %3476 = vmatprep.subr.mxu0 %v1428
    %3477 = vmatpush1.msra.mxu0 %v1427
    %3478 = vmatprep.subr.mxu0 %v1442
    %3479 = vmatpush1.msra.mxu0 %v1441
    %3480 = vmatprep.subr.mxu0 %v1456
    %3481 = vmatpush1.msra.mxu0 %v1455
    %3482 = vmatprep.subr.mxu0 %v1470
    %3483 = vmatpush1.msra.mxu0 %v1469
    %3484 = vmatprep.subr.mxu0 %v1484
    %3485 = vmatpush1.msra.mxu0 %v1483
    %3486 = vmatprep.subr.mxu0 %v1498
    %3487 = vmatpush1.msra.mxu0 %v1497
    %3488 = vmatprep.subr.mxu0 %v1512
    %3489 = vmatpush1.msra.mxu0 %v1511
    %3490 = vmatprep.subr.mxu0 %v1526
    %3491 = vmatpush1.msra.mxu0 %v1525
    %3492 = vmatprep.subr.mxu0 %v1540
    %3493 = vmatpush1.msra.mxu0 %v1539
    %3494 = vmatprep.subr.mxu0 %v1554
    %3495 = vmatpush1.msra.mxu0 %v1553
    %3496 = vmatprep.subr.mxu0 %v1568
    %3497 = vmatpush1.msra.mxu0 %v1567
    %3498 = vmatprep.subr.mxu0 %v1582
    %3499 = vmatpush1.msra.mxu0 %v1581
    %3500 = vmatprep.subr.mxu0 %v1596
    %3501 = vmatpush1.msra.mxu0 %v1595
    %3502 = vmatprep.subr.mxu0 %v1610
    %3503 = vmatpush1.msra.mxu0 %v1609
    %3504 = vmatprep.subr.mxu0 %v1624
    %3505 = vmatpush1.msra.mxu0 %v1623
    %3506 = vmatprep.subr.mxu0 %v1695
    %3507 = vmatpush1.msra.mxu0 %v1692
    %3508 = vmatprep.subr.mxu0 0.0
    %3509 = vmatpush1.msra.mxu0 0.0
    %3510 = vmatprep.subr.mxu0 0.0
    %3511 = vmatpush1.msra.mxu0 0.0
    %3512 = vmatprep.subr.mxu0 0.0
    %3513 = vmatpush1.msra.mxu0 0.0
    %3514 = vmatprep.subr.mxu0 0.0
    %3515 = vmatpush1.msra.mxu0 0.0
    %3516 = vmatprep.subr.mxu0 0.0
    %3517 = vmatpush1.msra.mxu0 0.0
    %3518 = vmatprep.subr.mxu0 0.0
    %3519 = vmatpush1.msra.mxu0 0.0
    %3520 = vmatprep.subr.mxu0 0.0
    %3521 = vmatpush1.msra.mxu0 0.0
    %3522 = vmatprep.subr.mxu0 0.0
    %3523 = vmatpush1.msra.mxu0 0.0
    %3524 = vmatprep.subr.mxu0 0.0
    %3525 = vmatpush1.msra.mxu0 0.0
    %3526 = vmatprep.subr.mxu0 0.0
    %3527 = vmatpush1.msra.mxu0 0.0
    %3528 = vmatprep.subr.mxu0 0.0
    %3529 = vmatpush1.msra.mxu0 0.0
    %3530 = vmatprep.subr.mxu0 0.0
    %3531 = vmatpush1.msra.mxu0 0.0
    %3532 = vmatprep.subr.mxu0 0.0
    %3533 = vmatpush1.msra.mxu0 0.0
    %3534 = vmatprep.subr.mxu0 0.0
    %3535 = vmatpush1.msra.mxu0 0.0
    %3536 = vmatprep.subr.mxu0 0.0
    %3537 = vmatpush1.msra.mxu0 0.0
    %3538 = vmatprep.mubr.f32.mxu0 %v1655
    %3539 = vmatmul.mubr.f32.gmra.mrb[0].mxu0 %v49
    %v3540 = vpop.f32.mrb[0].mxu0
    %v3541 = vadd.f32 %v3464, %v3540
    %v3542 = vpop.f32.mrb[0].mxu0
    %v3543 = vadd.f32 %v3466, %v3542
    %3544 = vmatprep.mubr.f32.mxu0 %v1658
    %3545 = vmatmul.mubr.f32.gmra.mrb[0].mxu0 %v57
    %v3546 = vpop.f32.mrb[0].mxu0
    %v3547 = vadd.f32 %v3470, %v3546
    %v3548 = vpop.f32.mrb[0].mxu0
    %v3549 = vadd.f32 %v3472, %v3548
    %3550 = vdwg.mxu0
    %3551 = vmatprep.subr.mxu0 %v72
    %3552 = vmatpush1.msra.mxu0 %v71
    %3553 = vmatprep.subr.mxu0 %v86
    %3554 = vmatpush1.msra.mxu0 %v85
    %3555 = vmatprep.subr.mxu0 %v100
    %3556 = vmatpush1.msra.mxu0 %v99
    %3557 = vmatprep.subr.mxu0 %v114
    %3558 = vmatpush1.msra.mxu0 %v113
    %3559 = vmatprep.subr.mxu0 %v128
    %3560 = vmatpush1.msra.mxu0 %v127
    %3561 = vmatprep.subr.mxu0 %v142
    %3562 = vmatpush1.msra.mxu0 %v141
    %3563 = vmatprep.subr.mxu0 %v156
    %3564 = vmatpush1.msra.mxu0 %v155
    %3565 = vmatprep.subr.mxu0 %v170
    %3566 = vmatpush1.msra.mxu0 %v169
    %3567 = vmatprep.subr.mxu0 %v184
    %3568 = vmatpush1.msra.mxu0 %v183
    %3569 = vmatprep.subr.mxu0 %v198
    %3570 = vmatpush1.msra.mxu0 %v197
    %3571 = vmatprep.subr.mxu0 %v212
    %3572 = vmatpush1.msra.mxu0 %v211
    %3573 = vmatprep.subr.mxu0 %v226
    %3574 = vmatpush1.msra.mxu0 %v225
    %3575 = vmatprep.subr.mxu0 %v240
    %3576 = vmatpush1.msra.mxu0 %v239
    %3577 = vmatprep.subr.mxu0 %v254
    %3578 = vmatpush1.msra.mxu0 %v253
    %3579 = vmatprep.subr.mxu0 %v268
    %3580 = vmatpush1.msra.mxu0 %v267
    %3581 = vmatprep.subr.mxu0 %v282
    %3582 = vmatpush1.msra.mxu0 %v281
    %3583 = vmatprep.subr.mxu0 %v296
    %3584 = vmatpush1.msra.mxu0 %v295
    %3585 = vmatprep.subr.mxu0 %v310
    %3586 = vmatpush1.msra.mxu0 %v309
    %3587 = vmatprep.subr.mxu0 %v324
    %3588 = vmatpush1.msra.mxu0 %v323
    %3589 = vmatprep.subr.mxu0 %v338
    %3590 = vmatpush1.msra.mxu0 %v337
    %3591 = vmatprep.subr.mxu0 %v352
    %3592 = vmatpush1.msra.mxu0 %v351
    %3593 = vmatprep.subr.mxu0 %v366
    %3594 = vmatpush1.msra.mxu0 %v365
    %3595 = vmatprep.subr.mxu0 %v380
    %3596 = vmatpush1.msra.mxu0 %v379
    %3597 = vmatprep.subr.mxu0 %v394
    %3598 = vmatpush1.msra.mxu0 %v393
    %3599 = vmatprep.subr.mxu0 %v408
    %3600 = vmatpush1.msra.mxu0 %v407
    %3601 = vmatprep.subr.mxu0 %v422
    %3602 = vmatpush1.msra.mxu0 %v421
    %3603 = vmatprep.subr.mxu0 %v436
    %3604 = vmatpush1.msra.mxu0 %v435
    %3605 = vmatprep.subr.mxu0 %v450
    %3606 = vmatpush1.msra.mxu0 %v449
    %3607 = vmatprep.subr.mxu0 %v464
    %3608 = vmatpush1.msra.mxu0 %v463
    %3609 = vmatprep.subr.mxu0 %v478
    %3610 = vmatpush1.msra.mxu0 %v477
    %3611 = vmatprep.subr.mxu0 %v492
    %3612 = vmatpush1.msra.mxu0 %v491
    %3613 = vmatprep.subr.mxu0 %v506
    %3614 = vmatpush1.msra.mxu0 %v505
    %3615 = vmatprep.mubr.f32.mxu0 %v44
    %3616 = vmatmul.mubr.f32.gmra.mrb[0].mxu0 %v43
    %v3617 = vpop.f32.mrb[0].mxu0
    %v3618 = vadd.f32 %v1646, %v3617
    %v3619 = vpop.f32.mrb[0].mxu0
    %v3620 = vadd.f32 %v1646, %v3619
    %3621 = vmatprep.mubr.f32.mxu0 %v52
    %3622 = vmatmul.mubr.f32.gmra.mrb[0].mxu0 %v51
    %v3623 = vpop.f32.mrb[0].mxu0
    %v3624 = vadd.f32 %v1651, %v3623
    %v3625 = vpop.f32.mrb[0].mxu0
    %v3626 = vadd.f32 %v1651, %v3625
    %3627 = vdwg.mxu0
    %3628 = vmatprep.subr.mxu0 %v520
    %3629 = vmatpush1.msra.mxu0 %v519
    %3630 = vmatprep.subr.mxu0 %v534
    %3631 = vmatpush1.msra.mxu0 %v533
    %3632 = vmatprep.subr.mxu0 %v548
    %3633 = vmatpush1.msra.mxu0 %v547
    %3634 = vmatprep.subr.mxu0 %v562
    %3635 = vmatpush1.msra.mxu0 %v561
    %3636 = vmatprep.subr.mxu0 %v576
    %3637 = vmatpush1.msra.mxu0 %v575
    %3638 = vmatprep.subr.mxu0 %v590
    %3639 = vmatpush1.msra.mxu0 %v589
    %3640 = vmatprep.subr.mxu0 %v604
    %3641 = vmatpush1.msra.mxu0 %v603
    %3642 = vmatprep.subr.mxu0 %v618
    %3643 = vmatpush1.msra.mxu0 %v617
    %3644 = vmatprep.subr.mxu0 %v632
    %3645 = vmatpush1.msra.mxu0 %v631
    %3646 = vmatprep.subr.mxu0 %v646
    %3647 = vmatpush1.msra.mxu0 %v645
    %3648 = vmatprep.subr.mxu0 %v660
    %3649 = vmatpush1.msra.mxu0 %v659
    %3650 = vmatprep.subr.mxu0 %v674
    %3651 = vmatpush1.msra.mxu0 %v673
    %3652 = vmatprep.subr.mxu0 %v688
    %3653 = vmatpush1.msra.mxu0 %v687
    %3654 = vmatprep.subr.mxu0 %v702
    %3655 = vmatpush1.msra.mxu0 %v701
    %3656 = vmatprep.subr.mxu0 %v716
    %3657 = vmatpush1.msra.mxu0 %v715
    %3658 = vmatprep.subr.mxu0 %v730
    %3659 = vmatpush1.msra.mxu0 %v729
    %3660 = vmatprep.subr.mxu0 %v744
    %3661 = vmatpush1.msra.mxu0 %v743
    %3662 = vmatprep.subr.mxu0 %v758
    %3663 = vmatpush1.msra.mxu0 %v757
    %3664 = vmatprep.subr.mxu0 %v772
    %3665 = vmatpush1.msra.mxu0 %v771
    %3666 = vmatprep.subr.mxu0 %v786
    %3667 = vmatpush1.msra.mxu0 %v785
    %3668 = vmatprep.subr.mxu0 %v800
    %3669 = vmatpush1.msra.mxu0 %v799
    %3670 = vmatprep.subr.mxu0 %v814
    %3671 = vmatpush1.msra.mxu0 %v813
    %3672 = vmatprep.subr.mxu0 %v828
    %3673 = vmatpush1.msra.mxu0 %v827
    %3674 = vmatprep.subr.mxu0 %v842
    %3675 = vmatpush1.msra.mxu0 %v841
    %3676 = vmatprep.subr.mxu0 %v856
    %3677 = vmatpush1.msra.mxu0 %v855
    %3678 = vmatprep.subr.mxu0 %v870
    %3679 = vmatpush1.msra.mxu0 %v869
    %3680 = vmatprep.subr.mxu0 %v884
    %3681 = vmatpush1.msra.mxu0 %v883
    %3682 = vmatprep.subr.mxu0 %v898
    %3683 = vmatpush1.msra.mxu0 %v897
    %3684 = vmatprep.subr.mxu0 %v912
    %3685 = vmatpush1.msra.mxu0 %v911
    %3686 = vmatprep.subr.mxu0 %v926
    %3687 = vmatpush1.msra.mxu0 %v925
    %3688 = vmatprep.subr.mxu0 %v940
    %3689 = vmatpush1.msra.mxu0 %v939
    %3690 = vmatprep.subr.mxu0 %v954
    %3691 = vmatpush1.msra.mxu0 %v953
    %3692 = vmatprep.mubr.f32.mxu0 %v46
    %3693 = vmatmul.mubr.f32.gmra.mrb[0].mxu0 %v45
    %v3694 = vpop.f32.mrb[0].mxu0
    %v3695 = vadd.f32 %v3618, %v3694
    %v3696 = vpop.f32.mrb[0].mxu0
    %v3697 = vadd.f32 %v3620, %v3696
    %3698 = vmatprep.mubr.f32.mxu0 %v54
    %3699 = vmatmul.mubr.f32.gmra.mrb[0].mxu0 %v53
    %v3700 = vpop.f32.mrb[0].mxu0
    %v3701 = vadd.f32 %v3624, %v3700
    %v3702 = vpop.f32.mrb[0].mxu0
    %v3703 = vadd.f32 %v3626, %v3702
    %3704 = vdwg.mxu0
    %3705 = vmatprep.subr.mxu0 %v968
    %3706 = vmatpush1.msra.mxu0 %v967
    %3707 = vmatprep.subr.mxu0 %v982
    %3708 = vmatpush1.msra.mxu0 %v981
    %3709 = vmatprep.subr.mxu0 %v996
    %3710 = vmatpush1.msra.mxu0 %v995
    %3711 = vmatprep.subr.mxu0 %v1010
    %3712 = vmatpush1.msra.mxu0 %v1009
    %3713 = vmatprep.subr.mxu0 %v1024
    %3714 = vmatpush1.msra.mxu0 %v1023
    %3715 = vmatprep.subr.mxu0 %v1038
    %3716 = vmatpush1.msra.mxu0 %v1037
    %3717 = vmatprep.subr.mxu0 %v1052
    %3718 = vmatpush1.msra.mxu0 %v1051
    %3719 = vmatprep.subr.mxu0 %v1066
    %3720 = vmatpush1.msra.mxu0 %v1065
    %3721 = vmatprep.subr.mxu0 %v1080
    %3722 = vmatpush1.msra.mxu0 %v1079
    %3723 = vmatprep.subr.mxu0 %v1094
    %3724 = vmatpush1.msra.mxu0 %v1093
    %3725 = vmatprep.subr.mxu0 %v1108
    %3726 = vmatpush1.msra.mxu0 %v1107
    %3727 = vmatprep.subr.mxu0 %v1122
    %3728 = vmatpush1.msra.mxu0 %v1121
    %3729 = vmatprep.subr.mxu0 %v1136
    %3730 = vmatpush1.msra.mxu0 %v1135
    %3731 = vmatprep.subr.mxu0 %v1150
    %3732 = vmatpush1.msra.mxu0 %v1149
    %3733 = vmatprep.subr.mxu0 %v1164
    %3734 = vmatpush1.msra.mxu0 %v1163
    %3735 = vmatprep.subr.mxu0 %v1178
    %3736 = vmatpush1.msra.mxu0 %v1177
    %3737 = vmatprep.subr.mxu0 %v1192
    %3738 = vmatpush1.msra.mxu0 %v1191
    %3739 = vmatprep.subr.mxu0 %v1206
    %3740 = vmatpush1.msra.mxu0 %v1205
    %3741 = vmatprep.subr.mxu0 %v1220
    %3742 = vmatpush1.msra.mxu0 %v1219
    %3743 = vmatprep.subr.mxu0 %v1234
    %3744 = vmatpush1.msra.mxu0 %v1233
    %3745 = vmatprep.subr.mxu0 %v1248
    %3746 = vmatpush1.msra.mxu0 %v1247
    %3747 = vmatprep.subr.mxu0 %v1262
    %3748 = vmatpush1.msra.mxu0 %v1261
    %3749 = vmatprep.subr.mxu0 %v1276
    %3750 = vmatpush1.msra.mxu0 %v1275
    %3751 = vmatprep.subr.mxu0 %v1290
    %3752 = vmatpush1.msra.mxu0 %v1289
    %3753 = vmatprep.subr.mxu0 %v1304
    %3754 = vmatpush1.msra.mxu0 %v1303
    %3755 = vmatprep.subr.mxu0 %v1318
    %3756 = vmatpush1.msra.mxu0 %v1317
    %3757 = vmatprep.subr.mxu0 %v1332
    %3758 = vmatpush1.msra.mxu0 %v1331
    %3759 = vmatprep.subr.mxu0 %v1346
    %3760 = vmatpush1.msra.mxu0 %v1345
    %3761 = vmatprep.subr.mxu0 %v1360
    %3762 = vmatpush1.msra.mxu0 %v1359
    %3763 = vmatprep.subr.mxu0 %v1374
    %3764 = vmatpush1.msra.mxu0 %v1373
    %3765 = vmatprep.subr.mxu0 %v1388
    %3766 = vmatpush1.msra.mxu0 %v1387
    %3767 = vmatprep.subr.mxu0 %v1402
    %3768 = vmatpush1.msra.mxu0 %v1401
    %3769 = vmatprep.mubr.f32.mxu0 %v48
    %3770 = vmatmul.mubr.f32.gmra.mrb[0].mxu0 %v47
    %v3771 = vpop.f32.mrb[0].mxu0
    %v3772 = vadd.f32 %v3695, %v3771
    %v3773 = vpop.f32.mrb[0].mxu0
    %v3774 = vadd.f32 %v3697, %v3773
    %3775 = vmatprep.mubr.f32.mxu0 %v56
    %3776 = vmatmul.mubr.f32.gmra.mrb[0].mxu0 %v55
    %v3777 = vpop.f32.mrb[0].mxu0
    %v3778 = vadd.f32 %v3701, %v3777
    %v3779 = vpop.f32.mrb[0].mxu0
    %v3780 = vadd.f32 %v3703, %v3779
    %3781 = vdwg.mxu0
    %3782 = vmatprep.subr.mxu0 %v1416
    %3783 = vmatpush1.msra.mxu0 %v1415
    %3784 = vmatprep.subr.mxu0 %v1430
    %3785 = vmatpush1.msra.mxu0 %v1429
    %3786 = vmatprep.subr.mxu0 %v1444
    %3787 = vmatpush1.msra.mxu0 %v1443
    %3788 = vmatprep.subr.mxu0 %v1458
    %3789 = vmatpush1.msra.mxu0 %v1457
    %3790 = vmatprep.subr.mxu0 %v1472
    %3791 = vmatpush1.msra.mxu0 %v1471
    %3792 = vmatprep.subr.mxu0 %v1486
    %3793 = vmatpush1.msra.mxu0 %v1485
    %3794 = vmatprep.subr.mxu0 %v1500
    %3795 = vmatpush1.msra.mxu0 %v1499
    %3796 = vmatprep.subr.mxu0 %v1514
    %3797 = vmatpush1.msra.mxu0 %v1513
    %3798 = vmatprep.subr.mxu0 %v1528
    %3799 = vmatpush1.msra.mxu0 %v1527
    %3800 = vmatprep.subr.mxu0 %v1542
    %3801 = vmatpush1.msra.mxu0 %v1541
    %3802 = vmatprep.subr.mxu0 %v1556
    %3803 = vmatpush1.msra.mxu0 %v1555
    %3804 = vmatprep.subr.mxu0 %v1570
    %3805 = vmatpush1.msra.mxu0 %v1569
    %3806 = vmatprep.subr.mxu0 %v1584
    %3807 = vmatpush1.msra.mxu0 %v1583
    %3808 = vmatprep.subr.mxu0 %v1598
    %3809 = vmatpush1.msra.mxu0 %v1597
    %3810 = vmatprep.subr.mxu0 %v1612
    %3811 = vmatpush1.msra.mxu0 %v1611
    %3812 = vmatprep.subr.mxu0 %v1626
    %3813 = vmatpush1.msra.mxu0 %v1625
    %3814 = vmatprep.subr.mxu0 %v1701
    %3815 = vmatpush1.msra.mxu0 %v1698
    %3816 = vmatprep.subr.mxu0 0.0
    %3817 = vmatpush1.msra.mxu0 0.0
    %3818 = vmatprep.subr.mxu0 0.0
    %3819 = vmatpush1.msra.mxu0 0.0
    %3820 = vmatprep.subr.mxu0 0.0
    %3821 = vmatpush1.msra.mxu0 0.0
    %3822 = vmatprep.subr.mxu0 0.0
    %3823 = vmatpush1.msra.mxu0 0.0
    %3824 = vmatprep.subr.mxu0 0.0
    %3825 = vmatpush1.msra.mxu0 0.0
    %3826 = vmatprep.subr.mxu0 0.0
    %3827 = vmatpush1.msra.mxu0 0.0
    %3828 = vmatprep.subr.mxu0 0.0
    %3829 = vmatpush1.msra.mxu0 0.0
    %3830 = vmatprep.subr.mxu0 0.0
    %3831 = vmatpush1.msra.mxu0 0.0
    %3832 = vmatprep.subr.mxu0 0.0
    %3833 = vmatpush1.msra.mxu0 0.0
    %3834 = vmatprep.subr.mxu0 0.0
    %3835 = vmatpush1.msra.mxu0 0.0
    %3836 = vmatprep.subr.mxu0 0.0
    %3837 = vmatpush1.msra.mxu0 0.0
    %3838 = vmatprep.subr.mxu0 0.0
    %3839 = vmatpush1.msra.mxu0 0.0
    %3840 = vmatprep.subr.mxu0 0.0
    %3841 = vmatpush1.msra.mxu0 0.0
    %3842 = vmatprep.subr.mxu0 0.0
    %3843 = vmatpush1.msra.mxu0 0.0
    %3844 = vmatprep.subr.mxu0 0.0
    %3845 = vmatpush1.msra.mxu0 0.0
    %3846 = vmatprep.mubr.f32.mxu0 %v1655
    %3847 = vmatmul.mubr.f32.gmra.mrb[0].mxu0 %v49
    %v3848 = vpop.f32.mrb[0].mxu0
    %v3849 = vadd.f32 %v3772, %v3848
    %v3850 = vpop.f32.mrb[0].mxu0
    %v3851 = vadd.f32 %v3774, %v3850
    %3852 = vmatprep.mubr.f32.mxu0 %v1658
    %3853 = vmatmul.mubr.f32.gmra.mrb[0].mxu0 %v57
    %v3854 = vpop.f32.mrb[0].mxu0
    %v3855 = vadd.f32 %v3778, %v3854
    %v3856 = vpop.f32.mrb[0].mxu0
    %v3857 = vadd.f32 %v3780, %v3856
    %3858 = vdwg.mxu0
    %v3859 = vmax.f32 %v2001, 0.0
    %v3860 = vmax.f32 %v2003, 0.0
    %v3861 = vmax.f32 %v2309, 0.0
    %v3862 = vmax.f32 %v2311, 0.0
    %v3863 = vmax.f32 %v2617, 0.0
    %v3864 = vmax.f32 %v2619, 0.0
    %v3865 = vmax.f32 %v2925, 0.0
    %v3866 = vmax.f32 %v2927, 0.0
    %v3867 = vmax.f32 %v3233, 0.0
    %v3868 = vmax.f32 %v3235, 0.0
    %v3869 = vmax.f32 %v3541, 0.0
    %v3870 = vmax.f32 %v3543, 0.0
    %v3871 = vmax.f32 %v3849, 0.0
    %v3872 = vmax.f32 %v3851, 0.0
    %v3873 = vmax.f32 %v2007, 0.0
    %v3874 = vmax.f32 %v2009, 0.0
    %v3875 = vmax.f32 %v2315, 0.0
    %v3876 = vmax.f32 %v2317, 0.0
    %v3877 = vmax.f32 %v2623, 0.0
    %v3878 = vmax.f32 %v2625, 0.0
    %v3879 = vmax.f32 %v2931, 0.0
    %v3880 = vmax.f32 %v2933, 0.0
    %v3881 = vmax.f32 %v3239, 0.0
    %v3882 = vmax.f32 %v3241, 0.0
    %v3883 = vmax.f32 %v3547, 0.0
    %v3884 = vmax.f32 %v3549, 0.0
    %v3885 = vmax.f32 %v3855, 0.0
    %v3886 = vmax.f32 %v3857, 0.0
    %3887 = vst [vmem:[#allocation7] sm:$0xff] %v3859
    %3888 = vst [vmem:[#allocation7 + $0x8] sm:$0xff] %v3860
    %3889 = vst [vmem:[#allocation7 + $0x10] sm:$0xff] %v3861
    %3890 = vst [vmem:[#allocation7 + $0x18] sm:$0xff] %v3862
    %3891 = vst [vmem:[#allocation7 + $0x20] sm:$0xff] %v3863
    %3892 = vst [vmem:[#allocation7 + $0x28] sm:$0xff] %v3864
    %3893 = vst [vmem:[#allocation7 + $0x30] sm:$0xff] %v3865
    %3894 = vst [vmem:[#allocation7 + $0x38] sm:$0xff] %v3866
    %3895 = vst [vmem:[#allocation7 + $0x40] sm:$0xff] %v3867
    %3896 = vst [vmem:[#allocation7 + $0x48] sm:$0xff] %v3868
    %3897 = vst [vmem:[#allocation7 + $0x50] sm:$0xff] %v3869
    %3898 = vst [vmem:[#allocation7 + $0x58] sm:$0xff] %v3870
    %3899 = vst [vmem:[#allocation7 + $0x60] sm:$0xff] %v3871
    %vm3900 = vcmask 146432
    %3901 = vst.msk [vmem:[#allocation7 + $0x68] sm:$0xff] %vm3900, %v3872
    %3902 = vst [vmem:[#allocation7 + $0x70] sm:$0xff] %v3873
    %3903 = vst [vmem:[#allocation7 + $0x78] sm:$0xff] %v3874
    %3904 = vst [vmem:[#allocation7 + $0x80] sm:$0xff] %v3875
    %3905 = vst [vmem:[#allocation7 + $0x88] sm:$0xff] %v3876
    %3906 = vst [vmem:[#allocation7 + $0x90] sm:$0xff] %v3877
    %3907 = vst [vmem:[#allocation7 + $0x98] sm:$0xff] %v3878
    %3908 = vst [vmem:[#allocation7 + $0xa0] sm:$0xff] %v3879
    %3909 = vst [vmem:[#allocation7 + $0xa8] sm:$0xff] %v3880
    %3910 = vst [vmem:[#allocation7 + $0xb0] sm:$0xff] %v3881
    %3911 = vst [vmem:[#allocation7 + $0xb8] sm:$0xff] %v3882
    %3912 = vst [vmem:[#allocation7 + $0xc0] sm:$0xff] %v3883
    %3913 = vst [vmem:[#allocation7 + $0xc8] sm:$0xff] %v3884
    %3914 = vst [vmem:[#allocation7 + $0xd0] sm:$0xff] %v3885
    %3915 = vst.msk [vmem:[#allocation7 + $0xd8] sm:$0xff] %vm3900, %v3886
    // Predicated region
    $region22: #{tpu_custom_call.1} parent=1 // pred_check
      _
    $region23: #{tpu_custom_call.1} parent=1 // pred_check_branch
      %3917 = sbr.rel (0) target = $region25
    $region24: #{tpu_custom_call.1} parent=1 // pred_region
      %s3919 = ssub.s32 3584, 3584
      %3920 = vsyncadd [#allocation4], %s3919
      %s3921 = sshll.u32 [#allocation7], 4
      %s3922 = int_to_ptr.vmem [resolvable:$true] %s3921
      %3927 = dma.vmem_to_hbm [thread:$0]  %s3922, 3584, %s3, [#allocation4], 1792, 1792, 112
    $region25: #{tpu_custom_call.1} parent=1 // pred_fallthru
      _
    // Predicated region
    $region26: #{tpu_custom_call.1} parent=1 // pred_check
      _
    $region27: #{tpu_custom_call.1} parent=1 // pred_check_branch
      %3929 = sbr.rel (0) target = $region29
    $region28: #{tpu_custom_call.1} parent=1 // pred_region
      %3930 = dma.done [#allocation4], 3584
    $region29: #{tpu_custom_call.1} parent=1 // pred_fallthru
      _
    %3931 = vsyncpa [#allocation3], 1
    %3932 = vsyncpa [#allocation6], 1
    %3933 = vsyncpa [#allocation4], 1

</llo_original>
